<compile_context>
chip_gen: v5e
topology: v5e:2x2
jax: 0.10.0
libtpu: 0.0.40
codegen_flags: <defaults>
</compile_context>

<pallas_src>
import jax
import jax.numpy as jnp
from jax import lax
from jax.experimental import pallas as pl
from jax.experimental.pallas import tpu as pltpu

# ---- module hyper-parameters (from train.py) ----
block_size = 32
n_embd = 64
n_head = 4
head_size = n_embd // n_head  # 16


def mha_kernel(x_ref, wqkv_ref, wproj_ref, bproj_ref, o_ref, cat_ref):
    """One grid step = Bb batch rows: fused QKV + per-head causal attention + fused proj."""
    Bb, T, C = x_ref.shape
    H = n_head
    hs = C // H

    # ---- fused QKV projection: one (Bb*T, C) @ (C, 3C) MXU matmul, bf16 in / f32 acc ----
    # Result is immediately narrowed to bf16: the MXU consumes bf16 Q/K/V anyway, and this
    # halves the vreg/VMEM footprint of the largest live temporary.
    x2d = x_ref[...].reshape(Bb * T, C)                               # bf16 (cast in wrapper)
    qkv = jnp.dot(x2d, wqkv_ref[...],
                  preferred_element_type=jnp.float32).astype(jnp.bfloat16)
    qkv = qkv.reshape(Bb, T, 3 * C)                                   # (Bb, T, 192) bf16

    # causal (lower-triangular) mask, built once per step.  The C**-0.5 scale is already
    # folded into the Q weights wrapper-side, so there is no per-element scale multiply.
    row = lax.broadcasted_iota(jnp.int32, (T, T), 0)
    col = lax.broadcasted_iota(jnp.int32, (T, T), 1)
    causal = (row >= col)[None, :, :]                                 # (1, T, T)
    neg_big = jnp.float32(-1e30)                                      # finite "-inf"

    # Per-head attention.  H = 4 is a static Python unroll (straight-line code the scheduler
    # interleaves); merging heads into a (Bb*H, T, hs) batch would require lane<->sublane
    # relayouts of q/k/v and of the PV result that outweigh the benefit at hs = 16.
    for h in range(H):
        lo = h * hs
        q = qkv[..., 0 * C + lo:0 * C + lo + hs]                      # (Bb, T, hs) bf16 (pre-scaled)
        k = qkv[..., 1 * C + lo:1 * C + lo + hs]
        v = qkv[..., 2 * C + lo:2 * C + lo + hs]

        # scores + masked softmax: bf16 MXU inputs, f32 accumulation and f32 softmax math.
        s = jnp.einsum("btd,bsd->bts", q, k,
                       preferred_element_type=jnp.float32)            # (Bb, T, T) f32
        s = jnp.where(causal, s, neg_big)
        s = s - jnp.max(s, axis=-1, keepdims=True)
        p = jnp.exp(s)                                                # EUP
        p = p * pl.reciprocal(jnp.sum(p, axis=-1, keepdims=True), approx=True)

        out_h = jnp.einsum("bts,bsd->btd", p.astype(jnp.bfloat16), v,
                           preferred_element_type=jnp.float32)        # (Bb, T, hs) f32

        # Park this head's output in the bf16 concat scratch at its lane offset instead of
        # keeping an f32 (Bb*T, C) accumulator live across the whole head loop.
        cat_ref[:, lo:lo + hs] = out_h.reshape(Bb * T, hs).astype(jnp.bfloat16)

    # ---- single fused output projection: (Bb*T, C) @ (C, C), K = 64 ----
    y = jnp.dot(cat_ref[...], wproj_ref[...], preferred_element_type=jnp.float32)
    y = y + bproj_ref[...]                                            # (Bb*T, C) + (1, C)
    o_ref[...] = y.reshape(Bb, T, C).astype(o_ref.dtype)


def _pick_block_batch(B, T, *, max_rows=2048):
    """Per-generation batch-block choice.

    v5e/v6e have a single TensorCore: a grid longer than 1 is a serial loop (+~0.35 us/step)
    feeding smaller M per matmul, so use the whole batch in one step.  v7x has 2 TensorCores:
    split the batch into an even grid (length 2) so the "parallel" axis shards 1:1.
    """
    kind = ""
    try:
        kind = jax.devices()[0].device_kind.lower()
    except Exception:
        pass
    bb = B
    if "v7" in kind and B % 2 == 0:
        bb = B // 2                                    # grid = 2 -> one step per TensorCore
    # Cap per-step rows (vreg pressure / VMEM headroom; v7x scoped default is 32 MiB of 64 MiB).
    while bb * T > max_rows and bb % 2 == 0:
        bb //= 2
    while B % bb != 0:                                 # keep bb a divisor of B
        bb -= 1
    return bb


def multi_head_attention(x, wk, wq, wv, wproj, bproj, *, block_batch=None):
    """x: (B, T, C); wk/wq/wv: (H, hs, C) PyTorch-layout Linear weights (y = x @ W.T);
    wproj: (C, C) PyTorch-layout; bproj: (C,)."""
    B, T, C = x.shape
    H, hs, _ = wk.shape
    Bb = block_batch if block_batch is not None else _pick_block_batch(B, T)
    assert B % Bb == 0

    # ---- one-time wrapper-side weight packing (layout plumbing outside the kernel) ----
    def to_in_out(w):                                  # (H, hs, C) -> (C, H*hs) so x @ W works
        return jnp.transpose(w, (2, 0, 1)).reshape(C, H * hs)

    # Fold the attention scale into the Q weights.  NB: train.py scales by C**-0.5 (=1/8),
    # not head_size**-0.5 -- keep it that way.  1/8 is a power of two, so scaling before the
    # bf16 cast is bit-identical to scaling the f32 scores afterwards.
    scale = C ** (-0.5)
    wqkv = jnp.concatenate([to_in_out(wq) * scale, to_in_out(wk), to_in_out(wv)],
                           axis=1).astype(jnp.bfloat16)                 # (C, 3C)
    wprojT = jnp.transpose(wproj).astype(jnp.bfloat16)                  # (C, C): y = cat @ W.T
    bproj2d = bproj.reshape(1, C).astype(jnp.float32)
    x_bf16 = x.astype(jnp.bfloat16)                    # half the input DMA; output stays f32

    return pl.pallas_call(
        mha_kernel,
        out_shape=jax.ShapeDtypeStruct((B, T, C), x.dtype),
        grid_spec=pltpu.PrefetchScalarGridSpec(
            num_scalar_prefetch=0,
            grid=(B // Bb,),
            in_specs=[
                pl.BlockSpec((Bb, T, C), lambda b: (b, 0, 0)),      # x block (Bb rows / step)
                pl.BlockSpec((C, 3 * C), lambda b: (0, 0)),         # fused QKV weight (resident)
                pl.BlockSpec((C, C), lambda b: (0, 0)),             # wproj^T (resident)
                pl.BlockSpec((1, C), lambda b: (0, 0)),             # proj bias
            ],
            out_specs=pl.BlockSpec((Bb, T, C), lambda b: (b, 0, 0)),
            scratch_shapes=[pltpu.VMEM((Bb * T, C), jnp.bfloat16)],  # head-concat buffer
        ),
        compiler_params=pltpu.CompilerParams(
            dimension_semantics=("parallel",),        # v7x: batch grid shards across both TCs
        ),
    )(x_bf16, wqkv, wprojT, bproj2d)


def reference(x, wk, wq, wv, wproj, bproj):
    """Pure-JAX f32 reference mirroring the PyTorch forward (weights in PyTorch layout)."""
    B, T, C = x.shape
    scale = C ** (-0.5)
    tril = jnp.tril(jnp.ones((T, T), dtype=bool))
    outs = []
    for h in range(wk.shape[0]):
        k = x @ wk[h].T
        q = x @ wq[h].T
        v = x @ wv[h].T
        wei = (q @ jnp.swapaxes(k, -2, -1)) * scale
        wei = jnp.where(tril[None, :, :], wei, -jnp.inf)
        wei = jax.nn.softmax(wei, axis=-1)
        outs.append(wei @ v)
    cat = jnp.concatenate(outs, axis=-1)
    return cat @ wproj.T + bproj


if __name__ == "__main__":
    key = jax.random.PRNGKey(0)
    B, T, C = 8, block_size, n_embd        # T = block_size = 32
    ks = jax.random.split(key, 6)

    x = jax.random.normal(ks[0], (B, T, C), dtype=jnp.float32)
    # PyTorch-layout parameters: Linear(C -> hs) weight is (hs, C); proj Linear is (C, C) + bias.
    wk = jax.random.normal(ks[1], (n_head, head_size, C), dtype=jnp.float32) * 0.1
    wq = jax.random.normal(ks[2], (n_head, head_size, C), dtype=jnp.float32) * 0.1
    wv = jax.random.normal(ks[3], (n_head, head_size, C), dtype=jnp.float32) * 0.1
    wproj = jax.random.normal(ks[4], (C, C), dtype=jnp.float32) * 0.1
    bproj = jax.random.normal(ks[5], (C,), dtype=jnp.float32) * 0.1

    out = multi_head_attention(x, wk, wq, wv, wproj, bproj)
    out = jax.block_until_ready(out)

    ref = reference(x, wk, wq, wv, wproj, bproj)
    assert out.shape == (B, T, C)
    # bf16 MXU inputs (f32 accumulation) -> compare at bf16-level tolerance
    max_diff = jnp.max(jnp.abs(out - ref))
    assert jnp.allclose(out, ref, atol=3e-2, rtol=3e-2), (
        f"Pallas output mismatch vs reference (max abs diff = {max_diff})")

    print("KERNEL_OK")
</pallas_src>

<mosaic_0001>
module attributes {stable_mosaic.version = 11 : i64} {
  func.func @mha_kernel(%arg0: i32, %arg1: memref<8x32x64xbf16, #tpu.memory_space<vmem>>, %arg2: memref<64x192xbf16, #tpu.memory_space<vmem>>, %arg3: memref<64x64xbf16, #tpu.memory_space<vmem>>, %arg4: memref<1x64xf32, #tpu.memory_space<vmem>>, %arg5: memref<8x32x64xf32, #tpu.memory_space<vmem>>, %arg6: memref<256x64xbf16, #tpu.memory_space<vmem>>) attributes {dimension_semantics = [#tpu.dimension_semantics<parallel>], iteration_bounds = array<i64: 1>, scalar_prefetch = 0 : i64, scratch_operands = 1 : i64, tpu.core_type = #tpu.core_type<tc>, window_params = [{transform_indices = @transform_0, window_bounds = array<i64: 8, 32, 64>}, {pipeline_mode = #tpu.pipeline_mode<synchronous>, transform_indices = @transform_1, window_bounds = array<i64: 64, 192>}, {pipeline_mode = #tpu.pipeline_mode<synchronous>, transform_indices = @transform_2, window_bounds = array<i64: 64, 64>}, {pipeline_mode = #tpu.pipeline_mode<synchronous>, transform_indices = @transform_3, window_bounds = array<i64: 1, 64>}, {transform_indices = @transform_4, window_bounds = array<i64: 8, 32, 64>}]} {
    %c0 = arith.constant 0 : index
    %c0_0 = arith.constant 0 : index
    %c0_1 = arith.constant 0 : index
    %0 = vector.load %arg1[%c0, %c0_0, %c0_1] : memref<8x32x64xbf16, #tpu.memory_space<vmem>>, vector<8x32x64xbf16>
    %1 = vector.shape_cast %0 : vector<8x32x64xbf16> to vector<256x64xbf16>
    %c0_2 = arith.constant 0 : index
    %c0_3 = arith.constant 0 : index
    %2 = vector.load %arg2[%c0_2, %c0_3] : memref<64x192xbf16, #tpu.memory_space<vmem>>, vector<64x192xbf16>
    %cst = arith.constant dense<0.000000e+00> : vector<256x192xf32>
    %3 = tpu.matmul %1, %2, %cst {dimension_numbers = #tpu.dot_dimension_numbers<[1], [0], [0], [1], [0, 0, 1, 1], [], []>} : vector<256x64xbf16>, vector<64x192xbf16>, vector<256x192xf32> -> vector<256x192xf32>
    %4 = arith.truncf %3 : vector<256x192xf32> to vector<256x192xbf16>
    %5 = vector.shape_cast %4 : vector<256x192xbf16> to vector<8x32x192xbf16>
    %6 = tpu.iota {dimensions = array<i32: 0>} : vector<32x32xi32>
    %7 = tpu.iota {dimensions = array<i32: 1>} : vector<32x32xi32>
    %8 = arith.cmpi sge, %6, %7 : vector<32x32xi32>
    %9 = vector.shape_cast %8 : vector<32x32xi1> to vector<1x32x32xi1>
    %10 = vector.extract_strided_slice %5 {offsets = [0, 0, 0], sizes = [8, 32, 16], strides = [1, 1, 1]} : vector<8x32x192xbf16> to vector<8x32x16xbf16>
    %11 = vector.extract_strided_slice %5 {offsets = [0, 0, 64], sizes = [8, 32, 16], strides = [1, 1, 1]} : vector<8x32x192xbf16> to vector<8x32x16xbf16>
    %12 = vector.extract_strided_slice %5 {offsets = [0, 0, 128], sizes = [8, 32, 16], strides = [1, 1, 1]} : vector<8x32x192xbf16> to vector<8x32x16xbf16>
    "tpu.trace_start"() <{level = 10 : i32, message = "btd,bsd->bts"}> : () -> ()
    %cst_4 = arith.constant dense<0.000000e+00> : vector<8x32x32xf32>
    %13 = tpu.matmul %10, %11, %cst_4 {dimension_numbers = #tpu.dot_dimension_numbers<[2], [2], [1], [1], [0, 0, 0, 1, 1, 1], [0], [0]>} : vector<8x32x16xbf16>, vector<8x32x16xbf16>, vector<8x32x32xf32> -> vector<8x32x32xf32>
    %cst_5 = arith.constant -1.000000e+30 : f32
    "tpu.trace_stop"() : () -> ()
    %14 = vector.shape_cast %9 : vector<1x32x32xi1> to vector<1x32x32xi1>
    %15 = vector.broadcast %14 : vector<1x32x32xi1> to vector<8x32x32xi1>
    %16 = vector.broadcast %cst_5 : f32 to vector<8x32x32xf32>
    %17 = arith.select %15, %13, %16 : vector<8x32x32xi1>, vector<8x32x32xf32>
    %cst_6 = arith.constant dense<0xFF800000> : vector<8x32xf32>
    %18 = vector.multi_reduction <maximumf>, %17, %cst_6 [2] : vector<8x32x32xf32> to vector<8x32xf32>
    %19 = vector.shape_cast %18 : vector<8x32xf32> to vector<8x32x1xf32>
    %20 = vector.broadcast %19 : vector<8x32x1xf32> to vector<8x32x32xf32>
    %21 = arith.subf %17, %20 : vector<8x32x32xf32>
    %22 = math.exp %21 : vector<8x32x32xf32>
    %cst_7 = arith.constant dense<0.000000e+00> : vector<8x32xf32>
    %23 = vector.multi_reduction <add>, %22, %cst_7 [2] : vector<8x32x32xf32> to vector<8x32xf32>
    %24 = vector.shape_cast %23 : vector<8x32xf32> to vector<8x32x1xf32>
    %25 = tpu.reciprocal %24 {approx = true} : vector<8x32x1xf32> -> vector<8x32x1xf32>
    %26 = vector.broadcast %25 : vector<8x32x1xf32> to vector<8x32x32xf32>
    %27 = arith.mulf %22, %26 : vector<8x32x32xf32>
    %28 = arith.truncf %27 : vector<8x32x32xf32> to vector<8x32x32xbf16>
    "tpu.trace_start"() <{level = 10 : i32, message = "bts,bsd->btd"}> : () -> ()
    %cst_8 = arith.constant dense<0.000000e+00> : vector<8x32x16xf32>
    %29 = tpu.matmul %28, %12, %cst_8 {dimension_numbers = #tpu.dot_dimension_numbers<[2], [1], [1], [2], [0, 0, 0, 1, 1, 2], [0], [0]>} : vector<8x32x32xbf16>, vector<8x32x16xbf16>, vector<8x32x16xf32> -> vector<8x32x16xf32>
    "tpu.trace_stop"() : () -> ()
    %30 = vector.shape_cast %29 : vector<8x32x16xf32> to vector<256x16xf32>
    %31 = arith.truncf %30 : vector<256x16xf32> to vector<256x16xbf16>
    %c0_9 = arith.constant 0 : index
    %c0_10 = arith.constant 0 : index
    %32 = vector.load %arg6[%c0_9, %c0_10] : memref<256x64xbf16, #tpu.memory_space<vmem>>, vector<256x16xbf16>
    tpu.vector_store %arg6[%c0_9, %c0_10], %31 {strides = array<i32>} : memref<256x64xbf16, #tpu.memory_space<vmem>>, vector<256x16xbf16>,
    %33 = vector.extract_strided_slice %5 {offsets = [0, 0, 16], sizes = [8, 32, 16], strides = [1, 1, 1]} : vector<8x32x192xbf16> to vector<8x32x16xbf16>
    %34 = vector.extract_strided_slice %5 {offsets = [0, 0, 80], sizes = [8, 32, 16], strides = [1, 1, 1]} : vector<8x32x192xbf16> to vector<8x32x16xbf16>
    %35 = vector.extract_strided_slice %5 {offsets = [0, 0, 144], sizes = [8, 32, 16], strides = [1, 1, 1]} : vector<8x32x192xbf16> to vector<8x32x16xbf16>
    "tpu.trace_start"() <{level = 10 : i32, message = "btd,bsd->bts"}> : () -> ()
    %cst_11 = arith.constant dense<0.000000e+00> : vector<8x32x32xf32>
    %36 = tpu.matmul %33, %34, %cst_11 {dimension_numbers = #tpu.dot_dimension_numbers<[2], [2], [1], [1], [0, 0, 0, 1, 1, 1], [0], [0]>} : vector<8x32x16xbf16>, vector<8x32x16xbf16>, vector<8x32x32xf32> -> vector<8x32x32xf32>
    %cst_12 = arith.constant -1.000000e+30 : f32
    "tpu.trace_stop"() : () -> ()
    %37 = vector.shape_cast %9 : vector<1x32x32xi1> to vector<1x32x32xi1>
    %38 = vector.broadcast %37 : vector<1x32x32xi1> to vector<8x32x32xi1>
    %39 = vector.broadcast %cst_12 : f32 to vector<8x32x32xf32>
    %40 = arith.select %38, %36, %39 : vector<8x32x32xi1>, vector<8x32x32xf32>
    %cst_13 = arith.constant dense<0xFF800000> : vector<8x32xf32>
    %41 = vector.multi_reduction <maximumf>, %40, %cst_13 [2] : vector<8x32x32xf32> to vector<8x32xf32>
    %42 = vector.shape_cast %41 : vector<8x32xf32> to vector<8x32x1xf32>
    %43 = vector.broadcast %42 : vector<8x32x1xf32> to vector<8x32x32xf32>
    %44 = arith.subf %40, %43 : vector<8x32x32xf32>
    %45 = math.exp %44 : vector<8x32x32xf32>
    %cst_14 = arith.constant dense<0.000000e+00> : vector<8x32xf32>
    %46 = vector.multi_reduction <add>, %45, %cst_14 [2] : vector<8x32x32xf32> to vector<8x32xf32>
    %47 = vector.shape_cast %46 : vector<8x32xf32> to vector<8x32x1xf32>
    %48 = tpu.reciprocal %47 {approx = true} : vector<8x32x1xf32> -> vector<8x32x1xf32>
    %49 = vector.broadcast %48 : vector<8x32x1xf32> to vector<8x32x32xf32>
    %50 = arith.mulf %45, %49 : vector<8x32x32xf32>
    %51 = arith.truncf %50 : vector<8x32x32xf32> to vector<8x32x32xbf16>
    "tpu.trace_start"() <{level = 10 : i32, message = "bts,bsd->btd"}> : () -> ()
    %cst_15 = arith.constant dense<0.000000e+00> : vector<8x32x16xf32>
    %52 = tpu.matmul %51, %35, %cst_15 {dimension_numbers = #tpu.dot_dimension_numbers<[2], [1], [1], [2], [0, 0, 0, 1, 1, 2], [0], [0]>} : vector<8x32x32xbf16>, vector<8x32x16xbf16>, vector<8x32x16xf32> -> vector<8x32x16xf32>
    "tpu.trace_stop"() : () -> ()
    %53 = vector.shape_cast %52 : vector<8x32x16xf32> to vector<256x16xf32>
    %54 = arith.truncf %53 : vector<256x16xf32> to vector<256x16xbf16>
    %c0_16 = arith.constant 0 : index
    %c16 = arith.constant 16 : index
    %55 = vector.load %arg6[%c0_16, %c16] : memref<256x64xbf16, #tpu.memory_space<vmem>>, vector<256x16xbf16>
    tpu.vector_store %arg6[%c0_16, %c16], %54 {strides = array<i32>} : memref<256x64xbf16, #tpu.memory_space<vmem>>, vector<256x16xbf16>,
    %56 = vector.extract_strided_slice %5 {offsets = [0, 0, 32], sizes = [8, 32, 16], strides = [1, 1, 1]} : vector<8x32x192xbf16> to vector<8x32x16xbf16>
    %57 = vector.extract_strided_slice %5 {offsets = [0, 0, 96], sizes = [8, 32, 16], strides = [1, 1, 1]} : vector<8x32x192xbf16> to vector<8x32x16xbf16>
    %58 = vector.extract_strided_slice %5 {offsets = [0, 0, 160], sizes = [8, 32, 16], strides = [1, 1, 1]} : vector<8x32x192xbf16> to vector<8x32x16xbf16>
    "tpu.trace_start"() <{level = 10 : i32, message = "btd,bsd->bts"}> : () -> ()
    %cst_17 = arith.constant dense<0.000000e+00> : vector<8x32x32xf32>
    %59 = tpu.matmul %56, %57, %cst_17 {dimension_numbers = #tpu.dot_dimension_numbers<[2], [2], [1], [1], [0, 0, 0, 1, 1, 1], [0], [0]>} : vector<8x32x16xbf16>, vector<8x32x16xbf16>, vector<8x32x32xf32> -> vector<8x32x32xf32>
    %cst_18 = arith.constant -1.000000e+30 : f32
    "tpu.trace_stop"() : () -> ()
    %60 = vector.shape_cast %9 : vector<1x32x32xi1> to vector<1x32x32xi1>
    %61 = vector.broadcast %60 : vector<1x32x32xi1> to vector<8x32x32xi1>
    %62 = vector.broadcast %cst_18 : f32 to vector<8x32x32xf32>
    %63 = arith.select %61, %59, %62 : vector<8x32x32xi1>, vector<8x32x32xf32>
    %cst_19 = arith.constant dense<0xFF800000> : vector<8x32xf32>
    %64 = vector.multi_reduction <maximumf>, %63, %cst_19 [2] : vector<8x32x32xf32> to vector<8x32xf32>
    %65 = vector.shape_cast %64 : vector<8x32xf32> to vector<8x32x1xf32>
    %66 = vector.broadcast %65 : vector<8x32x1xf32> to vector<8x32x32xf32>
    %67 = arith.subf %63, %66 : vector<8x32x32xf32>
    %68 = math.exp %67 : vector<8x32x32xf32>
    %cst_20 = arith.constant dense<0.000000e+00> : vector<8x32xf32>
    %69 = vector.multi_reduction <add>, %68, %cst_20 [2] : vector<8x32x32xf32> to vector<8x32xf32>
    %70 = vector.shape_cast %69 : vector<8x32xf32> to vector<8x32x1xf32>
    %71 = tpu.reciprocal %70 {approx = true} : vector<8x32x1xf32> -> vector<8x32x1xf32>
    %72 = vector.broadcast %71 : vector<8x32x1xf32> to vector<8x32x32xf32>
    %73 = arith.mulf %68, %72 : vector<8x32x32xf32>
    %74 = arith.truncf %73 : vector<8x32x32xf32> to vector<8x32x32xbf16>
    "tpu.trace_start"() <{level = 10 : i32, message = "bts,bsd->btd"}> : () -> ()
    %cst_21 = arith.constant dense<0.000000e+00> : vector<8x32x16xf32>
    %75 = tpu.matmul %74, %58, %cst_21 {dimension_numbers = #tpu.dot_dimension_numbers<[2], [1], [1], [2], [0, 0, 0, 1, 1, 2], [0], [0]>} : vector<8x32x32xbf16>, vector<8x32x16xbf16>, vector<8x32x16xf32> -> vector<8x32x16xf32>
    "tpu.trace_stop"() : () -> ()
    %76 = vector.shape_cast %75 : vector<8x32x16xf32> to vector<256x16xf32>
    %77 = arith.truncf %76 : vector<256x16xf32> to vector<256x16xbf16>
    %c0_22 = arith.constant 0 : index
    %c32 = arith.constant 32 : index
    %78 = vector.load %arg6[%c0_22, %c32] : memref<256x64xbf16, #tpu.memory_space<vmem>>, vector<256x16xbf16>
    tpu.vector_store %arg6[%c0_22, %c32], %77 {strides = array<i32>} : memref<256x64xbf16, #tpu.memory_space<vmem>>, vector<256x16xbf16>,
    %79 = vector.extract_strided_slice %5 {offsets = [0, 0, 48], sizes = [8, 32, 16], strides = [1, 1, 1]} : vector<8x32x192xbf16> to vector<8x32x16xbf16>
    %80 = vector.extract_strided_slice %5 {offsets = [0, 0, 112], sizes = [8, 32, 16], strides = [1, 1, 1]} : vector<8x32x192xbf16> to vector<8x32x16xbf16>
    %81 = vector.extract_strided_slice %5 {offsets = [0, 0, 176], sizes = [8, 32, 16], strides = [1, 1, 1]} : vector<8x32x192xbf16> to vector<8x32x16xbf16>
    "tpu.trace_start"() <{level = 10 : i32, message = "btd,bsd->bts"}> : () -> ()
    %cst_23 = arith.constant dense<0.000000e+00> : vector<8x32x32xf32>
    %82 = tpu.matmul %79, %80, %cst_23 {dimension_numbers = #tpu.dot_dimension_numbers<[2], [2], [1], [1], [0, 0, 0, 1, 1, 1], [0], [0]>} : vector<8x32x16xbf16>, vector<8x32x16xbf16>, vector<8x32x32xf32> -> vector<8x32x32xf32>
    %cst_24 = arith.constant -1.000000e+30 : f32
    "tpu.trace_stop"() : () -> ()
    %83 = vector.shape_cast %9 : vector<1x32x32xi1> to vector<1x32x32xi1>
    %84 = vector.broadcast %83 : vector<1x32x32xi1> to vector<8x32x32xi1>
    %85 = vector.broadcast %cst_24 : f32 to vector<8x32x32xf32>
    %86 = arith.select %84, %82, %85 : vector<8x32x32xi1>, vector<8x32x32xf32>
    %cst_25 = arith.constant dense<0xFF800000> : vector<8x32xf32>
    %87 = vector.multi_reduction <maximumf>, %86, %cst_25 [2] : vector<8x32x32xf32> to vector<8x32xf32>
    %88 = vector.shape_cast %87 : vector<8x32xf32> to vector<8x32x1xf32>
    %89 = vector.broadcast %88 : vector<8x32x1xf32> to vector<8x32x32xf32>
    %90 = arith.subf %86, %89 : vector<8x32x32xf32>
    %91 = math.exp %90 : vector<8x32x32xf32>
    %cst_26 = arith.constant dense<0.000000e+00> : vector<8x32xf32>
    %92 = vector.multi_reduction <add>, %91, %cst_26 [2] : vector<8x32x32xf32> to vector<8x32xf32>
    %93 = vector.shape_cast %92 : vector<8x32xf32> to vector<8x32x1xf32>
    %94 = tpu.reciprocal %93 {approx = true} : vector<8x32x1xf32> -> vector<8x32x1xf32>
    %95 = vector.broadcast %94 : vector<8x32x1xf32> to vector<8x32x32xf32>
    %96 = arith.mulf %91, %95 : vector<8x32x32xf32>
    %97 = arith.truncf %96 : vector<8x32x32xf32> to vector<8x32x32xbf16>
    "tpu.trace_start"() <{level = 10 : i32, message = "bts,bsd->btd"}> : () -> ()
    %cst_27 = arith.constant dense<0.000000e+00> : vector<8x32x16xf32>
    %98 = tpu.matmul %97, %81, %cst_27 {dimension_numbers = #tpu.dot_dimension_numbers<[2], [1], [1], [2], [0, 0, 0, 1, 1, 2], [0], [0]>} : vector<8x32x32xbf16>, vector<8x32x16xbf16>, vector<8x32x16xf32> -> vector<8x32x16xf32>
    "tpu.trace_stop"() : () -> ()
    %99 = vector.shape_cast %98 : vector<8x32x16xf32> to vector<256x16xf32>
    %100 = arith.truncf %99 : vector<256x16xf32> to vector<256x16xbf16>
    %c0_28 = arith.constant 0 : index
    %c48 = arith.constant 48 : index
    %101 = vector.load %arg6[%c0_28, %c48] : memref<256x64xbf16, #tpu.memory_space<vmem>>, vector<256x16xbf16>
    tpu.vector_store %arg6[%c0_28, %c48], %100 {strides = array<i32>} : memref<256x64xbf16, #tpu.memory_space<vmem>>, vector<256x16xbf16>,
    %c0_29 = arith.constant 0 : index
    %c0_30 = arith.constant 0 : index
    %102 = vector.load %arg6[%c0_29, %c0_30] : memref<256x64xbf16, #tpu.memory_space<vmem>>, vector<256x64xbf16>
    %c0_31 = arith.constant 0 : index
    %c0_32 = arith.constant 0 : index
    %103 = vector.load %arg3[%c0_31, %c0_32] : memref<64x64xbf16, #tpu.memory_space<vmem>>, vector<64x64xbf16>
    %cst_33 = arith.constant dense<0.000000e+00> : vector<256x64xf32>
    %104 = tpu.matmul %102, %103, %cst_33 {dimension_numbers = #tpu.dot_dimension_numbers<[1], [0], [0], [1], [0, 0, 1, 1], [], []>} : vector<256x64xbf16>, vector<64x64xbf16>, vector<256x64xf32> -> vector<256x64xf32>
    %c0_34 = arith.constant 0 : index
    %c0_35 = arith.constant 0 : index
    %105 = vector.load %arg4[%c0_34, %c0_35] : memref<1x64xf32, #tpu.memory_space<vmem>>, vector<1x64xf32>
    %106 = vector.broadcast %105 : vector<1x64xf32> to vector<256x64xf32>
    %107 = arith.addf %104, %106 : vector<256x64xf32>
    %108 = vector.shape_cast %107 : vector<256x64xf32> to vector<8x32x64xf32>
    %c0_36 = arith.constant 0 : index
    %c0_37 = arith.constant 0 : index
    %c0_38 = arith.constant 0 : index
    %109 = vector.load %arg5[%c0_36, %c0_37, %c0_38] : memref<8x32x64xf32, #tpu.memory_space<vmem>>, vector<8x32x64xf32>
    tpu.vector_store %arg5[%c0_36, %c0_37, %c0_38], %108 {strides = array<i32>} : memref<8x32x64xf32, #tpu.memory_space<vmem>>, vector<8x32x64xf32>,
    return
  }
  func.func @transform_0(%arg0: i32) -> (i32, i32, i32) {
    %c0_i32 = arith.constant 0 : i32
    %c0_i32_0 = arith.constant 0 : i32
    %c0_i32_1 = arith.constant 0 : i32
    return %arg0, %c0_i32, %c0_i32_0 : i32, i32, i32
  }
  func.func @transform_1(%arg0: i32) -> (i32, i32) {
    %c0_i32 = arith.constant 0 : i32
    %c0_i32_0 = arith.constant 0 : i32
    %c0_i32_1 = arith.constant 0 : i32
    return %c0_i32, %c0_i32_0 : i32, i32
  }
  func.func @transform_2(%arg0: i32) -> (i32, i32) {
    %c0_i32 = arith.constant 0 : i32
    %c0_i32_0 = arith.constant 0 : i32
    %c0_i32_1 = arith.constant 0 : i32
    return %c0_i32, %c0_i32_0 : i32, i32
  }
  func.func @transform_3(%arg0: i32) -> (i32, i32) {
    %c0_i32 = arith.constant 0 : i32
    %c0_i32_0 = arith.constant 0 : i32
    %c0_i32_1 = arith.constant 0 : i32
    return %c0_i32, %c0_i32_0 : i32, i32
  }
  func.func @transform_4(%arg0: i32) -> (i32, i32, i32) {
    %c0_i32 = arith.constant 0 : i32
    %c0_i32_0 = arith.constant 0 : i32
    %c0_i32_1 = arith.constant 0 : i32
    return %arg0, %c0_i32, %c0_i32_0 : i32, i32, i32
  }
}

</mosaic_0001>

<llo_original>
// kernel: tpu_custom_call.1
$region0: #{tpu_custom_call.1}
  #allocation0 [shape = 'u32[]', space=smem, size = 0x4, offset = 0x4, fixed_abs, tag = 'smem constant byte address 0x4 - core index']
  #allocation1 [shape = 'u32[72,128]{1,0:T(1,128)}', space=vmem, size = 0x9000, scoped, tag = 'internal scratch']
  #allocation2 [shape = 'bf16[256,64]{1,0:T(8,128)(2,1)}', space=vmem, size = 0x10000, scoped, tag = 'scratch operand']
  %s0 = inlined_call_operand.hbm [shape: bf16[8,32,64], index: 0, kind: input, shape index: {}]
  %s1 = inlined_call_operand.hbm [shape: bf16[64,192], index: 1, kind: input, shape index: {}]
  %s2 = inlined_call_operand.hbm [shape: bf16[64,64], index: 2, kind: input, shape index: {}]
  %s3 = inlined_call_operand.vmem [shape: f32[1,64], index: 3, kind: input, shape index: {}]
  %s4 = inlined_call_operand.hbm [shape: f32[8,32,64], index: 4, kind: output, shape index: {}]
  %s5 = sld [smem:[#allocation0]]
  $region38: #{tpu_custom_call.1} parent=0
    _
  %s7 = ssub.s32 1, %s5
  %s8 = scalar_select 0, %s7, %s5
  $region1: #{tpu_custom_call.1} parent=0
    #allocation3 [shape = 'u8[65536]{0}', space=vmem, size = 0x10000, scoped, tag = 'input window, operand 0, single buffered']
    #allocation4 [shape = 's32[1]{0}', space=sflag, size = 0x4, scoped, tag = 'scoped memory for tpu_custom_call.1']
    #allocation5 [shape = 's32[1]{0}', space=sflag, size = 0x4, scoped, tag = 'scoped memory for tpu_custom_call.1']
    #allocation6 [shape = 'u8[32768]{0}', space=vmem, size = 0x8000, scoped, tag = 'input window, operand 1, single buffered']
    #allocation7 [shape = 's32[1]{0}', space=sflag, size = 0x4, scoped, tag = 'scoped memory for tpu_custom_call.1']
    #allocation8 [shape = 'u8[16384]{0}', space=vmem, size = 0x4000, scoped, tag = 'input window, operand 2, single buffered']
    #allocation9 [shape = 'u8[131072]{0}', space=vmem, size = 0x20000, scoped, tag = 'output window, operand 0, single buffered']
    %9 = vsyncpa [#allocation4], 0
    %10 = vsyncpa [#allocation7], 0
    %11 = vsyncpa [#allocation5], 0
    // Predicated region
    $region2: #{tpu_custom_call.1} parent=1 // pred_check
      _
    $region3: #{tpu_custom_call.1} parent=1 // pred_check_branch
      %13 = sbr.rel (0) target = $region5
    $region4: #{tpu_custom_call.1} parent=1 // pred_region
      %15 = vsyncadd [#allocation4], 0
      %s16 = sshll.u32 %s0, 4
      %s17 = int_to_ptr.hbm [resolvable:$true] %s16
      %s18 = sshll.u32 [#allocation3], 4
      %s19 = int_to_ptr.vmem [resolvable:$true] %s18
      %24 = dma.hbm_to_vmem [thread:$0]  %s17, 2048, %s19, [#allocation4], 64, 64, 4
    $region5: #{tpu_custom_call.1} parent=1 // pred_fallthru
      _
    // Predicated region
    $region6: #{tpu_custom_call.1} parent=1 // pred_check
      _
    $region7: #{tpu_custom_call.1} parent=1 // pred_check_branch
      %26 = sbr.rel (0) target = $region9
    $region8: #{tpu_custom_call.1} parent=1 // pred_region
      %28 = vsyncadd [#allocation7], 0
      %s29 = sshll.u32 %s1, 4
      %s30 = int_to_ptr.hbm [resolvable:$true] %s29
      %s31 = sshll.u32 [#allocation6], 4
      %s32 = int_to_ptr.vmem [resolvable:$true] %s31
      %37 = dma.hbm_to_vmem [thread:$0]  %s30, 1024, %s32, [#allocation7], 128, 128, 8
    $region9: #{tpu_custom_call.1} parent=1 // pred_fallthru
      _
    // Predicated region
    $region10: #{tpu_custom_call.1} parent=1 // pred_check
      _
    $region11: #{tpu_custom_call.1} parent=1 // pred_check_branch
      %39 = sbr.rel (0) target = $region13
    $region12: #{tpu_custom_call.1} parent=1 // pred_region
      %41 = vsyncadd [#allocation7], 0
      %s42 = sshll.u32 %s2, 4
      %s43 = int_to_ptr.hbm [resolvable:$true] %s42
      %s44 = sshll.u32 [#allocation8], 4
      %s45 = int_to_ptr.vmem [resolvable:$true] %s44
      %50 = dma.hbm_to_vmem [thread:$0]  %s43, 512, %s45, [#allocation7], 64, 64, 4
    $region13: #{tpu_custom_call.1} parent=1 // pred_fallthru
      _
    // Predicated region
    $region14: #{tpu_custom_call.1} parent=1 // pred_check
      _
    $region15: #{tpu_custom_call.1} parent=1 // pred_check_branch
      %52 = sbr.rel (0) target = $region17
    $region16: #{tpu_custom_call.1} parent=1 // pred_region
      _
    $region17: #{tpu_custom_call.1} parent=1 // pred_fallthru
      _
    // Predicated region
    $region18: #{tpu_custom_call.1} parent=1 // pred_check
      _
    $region19: #{tpu_custom_call.1} parent=1 // pred_check_branch
      %54 = sbr.rel (0) target = $region21
    $region20: #{tpu_custom_call.1} parent=1 // pred_region
      %56 = dma.done [#allocation4], 2048
    $region21: #{tpu_custom_call.1} parent=1 // pred_fallthru
      _
    // Predicated region
    $region22: #{tpu_custom_call.1} parent=1 // pred_check
      _
    $region23: #{tpu_custom_call.1} parent=1 // pred_check_branch
      %58 = sbr.rel (0) target = $region25
    $region24: #{tpu_custom_call.1} parent=1 // pred_region
      %60 = dma.done [#allocation7], 1024
    $region25: #{tpu_custom_call.1} parent=1 // pred_fallthru
      _
    // Predicated region
    $region26: #{tpu_custom_call.1} parent=1 // pred_check
      _
    $region27: #{tpu_custom_call.1} parent=1 // pred_check_branch
      %62 = sbr.rel (0) target = $region29
    $region28: #{tpu_custom_call.1} parent=1 // pred_region
      %64 = dma.done [#allocation7], 512
    $region29: #{tpu_custom_call.1} parent=1 // pred_fallthru
      _
    %v66 = vld [vmem:[#allocation3] sm:$0xf]
    %v67 = vld [vmem:[#allocation3 + $0x4] sm:$0xf]
    %v68 = vld [vmem:[#allocation3 + $0x8] sm:$0xf]
    %v69 = vld [vmem:[#allocation3 + $0xc] sm:$0xf]
    %v70 = vld [vmem:[#allocation3 + $0x10] sm:$0xf]
    %v71 = vld [vmem:[#allocation3 + $0x14] sm:$0xf]
    %v72 = vld [vmem:[#allocation3 + $0x18] sm:$0xf]
    %v73 = vld [vmem:[#allocation3 + $0x1c] sm:$0xf]
    %v74 = vld [vmem:[#allocation3 + $0x20] sm:$0xf]
    %v75 = vld [vmem:[#allocation3 + $0x24] sm:$0xf]
    %v76 = vld [vmem:[#allocation3 + $0x28] sm:$0xf]
    %v77 = vld [vmem:[#allocation3 + $0x2c] sm:$0xf]
    %v78 = vld [vmem:[#allocation3 + $0x30] sm:$0xf]
    %v79 = vld [vmem:[#allocation3 + $0x34] sm:$0xf]
    %v80 = vld [vmem:[#allocation3 + $0x38] sm:$0xf]
    %v81 = vld [vmem:[#allocation3 + $0x3c] sm:$0xf]
    %v82 = vld [vmem:[#allocation3 + $0x40] sm:$0xf]
    %v83 = vld [vmem:[#allocation3 + $0x44] sm:$0xf]
    %v84 = vld [vmem:[#allocation3 + $0x48] sm:$0xf]
    %v85 = vld [vmem:[#allocation3 + $0x4c] sm:$0xf]
    %v86 = vld [vmem:[#allocation3 + $0x50] sm:$0xf]
    %v87 = vld [vmem:[#allocation3 + $0x54] sm:$0xf]
    %v88 = vld [vmem:[#allocation3 + $0x58] sm:$0xf]
    %v89 = vld [vmem:[#allocation3 + $0x5c] sm:$0xf]
    %v90 = vld [vmem:[#allocation3 + $0x60] sm:$0xf]
    %v91 = vld [vmem:[#allocation3 + $0x64] sm:$0xf]
    %v92 = vld [vmem:[#allocation3 + $0x68] sm:$0xf]
    %v93 = vld [vmem:[#allocation3 + $0x6c] sm:$0xf]
    %v94 = vld [vmem:[#allocation3 + $0x70] sm:$0xf]
    %v95 = vld [vmem:[#allocation3 + $0x74] sm:$0xf]
    %v96 = vld [vmem:[#allocation3 + $0x78] sm:$0xf]
    %v97 = vld [vmem:[#allocation3 + $0x7c] sm:$0xf]
    %v98 = vld [vmem:[#allocation6] sm:$0xff]
    %v99 = vld [vmem:[#allocation6 + $0x8] sm:$0xff]
    %v100 = vld [vmem:[#allocation6 + $0x10] sm:$0xff]
    %v101 = vld [vmem:[#allocation6 + $0x18] sm:$0xff]
    %v102 = vld [vmem:[#allocation6 + $0x20] sm:$0xff]
    %v103 = vld [vmem:[#allocation6 + $0x28] sm:$0xff]
    %v104 = vld [vmem:[#allocation6 + $0x30] sm:$0xff]
    %v105 = vld [vmem:[#allocation6 + $0x38] sm:$0xff]
    %v138 = vunpack.c.l.b16 %v66
    %v139 = vunpack.c.l.b16 %v67
    %v140 = vunpack.c.l.b16 %v68
    %v141 = vunpack.c.l.b16 %v69
    %v142 = vunpack.c.l.b16 %v70
    %v143 = vunpack.c.l.b16 %v71
    %v144 = vunpack.c.l.b16 %v72
    %v145 = vunpack.c.l.b16 %v73
    %v146 = vunpack.c.l.b16 %v74
    %v147 = vunpack.c.l.b16 %v75
    %v148 = vunpack.c.l.b16 %v76
    %v149 = vunpack.c.l.b16 %v77
    %v150 = vunpack.c.l.b16 %v78
    %v151 = vunpack.c.l.b16 %v79
    %v152 = vunpack.c.l.b16 %v80
    %v153 = vunpack.c.l.b16 %v81
    %v154 = vunpack.c.l.b16 %v82
    %v155 = vunpack.c.l.b16 %v83
    %v156 = vunpack.c.l.b16 %v84
    %v157 = vunpack.c.l.b16 %v85
    %v158 = vunpack.c.l.b16 %v86
    %v159 = vunpack.c.l.b16 %v87
    %v160 = vunpack.c.l.b16 %v88
    %v161 = vunpack.c.l.b16 %v89
    %v162 = vunpack.c.l.b16 %v90
    %v163 = vunpack.c.l.b16 %v91
    %v164 = vunpack.c.l.b16 %v92
    %v165 = vunpack.c.l.b16 %v93
    %v166 = vunpack.c.l.b16 %v94
    %v167 = vunpack.c.l.b16 %v95
    %v168 = vunpack.c.l.b16 %v96
    %v169 = vunpack.c.l.b16 %v97
    %v170 = vpack.c.b16 %v139, %v138
    %v171 = vpack.c.b16 %v141, %v140
    %v172 = vpack.c.b16 %v143, %v142
    %v173 = vpack.c.b16 %v145, %v144
    %v174 = vpack.c.b16 %v147, %v146
    %v175 = vpack.c.b16 %v149, %v148
    %v176 = vpack.c.b16 %v151, %v150
    %v177 = vpack.c.b16 %v153, %v152
    %v178 = vpack.c.b16 %v155, %v154
    %v179 = vpack.c.b16 %v157, %v156
    %v180 = vpack.c.b16 %v159, %v158
    %v181 = vpack.c.b16 %v161, %v160
    %v182 = vpack.c.b16 %v163, %v162
    %v183 = vpack.c.b16 %v165, %v164
    %v184 = vpack.c.b16 %v167, %v166
    %v185 = vpack.c.b16 %v169, %v168
    %v194 = vunpack.c.l.b16 %v98
    %v195 = vunpack.c.h.b16 %v98
    %v196 = vunpack.c.l.b16 %v99
    %v197 = vunpack.c.h.b16 %v99
    %v198 = vunpack.c.l.b16 %v100
    %v199 = vunpack.c.h.b16 %v100
    %v200 = vunpack.c.l.b16 %v101
    %v201 = vunpack.c.h.b16 %v101
    %v202 = vunpack.c.l.b16 %v102
    %v203 = vunpack.c.h.b16 %v102
    %v204 = vunpack.c.l.b16 %v103
    %v205 = vunpack.c.h.b16 %v103
    %v206 = vunpack.c.l.b16 %v104
    %v207 = vunpack.c.h.b16 %v104
    %v208 = vunpack.c.l.b16 %v105
    %v209 = vunpack.c.h.b16 %v105
    %v210 = vpack.c.b16 %v196, %v194
    %v211 = vpack.c.b16 %v197, %v195
    %v212 = vpack.c.b16 %v200, %v198
    %v213 = vpack.c.b16 %v201, %v199
    %v214 = vpack.c.b16 %v204, %v202
    %v215 = vpack.c.b16 %v205, %v203
    %v216 = vpack.c.b16 %v208, %v206
    %v217 = vpack.c.b16 %v209, %v207
    %vm226 = vcmask 523264
    %v228 = vsel %vm226, %v170, 0
    %v231 = vsel %vm226, %v171, 0
    %v234 = vsel %vm226, %v172, 0
    %v237 = vsel %vm226, %v173, 0
    %v240 = vsel %vm226, %v174, 0
    %v243 = vsel %vm226, %v175, 0
    %v246 = vsel %vm226, %v176, 0
    %v249 = vsel %vm226, %v177, 0
    %v252 = vsel %vm226, %v178, 0
    %v255 = vsel %vm226, %v179, 0
    %v258 = vsel %vm226, %v180, 0
    %v261 = vsel %vm226, %v181, 0
    %v264 = vsel %vm226, %v182, 0
    %v267 = vsel %vm226, %v183, 0
    %v270 = vsel %vm226, %v184, 0
    %v273 = vsel %vm226, %v185, 0
    %275 = vmatpush.bf16.msra.mxu0 0
    %276 = vmatpush.bf16.msra.mxu0 0
    %277 = vmatpush.bf16.msra.mxu0 0
    %278 = vmatpush.bf16.msra.mxu0 0
    %279 = vmatpush.bf16.msra.mxu0 %v216
    %280 = vmatpush.bf16.msra.mxu0 %v214
    %281 = vmatpush.bf16.msra.mxu0 %v212
    %282 = vmatpush.bf16.msra.mxu0 %v210
    %283 = vmatmul.bf16.gmra.mxu0 %v228
    %v284 = vpop.f32.mrf.mxu0
    %v285 = vadd.f32 0.0, %v284
    %v286 = vpop.f32.mrf.mxu0
    %v287 = vadd.f32 0.0, %v286
    %288 = vmatmul.bf16.gmra.mxu0 %v231
    %v289 = vpop.f32.mrf.mxu0
    %v290 = vadd.f32 0.0, %v289
    %v291 = vpop.f32.mrf.mxu0
    %v292 = vadd.f32 0.0, %v291
    %293 = vmatmul.bf16.gmra.mxu0 %v234
    %v294 = vpop.f32.mrf.mxu0
    %v295 = vadd.f32 0.0, %v294
    %v296 = vpop.f32.mrf.mxu0
    %v297 = vadd.f32 0.0, %v296
    %298 = vmatmul.bf16.gmra.mxu0 %v237
    %v299 = vpop.f32.mrf.mxu0
    %v300 = vadd.f32 0.0, %v299
    %v301 = vpop.f32.mrf.mxu0
    %v302 = vadd.f32 0.0, %v301
    %303 = vmatmul.bf16.gmra.mxu0 %v240
    %v304 = vpop.f32.mrf.mxu0
    %v305 = vadd.f32 0.0, %v304
    %v306 = vpop.f32.mrf.mxu0
    %v307 = vadd.f32 0.0, %v306
    %308 = vmatmul.bf16.gmra.mxu0 %v243
    %v309 = vpop.f32.mrf.mxu0
    %v310 = vadd.f32 0.0, %v309
    %v311 = vpop.f32.mrf.mxu0
    %v312 = vadd.f32 0.0, %v311
    %313 = vmatmul.bf16.gmra.mxu0 %v246
    %v314 = vpop.f32.mrf.mxu0
    %v315 = vadd.f32 0.0, %v314
    %v316 = vpop.f32.mrf.mxu0
    %v317 = vadd.f32 0.0, %v316
    %318 = vmatmul.bf16.gmra.mxu0 %v249
    %v319 = vpop.f32.mrf.mxu0
    %v320 = vadd.f32 0.0, %v319
    %v321 = vpop.f32.mrf.mxu0
    %v322 = vadd.f32 0.0, %v321
    %323 = vmatmul.bf16.gmra.mxu0 %v252
    %v324 = vpop.f32.mrf.mxu0
    %v325 = vadd.f32 0.0, %v324
    %v326 = vpop.f32.mrf.mxu0
    %v327 = vadd.f32 0.0, %v326
    %328 = vmatmul.bf16.gmra.mxu0 %v255
    %v329 = vpop.f32.mrf.mxu0
    %v330 = vadd.f32 0.0, %v329
    %v331 = vpop.f32.mrf.mxu0
    %v332 = vadd.f32 0.0, %v331
    %333 = vmatmul.bf16.gmra.mxu0 %v258
    %v334 = vpop.f32.mrf.mxu0
    %v335 = vadd.f32 0.0, %v334
    %v336 = vpop.f32.mrf.mxu0
    %v337 = vadd.f32 0.0, %v336
    %338 = vmatmul.bf16.gmra.mxu0 %v261
    %v339 = vpop.f32.mrf.mxu0
    %v340 = vadd.f32 0.0, %v339
    %v341 = vpop.f32.mrf.mxu0
    %v342 = vadd.f32 0.0, %v341
    %343 = vmatmul.bf16.gmra.mxu0 %v264
    %v344 = vpop.f32.mrf.mxu0
    %v345 = vadd.f32 0.0, %v344
    %v346 = vpop.f32.mrf.mxu0
    %v347 = vadd.f32 0.0, %v346
    %348 = vmatmul.bf16.gmra.mxu0 %v267
    %v349 = vpop.f32.mrf.mxu0
    %v350 = vadd.f32 0.0, %v349
    %v351 = vpop.f32.mrf.mxu0
    %v352 = vadd.f32 0.0, %v351
    %353 = vmatmul.bf16.gmra.mxu0 %v270
    %v354 = vpop.f32.mrf.mxu0
    %v355 = vadd.f32 0.0, %v354
    %v356 = vpop.f32.mrf.mxu0
    %v357 = vadd.f32 0.0, %v356
    %358 = vmatmul.bf16.gmra.mxu0 %v273
    %v359 = vpop.f32.mrf.mxu0
    %v360 = vadd.f32 0.0, %v359
    %v361 = vpop.f32.mrf.mxu0
    %v362 = vadd.f32 0.0, %v361
    %363 = vdwg.mxu0
    %364 = vmatpush.bf16.msra.mxu0 0
    %365 = vmatpush.bf16.msra.mxu0 0
    %366 = vmatpush.bf16.msra.mxu0 0
    %367 = vmatpush.bf16.msra.mxu0 0
    %368 = vmatpush.bf16.msra.mxu0 %v217
    %369 = vmatpush.bf16.msra.mxu0 %v215
    %370 = vmatpush.bf16.msra.mxu0 %v213
    %371 = vmatpush.bf16.msra.mxu0 %v211
    %372 = vmatmul.bf16.gmra.mxu0 %v228
    %v373 = vpop.f32.mrf.mxu0
    %v374 = vadd.f32 0.0, %v373
    %v375 = vpop.f32.mrf.mxu0
    %v376 = vadd.f32 0.0, %v375
    %377 = vmatmul.bf16.gmra.mxu0 %v231
    %v378 = vpop.f32.mrf.mxu0
    %v379 = vadd.f32 0.0, %v378
    %v380 = vpop.f32.mrf.mxu0
    %v381 = vadd.f32 0.0, %v380
    %382 = vmatmul.bf16.gmra.mxu0 %v234
    %v383 = vpop.f32.mrf.mxu0
    %v384 = vadd.f32 0.0, %v383
    %v385 = vpop.f32.mrf.mxu0
    %v386 = vadd.f32 0.0, %v385
    %387 = vmatmul.bf16.gmra.mxu0 %v237
    %v388 = vpop.f32.mrf.mxu0
    %v389 = vadd.f32 0.0, %v388
    %v390 = vpop.f32.mrf.mxu0
    %v391 = vadd.f32 0.0, %v390
    %392 = vmatmul.bf16.gmra.mxu0 %v240
    %v393 = vpop.f32.mrf.mxu0
    %v394 = vadd.f32 0.0, %v393
    %v395 = vpop.f32.mrf.mxu0
    %v396 = vadd.f32 0.0, %v395
    %397 = vmatmul.bf16.gmra.mxu0 %v243
    %v398 = vpop.f32.mrf.mxu0
    %v399 = vadd.f32 0.0, %v398
    %v400 = vpop.f32.mrf.mxu0
    %v401 = vadd.f32 0.0, %v400
    %402 = vmatmul.bf16.gmra.mxu0 %v246
    %v403 = vpop.f32.mrf.mxu0
    %v404 = vadd.f32 0.0, %v403
    %v405 = vpop.f32.mrf.mxu0
    %v406 = vadd.f32 0.0, %v405
    %407 = vmatmul.bf16.gmra.mxu0 %v249
    %v408 = vpop.f32.mrf.mxu0
    %v409 = vadd.f32 0.0, %v408
    %v410 = vpop.f32.mrf.mxu0
    %v411 = vadd.f32 0.0, %v410
    %412 = vmatmul.bf16.gmra.mxu0 %v252
    %v413 = vpop.f32.mrf.mxu0
    %v414 = vadd.f32 0.0, %v413
    %v415 = vpop.f32.mrf.mxu0
    %v416 = vadd.f32 0.0, %v415
    %417 = vmatmul.bf16.gmra.mxu0 %v255
    %v418 = vpop.f32.mrf.mxu0
    %v419 = vadd.f32 0.0, %v418
    %v420 = vpop.f32.mrf.mxu0
    %v421 = vadd.f32 0.0, %v420
    %422 = vmatmul.bf16.gmra.mxu0 %v258
    %v423 = vpop.f32.mrf.mxu0
    %v424 = vadd.f32 0.0, %v423
    %v425 = vpop.f32.mrf.mxu0
    %v426 = vadd.f32 0.0, %v425
    %427 = vmatmul.bf16.gmra.mxu0 %v261
    %v428 = vpop.f32.mrf.mxu0
    %v429 = vadd.f32 0.0, %v428
    %v430 = vpop.f32.mrf.mxu0
    %v431 = vadd.f32 0.0, %v430
    %432 = vmatmul.bf16.gmra.mxu0 %v264
    %v433 = vpop.f32.mrf.mxu0
    %v434 = vadd.f32 0.0, %v433
    %v435 = vpop.f32.mrf.mxu0
    %v436 = vadd.f32 0.0, %v435
    %437 = vmatmul.bf16.gmra.mxu0 %v267
    %v438 = vpop.f32.mrf.mxu0
    %v439 = vadd.f32 0.0, %v438
    %v440 = vpop.f32.mrf.mxu0
    %v441 = vadd.f32 0.0, %v440
    %442 = vmatmul.bf16.gmra.mxu0 %v270
    %v443 = vpop.f32.mrf.mxu0
    %v444 = vadd.f32 0.0, %v443
    %v445 = vpop.f32.mrf.mxu0
    %v446 = vadd.f32 0.0, %v445
    %447 = vmatmul.bf16.gmra.mxu0 %v273
    %v448 = vpop.f32.mrf.mxu0
    %v449 = vadd.f32 0.0, %v448
    %v450 = vpop.f32.mrf.mxu0
    %v451 = vadd.f32 0.0, %v450
    %452 = vdwg.mxu0
    %v453 = vpack.c.bf16 %v374, %v285
    %v454 = vpack.c.bf16 %v376, %v287
    %v455 = vpack.c.bf16 %v379, %v290
    %v456 = vpack.c.bf16 %v381, %v292
    %v457 = vpack.c.bf16 %v384, %v295
    %v458 = vpack.c.bf16 %v386, %v297
    %v459 = vpack.c.bf16 %v389, %v300
    %v460 = vpack.c.bf16 %v391, %v302
    %v461 = vpack.c.bf16 %v394, %v305
    %v462 = vpack.c.bf16 %v396, %v307
    %v463 = vpack.c.bf16 %v399, %v310
    %v464 = vpack.c.bf16 %v401, %v312
    %v465 = vpack.c.bf16 %v404, %v315
    %v466 = vpack.c.bf16 %v406, %v317
    %v467 = vpack.c.bf16 %v409, %v320
    %v468 = vpack.c.bf16 %v411, %v322
    %v469 = vpack.c.bf16 %v414, %v325
    %v470 = vpack.c.bf16 %v416, %v327
    %v471 = vpack.c.bf16 %v419, %v330
    %v472 = vpack.c.bf16 %v421, %v332
    %v473 = vpack.c.bf16 %v424, %v335
    %v474 = vpack.c.bf16 %v426, %v337
    %v475 = vpack.c.bf16 %v429, %v340
    %v476 = vpack.c.bf16 %v431, %v342
    %v477 = vpack.c.bf16 %v434, %v345
    %v478 = vpack.c.bf16 %v436, %v347
    %v479 = vpack.c.bf16 %v439, %v350
    %v480 = vpack.c.bf16 %v441, %v352
    %v481 = vpack.c.bf16 %v444, %v355
    %v482 = vpack.c.bf16 %v446, %v357
    %v483 = vpack.c.bf16 %v449, %v360
    %v484 = vpack.c.bf16 %v451, %v362
    %v485 = vlaneseq
    %v486 = vshrl.u32 %v485, 7
    %v487 = vadd.s32 %v486, 8
    %v488 = vadd.s32 %v486, 16
    %v489 = vadd.s32 %v486, 24
    %v490 = vlaneseq
    %v491 = vand.u32 %v490, 127
    %vm492 = vcmp.ge.s32.totalorder %v486, %v491
    %vm493 = vcmp.ge.s32.totalorder %v487, %v491
    %vm494 = vcmp.ge.s32.totalorder %v488, %v491
    %vm495 = vcmp.ge.s32.totalorder %v489, %v491
    %v500 = vunpack.c.l.b16 %v453
    %v501 = vunpack.c.l.b16 %v454
    %v502 = vunpack.c.l.b16 %v455
    %v503 = vunpack.c.l.b16 %v456
    %v504 = vpack.c.b16 %v501, %v500
    %v505 = vpack.c.b16 %v503, %v502
    %506 = vrot.lane.b32.xlu0 %v504, 64
    %v507 = vpop.permute.xlu0 %506
    %508 = vrot.lane.b32.xlu0 %v505, 64
    %v509 = vpop.permute.xlu0 %508
    %vm510 = vcmask 130048
    %v512 = vsel %vm510, %v504, 0
    %v515 = vsel %vm510, %v505, 0
    %v518 = vsel %vm510, %v507, 0
    %v521 = vsel %vm510, %v509, 0
    %523 = vmatpush.bf16.xpose.msra.mxu0 0
    %524 = vmatpush.bf16.xpose.msra.mxu0 0
    %525 = vmatpush.bf16.xpose.msra.mxu0 0
    %526 = vmatpush.bf16.xpose.msra.mxu0 0
    %527 = vmatpush.bf16.xpose.msra.mxu0 0
    %528 = vmatpush.bf16.xpose.msra.mxu0 0
    %529 = vmatpush.bf16.xpose.msra.mxu0 %v521
    %530 = vmatpush.bf16.xpose.msra.mxu0 %v518
    %531 = vmatmul.bf16.gmra.mxu0 %v512
    %v532 = vpop.f32.mrf.mxu0
    %v533 = vadd.f32 0.0, %v532
    %v534 = vpop.f32.mrf.mxu0
    %v535 = vadd.f32 0.0, %v534
    %536 = vmatmul.bf16.gmra.mxu0 %v515
    %v537 = vpop.f32.mrf.mxu0
    %v538 = vadd.f32 0.0, %v537
    %v539 = vpop.f32.mrf.mxu0
    %v540 = vadd.f32 0.0, %v539
    %541 = vdwg.mxu0
    %v546 = vunpack.c.l.b16 %v457
    %v547 = vunpack.c.l.b16 %v458
    %v548 = vunpack.c.l.b16 %v459
    %v549 = vunpack.c.l.b16 %v460
    %v550 = vpack.c.b16 %v547, %v546
    %v551 = vpack.c.b16 %v549, %v548
    %552 = vrot.lane.b32.xlu0 %v550, 64
    %v553 = vpop.permute.xlu0 %552
    %554 = vrot.lane.b32.xlu0 %v551, 64
    %v555 = vpop.permute.xlu0 %554
    %v557 = vsel %vm510, %v550, 0
    %v560 = vsel %vm510, %v551, 0
    %v563 = vsel %vm510, %v553, 0
    %v566 = vsel %vm510, %v555, 0
    %568 = vmatpush.bf16.xpose.msra.mxu0 0
    %569 = vmatpush.bf16.xpose.msra.mxu0 0
    %570 = vmatpush.bf16.xpose.msra.mxu0 0
    %571 = vmatpush.bf16.xpose.msra.mxu0 0
    %572 = vmatpush.bf16.xpose.msra.mxu0 0
    %573 = vmatpush.bf16.xpose.msra.mxu0 0
    %574 = vmatpush.bf16.xpose.msra.mxu0 %v566
    %575 = vmatpush.bf16.xpose.msra.mxu0 %v563
    %576 = vmatmul.bf16.gmra.mxu0 %v557
    %v577 = vpop.f32.mrf.mxu0
    %v578 = vadd.f32 0.0, %v577
    %v579 = vpop.f32.mrf.mxu0
    %v580 = vadd.f32 0.0, %v579
    %581 = vmatmul.bf16.gmra.mxu0 %v560
    %v582 = vpop.f32.mrf.mxu0
    %v583 = vadd.f32 0.0, %v582
    %v584 = vpop.f32.mrf.mxu0
    %v585 = vadd.f32 0.0, %v584
    %586 = vdwg.mxu0
    %v591 = vunpack.c.l.b16 %v461
    %v592 = vunpack.c.l.b16 %v462
    %v593 = vunpack.c.l.b16 %v463
    %v594 = vunpack.c.l.b16 %v464
    %v595 = vpack.c.b16 %v592, %v591
    %v596 = vpack.c.b16 %v594, %v593
    %597 = vrot.lane.b32.xlu0 %v595, 64
    %v598 = vpop.permute.xlu0 %597
    %599 = vrot.lane.b32.xlu0 %v596, 64
    %v600 = vpop.permute.xlu0 %599
    %v602 = vsel %vm510, %v595, 0
    %v605 = vsel %vm510, %v596, 0
    %v608 = vsel %vm510, %v598, 0
    %v611 = vsel %vm510, %v600, 0
    %613 = vmatpush.bf16.xpose.msra.mxu0 0
    %614 = vmatpush.bf16.xpose.msra.mxu0 0
    %615 = vmatpush.bf16.xpose.msra.mxu0 0
    %616 = vmatpush.bf16.xpose.msra.mxu0 0
    %617 = vmatpush.bf16.xpose.msra.mxu0 0
    %618 = vmatpush.bf16.xpose.msra.mxu0 0
    %619 = vmatpush.bf16.xpose.msra.mxu0 %v611
    %620 = vmatpush.bf16.xpose.msra.mxu0 %v608
    %621 = vmatmul.bf16.gmra.mxu0 %v602
    %v622 = vpop.f32.mrf.mxu0
    %v623 = vadd.f32 0.0, %v622
    %v624 = vpop.f32.mrf.mxu0
    %v625 = vadd.f32 0.0, %v624
    %626 = vmatmul.bf16.gmra.mxu0 %v605
    %v627 = vpop.f32.mrf.mxu0
    %v628 = vadd.f32 0.0, %v627
    %v629 = vpop.f32.mrf.mxu0
    %v630 = vadd.f32 0.0, %v629
    %631 = vdwg.mxu0
    %v636 = vunpack.c.l.b16 %v465
    %v637 = vunpack.c.l.b16 %v466
    %v638 = vunpack.c.l.b16 %v467
    %v639 = vunpack.c.l.b16 %v468
    %v640 = vpack.c.b16 %v637, %v636
    %v641 = vpack.c.b16 %v639, %v638
    %642 = vrot.lane.b32.xlu0 %v640, 64
    %v643 = vpop.permute.xlu0 %642
    %644 = vrot.lane.b32.xlu0 %v641, 64
    %v645 = vpop.permute.xlu0 %644
    %v647 = vsel %vm510, %v640, 0
    %v650 = vsel %vm510, %v641, 0
    %v653 = vsel %vm510, %v643, 0
    %v656 = vsel %vm510, %v645, 0
    %658 = vmatpush.bf16.xpose.msra.mxu0 0
    %659 = vmatpush.bf16.xpose.msra.mxu0 0
    %660 = vmatpush.bf16.xpose.msra.mxu0 0
    %661 = vmatpush.bf16.xpose.msra.mxu0 0
    %662 = vmatpush.bf16.xpose.msra.mxu0 0
    %663 = vmatpush.bf16.xpose.msra.mxu0 0
    %664 = vmatpush.bf16.xpose.msra.mxu0 %v656
    %665 = vmatpush.bf16.xpose.msra.mxu0 %v653
    %666 = vmatmul.bf16.gmra.mxu0 %v647
    %v667 = vpop.f32.mrf.mxu0
    %v668 = vadd.f32 0.0, %v667
    %v669 = vpop.f32.mrf.mxu0
    %v670 = vadd.f32 0.0, %v669
    %671 = vmatmul.bf16.gmra.mxu0 %v650
    %v672 = vpop.f32.mrf.mxu0
    %v673 = vadd.f32 0.0, %v672
    %v674 = vpop.f32.mrf.mxu0
    %v675 = vadd.f32 0.0, %v674
    %676 = vdwg.mxu0
    %v681 = vunpack.c.l.b16 %v469
    %v682 = vunpack.c.l.b16 %v470
    %v683 = vunpack.c.l.b16 %v471
    %v684 = vunpack.c.l.b16 %v472
    %v685 = vpack.c.b16 %v682, %v681
    %v686 = vpack.c.b16 %v684, %v683
    %687 = vrot.lane.b32.xlu0 %v685, 64
    %v688 = vpop.permute.xlu0 %687
    %689 = vrot.lane.b32.xlu0 %v686, 64
    %v690 = vpop.permute.xlu0 %689
    %v692 = vsel %vm510, %v685, 0
    %v695 = vsel %vm510, %v686, 0
    %v698 = vsel %vm510, %v688, 0
    %v701 = vsel %vm510, %v690, 0
    %703 = vmatpush.bf16.xpose.msra.mxu0 0
    %704 = vmatpush.bf16.xpose.msra.mxu0 0
    %705 = vmatpush.bf16.xpose.msra.mxu0 0
    %706 = vmatpush.bf16.xpose.msra.mxu0 0
    %707 = vmatpush.bf16.xpose.msra.mxu0 0
    %708 = vmatpush.bf16.xpose.msra.mxu0 0
    %709 = vmatpush.bf16.xpose.msra.mxu0 %v701
    %710 = vmatpush.bf16.xpose.msra.mxu0 %v698
    %711 = vmatmul.bf16.gmra.mxu0 %v692
    %v712 = vpop.f32.mrf.mxu0
    %v713 = vadd.f32 0.0, %v712
    %v714 = vpop.f32.mrf.mxu0
    %v715 = vadd.f32 0.0, %v714
    %716 = vmatmul.bf16.gmra.mxu0 %v695
    %v717 = vpop.f32.mrf.mxu0
    %v718 = vadd.f32 0.0, %v717
    %v719 = vpop.f32.mrf.mxu0
    %v720 = vadd.f32 0.0, %v719
    %721 = vdwg.mxu0
    %v726 = vunpack.c.l.b16 %v473
    %v727 = vunpack.c.l.b16 %v474
    %v728 = vunpack.c.l.b16 %v475
    %v729 = vunpack.c.l.b16 %v476
    %v730 = vpack.c.b16 %v727, %v726
    %v731 = vpack.c.b16 %v729, %v728
    %732 = vrot.lane.b32.xlu0 %v730, 64
    %v733 = vpop.permute.xlu0 %732
    %734 = vrot.lane.b32.xlu0 %v731, 64
    %v735 = vpop.permute.xlu0 %734
    %v737 = vsel %vm510, %v730, 0
    %v740 = vsel %vm510, %v731, 0
    %v743 = vsel %vm510, %v733, 0
    %v746 = vsel %vm510, %v735, 0
    %748 = vmatpush.bf16.xpose.msra.mxu0 0
    %749 = vmatpush.bf16.xpose.msra.mxu0 0
    %750 = vmatpush.bf16.xpose.msra.mxu0 0
    %751 = vmatpush.bf16.xpose.msra.mxu0 0
    %752 = vmatpush.bf16.xpose.msra.mxu0 0
    %753 = vmatpush.bf16.xpose.msra.mxu0 0
    %754 = vmatpush.bf16.xpose.msra.mxu0 %v746
    %755 = vmatpush.bf16.xpose.msra.mxu0 %v743
    %756 = vmatmul.bf16.gmra.mxu0 %v737
    %v757 = vpop.f32.mrf.mxu0
    %v758 = vadd.f32 0.0, %v757
    %v759 = vpop.f32.mrf.mxu0
    %v760 = vadd.f32 0.0, %v759
    %761 = vmatmul.bf16.gmra.mxu0 %v740
    %v762 = vpop.f32.mrf.mxu0
    %v763 = vadd.f32 0.0, %v762
    %v764 = vpop.f32.mrf.mxu0
    %v765 = vadd.f32 0.0, %v764
    %766 = vdwg.mxu0
    %v771 = vunpack.c.l.b16 %v477
    %v772 = vunpack.c.l.b16 %v478
    %v773 = vunpack.c.l.b16 %v479
    %v774 = vunpack.c.l.b16 %v480
    %v775 = vpack.c.b16 %v772, %v771
    %v776 = vpack.c.b16 %v774, %v773
    %777 = vrot.lane.b32.xlu0 %v775, 64
    %v778 = vpop.permute.xlu0 %777
    %779 = vrot.lane.b32.xlu0 %v776, 64
    %v780 = vpop.permute.xlu0 %779
    %v782 = vsel %vm510, %v775, 0
    %v785 = vsel %vm510, %v776, 0
    %v788 = vsel %vm510, %v778, 0
    %v791 = vsel %vm510, %v780, 0
    %793 = vmatpush.bf16.xpose.msra.mxu0 0
    %794 = vmatpush.bf16.xpose.msra.mxu0 0
    %795 = vmatpush.bf16.xpose.msra.mxu0 0
    %796 = vmatpush.bf16.xpose.msra.mxu0 0
    %797 = vmatpush.bf16.xpose.msra.mxu0 0
    %798 = vmatpush.bf16.xpose.msra.mxu0 0
    %799 = vmatpush.bf16.xpose.msra.mxu0 %v791
    %800 = vmatpush.bf16.xpose.msra.mxu0 %v788
    %801 = vmatmul.bf16.gmra.mxu0 %v782
    %v802 = vpop.f32.mrf.mxu0
    %v803 = vadd.f32 0.0, %v802
    %v804 = vpop.f32.mrf.mxu0
    %v805 = vadd.f32 0.0, %v804
    %806 = vmatmul.bf16.gmra.mxu0 %v785
    %v807 = vpop.f32.mrf.mxu0
    %v808 = vadd.f32 0.0, %v807
    %v809 = vpop.f32.mrf.mxu0
    %v810 = vadd.f32 0.0, %v809
    %811 = vdwg.mxu0
    %v816 = vunpack.c.l.b16 %v481
    %v817 = vunpack.c.l.b16 %v482
    %v818 = vunpack.c.l.b16 %v483
    %v819 = vunpack.c.l.b16 %v484
    %v820 = vpack.c.b16 %v817, %v816
    %v821 = vpack.c.b16 %v819, %v818
    %822 = vrot.lane.b32.xlu0 %v820, 64
    %v823 = vpop.permute.xlu0 %822
    %824 = vrot.lane.b32.xlu0 %v821, 64
    %v825 = vpop.permute.xlu0 %824
    %v827 = vsel %vm510, %v820, 0
    %v830 = vsel %vm510, %v821, 0
    %v833 = vsel %vm510, %v823, 0
    %v836 = vsel %vm510, %v825, 0
    %838 = vmatpush.bf16.xpose.msra.mxu0 0
    %839 = vmatpush.bf16.xpose.msra.mxu0 0
    %840 = vmatpush.bf16.xpose.msra.mxu0 0
    %841 = vmatpush.bf16.xpose.msra.mxu0 0
    %842 = vmatpush.bf16.xpose.msra.mxu0 0
    %843 = vmatpush.bf16.xpose.msra.mxu0 0
    %844 = vmatpush.bf16.xpose.msra.mxu0 %v836
    %845 = vmatpush.bf16.xpose.msra.mxu0 %v833
    %846 = vmatmul.bf16.gmra.mxu0 %v827
    %v847 = vpop.f32.mrf.mxu0
    %v848 = vadd.f32 0.0, %v847
    %v849 = vpop.f32.mrf.mxu0
    %v850 = vadd.f32 0.0, %v849
    %851 = vmatmul.bf16.gmra.mxu0 %v830
    %v852 = vpop.f32.mrf.mxu0
    %v853 = vadd.f32 0.0, %v852
    %v854 = vpop.f32.mrf.mxu0
    %v855 = vadd.f32 0.0, %v854
    %856 = vdwg.mxu0
    %v857 = vsel %vm492, 1, 0
    %v858 = vsel %vm493, 1, 0
    %v859 = vsel %vm494, 1, 0
    %v860 = vsel %vm495, 1, 0
    %vm861 = vcmp.eq.s32.totalorder %v857, 1
    %vm862 = vcmp.eq.s32.totalorder %v858, 1
    %vm863 = vcmp.eq.s32.totalorder %v859, 1
    %vm864 = vcmp.eq.s32.totalorder %v860, 1
    %v865 = vsel %vm861, %v533, -1e+30
    %v866 = vsel %vm862, %v535, -1e+30
    %v867 = vsel %vm863, %v538, -1e+30
    %v868 = vsel %vm864, %v540, -1e+30
    %v869 = vsel %vm861, %v578, -1e+30
    %v870 = vsel %vm862, %v580, -1e+30
    %v871 = vsel %vm863, %v583, -1e+30
    %v872 = vsel %vm864, %v585, -1e+30
    %v873 = vsel %vm861, %v623, -1e+30
    %v874 = vsel %vm862, %v625, -1e+30
    %v875 = vsel %vm863, %v628, -1e+30
    %v876 = vsel %vm864, %v630, -1e+30
    %v877 = vsel %vm861, %v668, -1e+30
    %v878 = vsel %vm862, %v670, -1e+30
    %v879 = vsel %vm863, %v673, -1e+30
    %v880 = vsel %vm864, %v675, -1e+30
    %v881 = vsel %vm861, %v713, -1e+30
    %v882 = vsel %vm862, %v715, -1e+30
    %v883 = vsel %vm863, %v718, -1e+30
    %v884 = vsel %vm864, %v720, -1e+30
    %v885 = vsel %vm861, %v758, -1e+30
    %v886 = vsel %vm862, %v760, -1e+30
    %v887 = vsel %vm863, %v763, -1e+30
    %v888 = vsel %vm864, %v765, -1e+30
    %v889 = vsel %vm861, %v803, -1e+30
    %v890 = vsel %vm862, %v805, -1e+30
    %v891 = vsel %vm863, %v808, -1e+30
    %v892 = vsel %vm864, %v810, -1e+30
    %v893 = vsel %vm861, %v848, -1e+30
    %v894 = vsel %vm862, %v850, -1e+30
    %v895 = vsel %vm863, %v853, -1e+30
    %v896 = vsel %vm864, %v855, -1e+30
    %vm897 = vcmask 261120
    %v898 = vsel %vm897, %v865, -inf
    %899 = vmax.xlane.f32.xlu0 %v898
    %v900 = vpop.xlane.xlu0 %899
    %v901 = vsel %vm897, %v866, -inf
    %902 = vmax.xlane.f32.xlu0 %v901
    %v903 = vpop.xlane.xlu0 %902
    %v904 = vsel %vm897, %v867, -inf
    %905 = vmax.xlane.f32.xlu0 %v904
    %v906 = vpop.xlane.xlu0 %905
    %v907 = vsel %vm897, %v868, -inf
    %908 = vmax.xlane.f32.xlu0 %v907
    %v909 = vpop.xlane.xlu0 %908
    %v910 = vsel %vm897, %v869, -inf
    %911 = vmax.xlane.f32.xlu0 %v910
    %v912 = vpop.xlane.xlu0 %911
    %v913 = vsel %vm897, %v870, -inf
    %914 = vmax.xlane.f32.xlu0 %v913
    %v915 = vpop.xlane.xlu0 %914
    %v916 = vsel %vm897, %v871, -inf
    %917 = vmax.xlane.f32.xlu0 %v916
    %v918 = vpop.xlane.xlu0 %917
    %v919 = vsel %vm897, %v872, -inf
    %920 = vmax.xlane.f32.xlu0 %v919
    %v921 = vpop.xlane.xlu0 %920
    %v922 = vsel %vm897, %v873, -inf
    %923 = vmax.xlane.f32.xlu0 %v922
    %v924 = vpop.xlane.xlu0 %923
    %v925 = vsel %vm897, %v874, -inf
    %926 = vmax.xlane.f32.xlu0 %v925
    %v927 = vpop.xlane.xlu0 %926
    %v928 = vsel %vm897, %v875, -inf
    %929 = vmax.xlane.f32.xlu0 %v928
    %v930 = vpop.xlane.xlu0 %929
    %v931 = vsel %vm897, %v876, -inf
    %932 = vmax.xlane.f32.xlu0 %v931
    %v933 = vpop.xlane.xlu0 %932
    %v934 = vsel %vm897, %v877, -inf
    %935 = vmax.xlane.f32.xlu0 %v934
    %v936 = vpop.xlane.xlu0 %935
    %v937 = vsel %vm897, %v878, -inf
    %938 = vmax.xlane.f32.xlu0 %v937
    %v939 = vpop.xlane.xlu0 %938
    %v940 = vsel %vm897, %v879, -inf
    %941 = vmax.xlane.f32.xlu0 %v940
    %v942 = vpop.xlane.xlu0 %941
    %v943 = vsel %vm897, %v880, -inf
    %944 = vmax.xlane.f32.xlu0 %v943
    %v945 = vpop.xlane.xlu0 %944
    %v946 = vsel %vm897, %v881, -inf
    %947 = vmax.xlane.f32.xlu0 %v946
    %v948 = vpop.xlane.xlu0 %947
    %v949 = vsel %vm897, %v882, -inf
    %950 = vmax.xlane.f32.xlu0 %v949
    %v951 = vpop.xlane.xlu0 %950
    %v952 = vsel %vm897, %v883, -inf
    %953 = vmax.xlane.f32.xlu0 %v952
    %v954 = vpop.xlane.xlu0 %953
    %v955 = vsel %vm897, %v884, -inf
    %956 = vmax.xlane.f32.xlu0 %v955
    %v957 = vpop.xlane.xlu0 %956
    %v958 = vsel %vm897, %v885, -inf
    %959 = vmax.xlane.f32.xlu0 %v958
    %v960 = vpop.xlane.xlu0 %959
    %v961 = vsel %vm897, %v886, -inf
    %962 = vmax.xlane.f32.xlu0 %v961
    %v963 = vpop.xlane.xlu0 %962
    %v964 = vsel %vm897, %v887, -inf
    %965 = vmax.xlane.f32.xlu0 %v964
    %v966 = vpop.xlane.xlu0 %965
    %v967 = vsel %vm897, %v888, -inf
    %968 = vmax.xlane.f32.xlu0 %v967
    %v969 = vpop.xlane.xlu0 %968
    %v970 = vsel %vm897, %v889, -inf
    %971 = vmax.xlane.f32.xlu0 %v970
    %v972 = vpop.xlane.xlu0 %971
    %v973 = vsel %vm897, %v890, -inf
    %974 = vmax.xlane.f32.xlu0 %v973
    %v975 = vpop.xlane.xlu0 %974
    %v976 = vsel %vm897, %v891, -inf
    %977 = vmax.xlane.f32.xlu0 %v976
    %v978 = vpop.xlane.xlu0 %977
    %v979 = vsel %vm897, %v892, -inf
    %980 = vmax.xlane.f32.xlu0 %v979
    %v981 = vpop.xlane.xlu0 %980
    %v982 = vsel %vm897, %v893, -inf
    %983 = vmax.xlane.f32.xlu0 %v982
    %v984 = vpop.xlane.xlu0 %983
    %v985 = vsel %vm897, %v894, -inf
    %986 = vmax.xlane.f32.xlu0 %v985
    %v987 = vpop.xlane.xlu0 %986
    %v988 = vsel %vm897, %v895, -inf
    %989 = vmax.xlane.f32.xlu0 %v988
    %v990 = vpop.xlane.xlu0 %989
    %v991 = vsel %vm897, %v896, -inf
    %992 = vmax.xlane.f32.xlu0 %v991
    %v993 = vpop.xlane.xlu0 %992
    %v994 = vsub.f32 %v865, %v900
    %v995 = vsub.f32 %v866, %v903
    %v996 = vsub.f32 %v867, %v906
    %v997 = vsub.f32 %v868, %v909
    %v998 = vsub.f32 %v869, %v912
    %v999 = vsub.f32 %v870, %v915
    %v1000 = vsub.f32 %v871, %v918
    %v1001 = vsub.f32 %v872, %v921
    %v1002 = vsub.f32 %v873, %v924
    %v1003 = vsub.f32 %v874, %v927
    %v1004 = vsub.f32 %v875, %v930
    %v1005 = vsub.f32 %v876, %v933
    %v1006 = vsub.f32 %v877, %v936
    %v1007 = vsub.f32 %v878, %v939
    %v1008 = vsub.f32 %v879, %v942
    %v1009 = vsub.f32 %v880, %v945
    %v1010 = vsub.f32 %v881, %v948
    %v1011 = vsub.f32 %v882, %v951
    %v1012 = vsub.f32 %v883, %v954
    %v1013 = vsub.f32 %v884, %v957
    %v1014 = vsub.f32 %v885, %v960
    %v1015 = vsub.f32 %v886, %v963
    %v1016 = vsub.f32 %v887, %v966
    %v1017 = vsub.f32 %v888, %v969
    %v1018 = vsub.f32 %v889, %v972
    %v1019 = vsub.f32 %v890, %v975
    %v1020 = vsub.f32 %v891, %v978
    %v1021 = vsub.f32 %v892, %v981
    %v1022 = vsub.f32 %v893, %v984
    %v1023 = vsub.f32 %v894, %v987
    %v1024 = vsub.f32 %v895, %v990
    %v1025 = vsub.f32 %v896, %v993
    %v1026 = vmul.f32 %v994, 1.442695
    %v1027 = vpow.pop %v1026
    %v1028 = vmul.f32 %v995, 1.442695
    %v1029 = vpow.pop %v1028
    %v1030 = vmul.f32 %v996, 1.442695
    %v1031 = vpow.pop %v1030
    %v1032 = vmul.f32 %v997, 1.442695
    %v1033 = vpow.pop %v1032
    %v1034 = vmul.f32 %v998, 1.442695
    %v1035 = vpow.pop %v1034
    %v1036 = vmul.f32 %v999, 1.442695
    %v1037 = vpow.pop %v1036
    %v1038 = vmul.f32 %v1000, 1.442695
    %v1039 = vpow.pop %v1038
    %v1040 = vmul.f32 %v1001, 1.442695
    %v1041 = vpow.pop %v1040
    %v1042 = vmul.f32 %v1002, 1.442695
    %v1043 = vpow.pop %v1042
    %v1044 = vmul.f32 %v1003, 1.442695
    %v1045 = vpow.pop %v1044
    %v1046 = vmul.f32 %v1004, 1.442695
    %v1047 = vpow.pop %v1046
    %v1048 = vmul.f32 %v1005, 1.442695
    %v1049 = vpow.pop %v1048
    %v1050 = vmul.f32 %v1006, 1.442695
    %v1051 = vpow.pop %v1050
    %v1052 = vmul.f32 %v1007, 1.442695
    %v1053 = vpow.pop %v1052
    %v1054 = vmul.f32 %v1008, 1.442695
    %v1055 = vpow.pop %v1054
    %v1056 = vmul.f32 %v1009, 1.442695
    %v1057 = vpow.pop %v1056
    %v1058 = vmul.f32 %v1010, 1.442695
    %v1059 = vpow.pop %v1058
    %v1060 = vmul.f32 %v1011, 1.442695
    %v1061 = vpow.pop %v1060
    %v1062 = vmul.f32 %v1012, 1.442695
    %v1063 = vpow.pop %v1062
    %v1064 = vmul.f32 %v1013, 1.442695
    %v1065 = vpow.pop %v1064
    %v1066 = vmul.f32 %v1014, 1.442695
    %v1067 = vpow.pop %v1066
    %v1068 = vmul.f32 %v1015, 1.442695
    %v1069 = vpow.pop %v1068
    %v1070 = vmul.f32 %v1016, 1.442695
    %v1071 = vpow.pop %v1070
    %v1072 = vmul.f32 %v1017, 1.442695
    %v1073 = vpow.pop %v1072
    %v1074 = vmul.f32 %v1018, 1.442695
    %v1075 = vpow.pop %v1074
    %v1076 = vmul.f32 %v1019, 1.442695
    %v1077 = vpow.pop %v1076
    %v1078 = vmul.f32 %v1020, 1.442695
    %v1079 = vpow.pop %v1078
    %v1080 = vmul.f32 %v1021, 1.442695
    %v1081 = vpow.pop %v1080
    %v1082 = vmul.f32 %v1022, 1.442695
    %v1083 = vpow.pop %v1082
    %v1084 = vmul.f32 %v1023, 1.442695
    %v1085 = vpow.pop %v1084
    %v1086 = vmul.f32 %v1024, 1.442695
    %v1087 = vpow.pop %v1086
    %v1088 = vmul.f32 %v1025, 1.442695
    %v1089 = vpow.pop %v1088
    %v1090 = vsel %vm897, %v1027, 0.0
    %1091 = vadd.xlane.f32.xlu0 %v1090
    %v1092 = vpop.xlane.xlu0 %1091
    %v1093 = vsel %vm897, %v1029, 0.0
    %1094 = vadd.xlane.f32.xlu0 %v1093
    %v1095 = vpop.xlane.xlu0 %1094
    %v1096 = vsel %vm897, %v1031, 0.0
    %1097 = vadd.xlane.f32.xlu0 %v1096
    %v1098 = vpop.xlane.xlu0 %1097
    %v1099 = vsel %vm897, %v1033, 0.0
    %1100 = vadd.xlane.f32.xlu0 %v1099
    %v1101 = vpop.xlane.xlu0 %1100
    %v1102 = vsel %vm897, %v1035, 0.0
    %1103 = vadd.xlane.f32.xlu0 %v1102
    %v1104 = vpop.xlane.xlu0 %1103
    %v1105 = vsel %vm897, %v1037, 0.0
    %1106 = vadd.xlane.f32.xlu0 %v1105
    %v1107 = vpop.xlane.xlu0 %1106
    %v1108 = vsel %vm897, %v1039, 0.0
    %1109 = vadd.xlane.f32.xlu0 %v1108
    %v1110 = vpop.xlane.xlu0 %1109
    %v1111 = vsel %vm897, %v1041, 0.0
    %1112 = vadd.xlane.f32.xlu0 %v1111
    %v1113 = vpop.xlane.xlu0 %1112
    %v1114 = vsel %vm897, %v1043, 0.0
    %1115 = vadd.xlane.f32.xlu0 %v1114
    %v1116 = vpop.xlane.xlu0 %1115
    %v1117 = vsel %vm897, %v1045, 0.0
    %1118 = vadd.xlane.f32.xlu0 %v1117
    %v1119 = vpop.xlane.xlu0 %1118
    %v1120 = vsel %vm897, %v1047, 0.0
    %1121 = vadd.xlane.f32.xlu0 %v1120
    %v1122 = vpop.xlane.xlu0 %1121
    %v1123 = vsel %vm897, %v1049, 0.0
    %1124 = vadd.xlane.f32.xlu0 %v1123
    %v1125 = vpop.xlane.xlu0 %1124
    %v1126 = vsel %vm897, %v1051, 0.0
    %1127 = vadd.xlane.f32.xlu0 %v1126
    %v1128 = vpop.xlane.xlu0 %1127
    %v1129 = vsel %vm897, %v1053, 0.0
    %1130 = vadd.xlane.f32.xlu0 %v1129
    %v1131 = vpop.xlane.xlu0 %1130
    %v1132 = vsel %vm897, %v1055, 0.0
    %1133 = vadd.xlane.f32.xlu0 %v1132
    %v1134 = vpop.xlane.xlu0 %1133
    %v1135 = vsel %vm897, %v1057, 0.0
    %1136 = vadd.xlane.f32.xlu0 %v1135
    %v1137 = vpop.xlane.xlu0 %1136
    %v1138 = vsel %vm897, %v1059, 0.0
    %1139 = vadd.xlane.f32.xlu0 %v1138
    %v1140 = vpop.xlane.xlu0 %1139
    %v1141 = vsel %vm897, %v1061, 0.0
    %1142 = vadd.xlane.f32.xlu0 %v1141
    %v1143 = vpop.xlane.xlu0 %1142
    %v1144 = vsel %vm897, %v1063, 0.0
    %1145 = vadd.xlane.f32.xlu0 %v1144
    %v1146 = vpop.xlane.xlu0 %1145
    %v1147 = vsel %vm897, %v1065, 0.0
    %1148 = vadd.xlane.f32.xlu0 %v1147
    %v1149 = vpop.xlane.xlu0 %1148
    %v1150 = vsel %vm897, %v1067, 0.0
    %1151 = vadd.xlane.f32.xlu0 %v1150
    %v1152 = vpop.xlane.xlu0 %1151
    %v1153 = vsel %vm897, %v1069, 0.0
    %1154 = vadd.xlane.f32.xlu0 %v1153
    %v1155 = vpop.xlane.xlu0 %1154
    %v1156 = vsel %vm897, %v1071, 0.0
    %1157 = vadd.xlane.f32.xlu0 %v1156
    %v1158 = vpop.xlane.xlu0 %1157
    %v1159 = vsel %vm897, %v1073, 0.0
    %1160 = vadd.xlane.f32.xlu0 %v1159
    %v1161 = vpop.xlane.xlu0 %1160
    %v1162 = vsel %vm897, %v1075, 0.0
    %1163 = vadd.xlane.f32.xlu0 %v1162
    %v1164 = vpop.xlane.xlu0 %1163
    %v1165 = vsel %vm897, %v1077, 0.0
    %1166 = vadd.xlane.f32.xlu0 %v1165
    %v1167 = vpop.xlane.xlu0 %1166
    %v1168 = vsel %vm897, %v1079, 0.0
    %1169 = vadd.xlane.f32.xlu0 %v1168
    %v1170 = vpop.xlane.xlu0 %1169
    %v1171 = vsel %vm897, %v1081, 0.0
    %1172 = vadd.xlane.f32.xlu0 %v1171
    %v1173 = vpop.xlane.xlu0 %1172
    %v1174 = vsel %vm897, %v1083, 0.0
    %1175 = vadd.xlane.f32.xlu0 %v1174
    %v1176 = vpop.xlane.xlu0 %1175
    %v1177 = vsel %vm897, %v1085, 0.0
    %1178 = vadd.xlane.f32.xlu0 %v1177
    %v1179 = vpop.xlane.xlu0 %1178
    %v1180 = vsel %vm897, %v1087, 0.0
    %1181 = vadd.xlane.f32.xlu0 %v1180
    %v1182 = vpop.xlane.xlu0 %1181
    %v1183 = vsel %vm897, %v1089, 0.0
    %1184 = vadd.xlane.f32.xlu0 %v1183
    %v1185 = vpop.xlane.xlu0 %1184
    %v1186 = vrcp.pop %v1092
    %v1187 = vrcp.pop %v1095
    %v1188 = vrcp.pop %v1098
    %v1189 = vrcp.pop %v1101
    %v1190 = vrcp.pop %v1104
    %v1191 = vrcp.pop %v1107
    %v1192 = vrcp.pop %v1110
    %v1193 = vrcp.pop %v1113
    %v1194 = vrcp.pop %v1116
    %v1195 = vrcp.pop %v1119
    %v1196 = vrcp.pop %v1122
    %v1197 = vrcp.pop %v1125
    %v1198 = vrcp.pop %v1128
    %v1199 = vrcp.pop %v1131
    %v1200 = vrcp.pop %v1134
    %v1201 = vrcp.pop %v1137
    %v1202 = vrcp.pop %v1140
    %v1203 = vrcp.pop %v1143
    %v1204 = vrcp.pop %v1146
    %v1205 = vrcp.pop %v1149
    %v1206 = vrcp.pop %v1152
    %v1207 = vrcp.pop %v1155
    %v1208 = vrcp.pop %v1158
    %v1209 = vrcp.pop %v1161
    %v1210 = vrcp.pop %v1164
    %v1211 = vrcp.pop %v1167
    %v1212 = vrcp.pop %v1170
    %v1213 = vrcp.pop %v1173
    %v1214 = vrcp.pop %v1176
    %v1215 = vrcp.pop %v1179
    %v1216 = vrcp.pop %v1182
    %v1217 = vrcp.pop %v1185
    %v1218 = vmul.f32 %v1027, %v1186
    %v1219 = vmul.f32 %v1029, %v1187
    %v1220 = vmul.f32 %v1031, %v1188
    %v1221 = vmul.f32 %v1033, %v1189
    %v1222 = vmul.f32 %v1035, %v1190
    %v1223 = vmul.f32 %v1037, %v1191
    %v1224 = vmul.f32 %v1039, %v1192
    %v1225 = vmul.f32 %v1041, %v1193
    %v1226 = vmul.f32 %v1043, %v1194
    %v1227 = vmul.f32 %v1045, %v1195
    %v1228 = vmul.f32 %v1047, %v1196
    %v1229 = vmul.f32 %v1049, %v1197
    %v1230 = vmul.f32 %v1051, %v1198
    %v1231 = vmul.f32 %v1053, %v1199
    %v1232 = vmul.f32 %v1055, %v1200
    %v1233 = vmul.f32 %v1057, %v1201
    %v1234 = vmul.f32 %v1059, %v1202
    %v1235 = vmul.f32 %v1061, %v1203
    %v1236 = vmul.f32 %v1063, %v1204
    %v1237 = vmul.f32 %v1065, %v1205
    %v1238 = vmul.f32 %v1067, %v1206
    %v1239 = vmul.f32 %v1069, %v1207
    %v1240 = vmul.f32 %v1071, %v1208
    %v1241 = vmul.f32 %v1073, %v1209
    %v1242 = vmul.f32 %v1075, %v1210
    %v1243 = vmul.f32 %v1077, %v1211
    %v1244 = vmul.f32 %v1079, %v1212
    %v1245 = vmul.f32 %v1081, %v1213
    %v1246 = vmul.f32 %v1083, %v1214
    %v1247 = vmul.f32 %v1085, %v1215
    %v1248 = vmul.f32 %v1087, %v1216
    %v1249 = vmul.f32 %v1089, %v1217
    %v1250 = vpack.c.bf16 %v1218, %v1218
    %v1251 = vpack.c.bf16 %v1219, %v1219
    %v1252 = vpack.c.bf16 %v1220, %v1220
    %v1253 = vpack.c.bf16 %v1221, %v1221
    %v1254 = vpack.c.bf16 %v1222, %v1222
    %v1255 = vpack.c.bf16 %v1223, %v1223
    %v1256 = vpack.c.bf16 %v1224, %v1224
    %v1257 = vpack.c.bf16 %v1225, %v1225
    %v1258 = vpack.c.bf16 %v1226, %v1226
    %v1259 = vpack.c.bf16 %v1227, %v1227
    %v1260 = vpack.c.bf16 %v1228, %v1228
    %v1261 = vpack.c.bf16 %v1229, %v1229
    %v1262 = vpack.c.bf16 %v1230, %v1230
    %v1263 = vpack.c.bf16 %v1231, %v1231
    %v1264 = vpack.c.bf16 %v1232, %v1232
    %v1265 = vpack.c.bf16 %v1233, %v1233
    %v1266 = vpack.c.bf16 %v1234, %v1234
    %v1267 = vpack.c.bf16 %v1235, %v1235
    %v1268 = vpack.c.bf16 %v1236, %v1236
    %v1269 = vpack.c.bf16 %v1237, %v1237
    %v1270 = vpack.c.bf16 %v1238, %v1238
    %v1271 = vpack.c.bf16 %v1239, %v1239
    %v1272 = vpack.c.bf16 %v1240, %v1240
    %v1273 = vpack.c.bf16 %v1241, %v1241
    %v1274 = vpack.c.bf16 %v1242, %v1242
    %v1275 = vpack.c.bf16 %v1243, %v1243
    %v1276 = vpack.c.bf16 %v1244, %v1244
    %v1277 = vpack.c.bf16 %v1245, %v1245
    %v1278 = vpack.c.bf16 %v1246, %v1246
    %v1279 = vpack.c.bf16 %v1247, %v1247
    %v1280 = vpack.c.bf16 %v1248, %v1248
    %v1281 = vpack.c.bf16 %v1249, %v1249
    %v1282 = vrot.slane %v453, 4
    %v1283 = vrot.slane %v454, 4
    %v1284 = vrot.slane %v455, 4
    %v1285 = vrot.slane %v456, 4
    %v1290 = vunpack.c.l.b16 %v1250
    %v1291 = vunpack.c.l.b16 %v1251
    %v1292 = vunpack.c.l.b16 %v1252
    %v1293 = vunpack.c.l.b16 %v1253
    %v1294 = vpack.c.b16 %v1291, %v1290
    %v1295 = vpack.c.b16 %v1293, %v1292
    %v1296 = vunpack.c.l.b16 %v1282
    %v1297 = vunpack.c.l.b16 %v1283
    %v1298 = vunpack.c.l.b16 %v1284
    %v1299 = vunpack.c.l.b16 %v1285
    %v1300 = vpack.c.b16 %v1297, %v1296
    %v1301 = vpack.c.b16 %v1299, %v1298
    %v1305 = vsel %vm897, %v1294, 0
    %v1308 = vsel %vm897, %v1295, 0
    %1310 = vmatpush.bf16.msra.mxu0 0
    %1311 = vmatpush.bf16.msra.mxu0 0
    %1312 = vmatpush.bf16.msra.mxu0 0
    %1313 = vmatpush.bf16.msra.mxu0 0
    %1314 = vmatpush.bf16.msra.mxu0 0
    %1315 = vmatpush.bf16.msra.mxu0 0
    %1316 = vmatpush.bf16.msra.mxu0 %v1301
    %1317 = vmatpush.bf16.msra.mxu0 %v1300
    %1318 = vmatmul.bf16.gmra.mxu0 %v1305
    %v1319 = vpop.f32.mrf.mxu0
    %v1320 = vadd.f32 0.0, %v1319
    %v1321 = vpop.f32.mrf.mxu0
    %v1322 = vadd.f32 0.0, %v1321
    %1323 = vmatmul.bf16.gmra.mxu0 %v1308
    %v1324 = vpop.f32.mrf.mxu0
    %v1325 = vadd.f32 0.0, %v1324
    %v1326 = vpop.f32.mrf.mxu0
    %v1327 = vadd.f32 0.0, %v1326
    %1328 = vdwg.mxu0
    %v1329 = vrot.slane %v457, 4
    %v1330 = vrot.slane %v458, 4
    %v1331 = vrot.slane %v459, 4
    %v1332 = vrot.slane %v460, 4
    %v1337 = vunpack.c.l.b16 %v1254
    %v1338 = vunpack.c.l.b16 %v1255
    %v1339 = vunpack.c.l.b16 %v1256
    %v1340 = vunpack.c.l.b16 %v1257
    %v1341 = vpack.c.b16 %v1338, %v1337
    %v1342 = vpack.c.b16 %v1340, %v1339
    %v1343 = vunpack.c.l.b16 %v1329
    %v1344 = vunpack.c.l.b16 %v1330
    %v1345 = vunpack.c.l.b16 %v1331
    %v1346 = vunpack.c.l.b16 %v1332
    %v1347 = vpack.c.b16 %v1344, %v1343
    %v1348 = vpack.c.b16 %v1346, %v1345
    %v1352 = vsel %vm897, %v1341, 0
    %v1355 = vsel %vm897, %v1342, 0
    %1357 = vmatpush.bf16.msra.mxu0 0
    %1358 = vmatpush.bf16.msra.mxu0 0
    %1359 = vmatpush.bf16.msra.mxu0 0
    %1360 = vmatpush.bf16.msra.mxu0 0
    %1361 = vmatpush.bf16.msra.mxu0 0
    %1362 = vmatpush.bf16.msra.mxu0 0
    %1363 = vmatpush.bf16.msra.mxu0 %v1348
    %1364 = vmatpush.bf16.msra.mxu0 %v1347
    %1365 = vmatmul.bf16.gmra.mxu0 %v1352
    %v1366 = vpop.f32.mrf.mxu0
    %v1367 = vadd.f32 0.0, %v1366
    %v1368 = vpop.f32.mrf.mxu0
    %v1369 = vadd.f32 0.0, %v1368
    %1370 = vmatmul.bf16.gmra.mxu0 %v1355
    %v1371 = vpop.f32.mrf.mxu0
    %v1372 = vadd.f32 0.0, %v1371
    %v1373 = vpop.f32.mrf.mxu0
    %v1374 = vadd.f32 0.0, %v1373
    %1375 = vdwg.mxu0
    %v1376 = vrot.slane %v461, 4
    %v1377 = vrot.slane %v462, 4
    %v1378 = vrot.slane %v463, 4
    %v1379 = vrot.slane %v464, 4
    %v1384 = vunpack.c.l.b16 %v1258
    %v1385 = vunpack.c.l.b16 %v1259
    %v1386 = vunpack.c.l.b16 %v1260
    %v1387 = vunpack.c.l.b16 %v1261
    %v1388 = vpack.c.b16 %v1385, %v1384
    %v1389 = vpack.c.b16 %v1387, %v1386
    %v1390 = vunpack.c.l.b16 %v1376
    %v1391 = vunpack.c.l.b16 %v1377
    %v1392 = vunpack.c.l.b16 %v1378
    %v1393 = vunpack.c.l.b16 %v1379
    %v1394 = vpack.c.b16 %v1391, %v1390
    %v1395 = vpack.c.b16 %v1393, %v1392
    %v1399 = vsel %vm897, %v1388, 0
    %v1402 = vsel %vm897, %v1389, 0
    %1404 = vmatpush.bf16.msra.mxu0 0
    %1405 = vmatpush.bf16.msra.mxu0 0
    %1406 = vmatpush.bf16.msra.mxu0 0
    %1407 = vmatpush.bf16.msra.mxu0 0
    %1408 = vmatpush.bf16.msra.mxu0 0
    %1409 = vmatpush.bf16.msra.mxu0 0
    %1410 = vmatpush.bf16.msra.mxu0 %v1395
    %1411 = vmatpush.bf16.msra.mxu0 %v1394
    %1412 = vmatmul.bf16.gmra.mxu0 %v1399
    %v1413 = vpop.f32.mrf.mxu0
    %v1414 = vadd.f32 0.0, %v1413
    %v1415 = vpop.f32.mrf.mxu0
    %v1416 = vadd.f32 0.0, %v1415
    %1417 = vmatmul.bf16.gmra.mxu0 %v1402
    %v1418 = vpop.f32.mrf.mxu0
    %v1419 = vadd.f32 0.0, %v1418
    %v1420 = vpop.f32.mrf.mxu0
    %v1421 = vadd.f32 0.0, %v1420
    %1422 = vdwg.mxu0
    %v1423 = vrot.slane %v465, 4
    %v1424 = vrot.slane %v466, 4
    %v1425 = vrot.slane %v467, 4
    %v1426 = vrot.slane %v468, 4
    %v1431 = vunpack.c.l.b16 %v1262
    %v1432 = vunpack.c.l.b16 %v1263
    %v1433 = vunpack.c.l.b16 %v1264
    %v1434 = vunpack.c.l.b16 %v1265
    %v1435 = vpack.c.b16 %v1432, %v1431
    %v1436 = vpack.c.b16 %v1434, %v1433
    %v1437 = vunpack.c.l.b16 %v1423
    %v1438 = vunpack.c.l.b16 %v1424
    %v1439 = vunpack.c.l.b16 %v1425
    %v1440 = vunpack.c.l.b16 %v1426
    %v1441 = vpack.c.b16 %v1438, %v1437
    %v1442 = vpack.c.b16 %v1440, %v1439
    %v1446 = vsel %vm897, %v1435, 0
    %v1449 = vsel %vm897, %v1436, 0
    %1451 = vmatpush.bf16.msra.mxu0 0
    %1452 = vmatpush.bf16.msra.mxu0 0
    %1453 = vmatpush.bf16.msra.mxu0 0
    %1454 = vmatpush.bf16.msra.mxu0 0
    %1455 = vmatpush.bf16.msra.mxu0 0
    %1456 = vmatpush.bf16.msra.mxu0 0
    %1457 = vmatpush.bf16.msra.mxu0 %v1442
    %1458 = vmatpush.bf16.msra.mxu0 %v1441
    %1459 = vmatmul.bf16.gmra.mxu0 %v1446
    %v1460 = vpop.f32.mrf.mxu0
    %v1461 = vadd.f32 0.0, %v1460
    %v1462 = vpop.f32.mrf.mxu0
    %v1463 = vadd.f32 0.0, %v1462
    %1464 = vmatmul.bf16.gmra.mxu0 %v1449
    %v1465 = vpop.f32.mrf.mxu0
    %v1466 = vadd.f32 0.0, %v1465
    %v1467 = vpop.f32.mrf.mxu0
    %v1468 = vadd.f32 0.0, %v1467
    %1469 = vdwg.mxu0
    %v1470 = vrot.slane %v469, 4
    %v1471 = vrot.slane %v470, 4
    %v1472 = vrot.slane %v471, 4
    %v1473 = vrot.slane %v472, 4
    %v1478 = vunpack.c.l.b16 %v1266
    %v1479 = vunpack.c.l.b16 %v1267
    %v1480 = vunpack.c.l.b16 %v1268
    %v1481 = vunpack.c.l.b16 %v1269
    %v1482 = vpack.c.b16 %v1479, %v1478
    %v1483 = vpack.c.b16 %v1481, %v1480
    %v1484 = vunpack.c.l.b16 %v1470
    %v1485 = vunpack.c.l.b16 %v1471
    %v1486 = vunpack.c.l.b16 %v1472
    %v1487 = vunpack.c.l.b16 %v1473
    %v1488 = vpack.c.b16 %v1485, %v1484
    %v1489 = vpack.c.b16 %v1487, %v1486
    %v1493 = vsel %vm897, %v1482, 0
    %v1496 = vsel %vm897, %v1483, 0
    %1498 = vmatpush.bf16.msra.mxu0 0
    %1499 = vmatpush.bf16.msra.mxu0 0
    %1500 = vmatpush.bf16.msra.mxu0 0
    %1501 = vmatpush.bf16.msra.mxu0 0
    %1502 = vmatpush.bf16.msra.mxu0 0
    %1503 = vmatpush.bf16.msra.mxu0 0
    %1504 = vmatpush.bf16.msra.mxu0 %v1489
    %1505 = vmatpush.bf16.msra.mxu0 %v1488
    %1506 = vmatmul.bf16.gmra.mxu0 %v1493
    %v1507 = vpop.f32.mrf.mxu0
    %v1508 = vadd.f32 0.0, %v1507
    %v1509 = vpop.f32.mrf.mxu0
    %v1510 = vadd.f32 0.0, %v1509
    %1511 = vmatmul.bf16.gmra.mxu0 %v1496
    %v1512 = vpop.f32.mrf.mxu0
    %v1513 = vadd.f32 0.0, %v1512
    %v1514 = vpop.f32.mrf.mxu0
    %v1515 = vadd.f32 0.0, %v1514
    %1516 = vdwg.mxu0
    %v1517 = vrot.slane %v473, 4
    %v1518 = vrot.slane %v474, 4
    %v1519 = vrot.slane %v475, 4
    %v1520 = vrot.slane %v476, 4
    %v1525 = vunpack.c.l.b16 %v1270
    %v1526 = vunpack.c.l.b16 %v1271
    %v1527 = vunpack.c.l.b16 %v1272
    %v1528 = vunpack.c.l.b16 %v1273
    %v1529 = vpack.c.b16 %v1526, %v1525
    %v1530 = vpack.c.b16 %v1528, %v1527
    %v1531 = vunpack.c.l.b16 %v1517
    %v1532 = vunpack.c.l.b16 %v1518
    %v1533 = vunpack.c.l.b16 %v1519
    %v1534 = vunpack.c.l.b16 %v1520
    %v1535 = vpack.c.b16 %v1532, %v1531
    %v1536 = vpack.c.b16 %v1534, %v1533
    %v1540 = vsel %vm897, %v1529, 0
    %v1543 = vsel %vm897, %v1530, 0
    %1545 = vmatpush.bf16.msra.mxu0 0
    %1546 = vmatpush.bf16.msra.mxu0 0
    %1547 = vmatpush.bf16.msra.mxu0 0
    %1548 = vmatpush.bf16.msra.mxu0 0
    %1549 = vmatpush.bf16.msra.mxu0 0
    %1550 = vmatpush.bf16.msra.mxu0 0
    %1551 = vmatpush.bf16.msra.mxu0 %v1536
    %1552 = vmatpush.bf16.msra.mxu0 %v1535
    %1553 = vmatmul.bf16.gmra.mxu0 %v1540
    %v1554 = vpop.f32.mrf.mxu0
    %v1555 = vadd.f32 0.0, %v1554
    %v1556 = vpop.f32.mrf.mxu0
    %v1557 = vadd.f32 0.0, %v1556
    %1558 = vmatmul.bf16.gmra.mxu0 %v1543
    %v1559 = vpop.f32.mrf.mxu0
    %v1560 = vadd.f32 0.0, %v1559
    %v1561 = vpop.f32.mrf.mxu0
    %v1562 = vadd.f32 0.0, %v1561
    %1563 = vdwg.mxu0
    %v1564 = vrot.slane %v477, 4
    %v1565 = vrot.slane %v478, 4
    %v1566 = vrot.slane %v479, 4
    %v1567 = vrot.slane %v480, 4
    %v1572 = vunpack.c.l.b16 %v1274
    %v1573 = vunpack.c.l.b16 %v1275
    %v1574 = vunpack.c.l.b16 %v1276
    %v1575 = vunpack.c.l.b16 %v1277
    %v1576 = vpack.c.b16 %v1573, %v1572
    %v1577 = vpack.c.b16 %v1575, %v1574
    %v1578 = vunpack.c.l.b16 %v1564
    %v1579 = vunpack.c.l.b16 %v1565
    %v1580 = vunpack.c.l.b16 %v1566
    %v1581 = vunpack.c.l.b16 %v1567
    %v1582 = vpack.c.b16 %v1579, %v1578
    %v1583 = vpack.c.b16 %v1581, %v1580
    %v1587 = vsel %vm897, %v1576, 0
    %v1590 = vsel %vm897, %v1577, 0
    %1592 = vmatpush.bf16.msra.mxu0 0
    %1593 = vmatpush.bf16.msra.mxu0 0
    %1594 = vmatpush.bf16.msra.mxu0 0
    %1595 = vmatpush.bf16.msra.mxu0 0
    %1596 = vmatpush.bf16.msra.mxu0 0
    %1597 = vmatpush.bf16.msra.mxu0 0
    %1598 = vmatpush.bf16.msra.mxu0 %v1583
    %1599 = vmatpush.bf16.msra.mxu0 %v1582
    %1600 = vmatmul.bf16.gmra.mxu0 %v1587
    %v1601 = vpop.f32.mrf.mxu0
    %v1602 = vadd.f32 0.0, %v1601
    %v1603 = vpop.f32.mrf.mxu0
    %v1604 = vadd.f32 0.0, %v1603
    %1605 = vmatmul.bf16.gmra.mxu0 %v1590
    %v1606 = vpop.f32.mrf.mxu0
    %v1607 = vadd.f32 0.0, %v1606
    %v1608 = vpop.f32.mrf.mxu0
    %v1609 = vadd.f32 0.0, %v1608
    %1610 = vdwg.mxu0
    %v1611 = vrot.slane %v481, 4
    %v1612 = vrot.slane %v482, 4
    %v1613 = vrot.slane %v483, 4
    %v1614 = vrot.slane %v484, 4
    %v1619 = vunpack.c.l.b16 %v1278
    %v1620 = vunpack.c.l.b16 %v1279
    %v1621 = vunpack.c.l.b16 %v1280
    %v1622 = vunpack.c.l.b16 %v1281
    %v1623 = vpack.c.b16 %v1620, %v1619
    %v1624 = vpack.c.b16 %v1622, %v1621
    %v1625 = vunpack.c.l.b16 %v1611
    %v1626 = vunpack.c.l.b16 %v1612
    %v1627 = vunpack.c.l.b16 %v1613
    %v1628 = vunpack.c.l.b16 %v1614
    %v1629 = vpack.c.b16 %v1626, %v1625
    %v1630 = vpack.c.b16 %v1628, %v1627
    %v1634 = vsel %vm897, %v1623, 0
    %v1637 = vsel %vm897, %v1624, 0
    %1639 = vmatpush.bf16.msra.mxu0 0
    %1640 = vmatpush.bf16.msra.mxu0 0
    %1641 = vmatpush.bf16.msra.mxu0 0
    %1642 = vmatpush.bf16.msra.mxu0 0
    %1643 = vmatpush.bf16.msra.mxu0 0
    %1644 = vmatpush.bf16.msra.mxu0 0
    %1645 = vmatpush.bf16.msra.mxu0 %v1630
    %1646 = vmatpush.bf16.msra.mxu0 %v1629
    %1647 = vmatmul.bf16.gmra.mxu0 %v1634
    %v1648 = vpop.f32.mrf.mxu0
    %v1649 = vadd.f32 0.0, %v1648
    %v1650 = vpop.f32.mrf.mxu0
    %v1651 = vadd.f32 0.0, %v1650
    %1652 = vmatmul.bf16.gmra.mxu0 %v1637
    %v1653 = vpop.f32.mrf.mxu0
    %v1654 = vadd.f32 0.0, %v1653
    %v1655 = vpop.f32.mrf.mxu0
    %v1656 = vadd.f32 0.0, %v1655
    %1657 = vdwg.mxu0
    %v1658 = vpack.c.bf16 %v1320, %v1320
    %v1659 = vpack.c.bf16 %v1322, %v1322
    %v1660 = vpack.c.bf16 %v1325, %v1325
    %v1661 = vpack.c.bf16 %v1327, %v1327
    %v1662 = vpack.c.bf16 %v1367, %v1367
    %v1663 = vpack.c.bf16 %v1369, %v1369
    %v1664 = vpack.c.bf16 %v1372, %v1372
    %v1665 = vpack.c.bf16 %v1374, %v1374
    %v1666 = vpack.c.bf16 %v1414, %v1414
    %v1667 = vpack.c.bf16 %v1416, %v1416
    %v1668 = vpack.c.bf16 %v1419, %v1419
    %v1669 = vpack.c.bf16 %v1421, %v1421
    %v1670 = vpack.c.bf16 %v1461, %v1461
    %v1671 = vpack.c.bf16 %v1463, %v1463
    %v1672 = vpack.c.bf16 %v1466, %v1466
    %v1673 = vpack.c.bf16 %v1468, %v1468
    %v1674 = vpack.c.bf16 %v1508, %v1508
    %v1675 = vpack.c.bf16 %v1510, %v1510
    %v1676 = vpack.c.bf16 %v1513, %v1513
    %v1677 = vpack.c.bf16 %v1515, %v1515
    %v1678 = vpack.c.bf16 %v1555, %v1555
    %v1679 = vpack.c.bf16 %v1557, %v1557
    %v1680 = vpack.c.bf16 %v1560, %v1560
    %v1681 = vpack.c.bf16 %v1562, %v1562
    %v1682 = vpack.c.bf16 %v1602, %v1602
    %v1683 = vpack.c.bf16 %v1604, %v1604
    %v1684 = vpack.c.bf16 %v1607, %v1607
    %v1685 = vpack.c.bf16 %v1609, %v1609
    %v1686 = vpack.c.bf16 %v1649, %v1649
    %v1687 = vpack.c.bf16 %v1651, %v1651
    %v1688 = vpack.c.bf16 %v1654, %v1654
    %v1689 = vpack.c.bf16 %v1656, %v1656
    %vm1690 = vcmask 125952
    %1691 = vst.msk [vmem:[#allocation2] sm:$0xf] %vm1690, %v1658
    %1692 = vst.msk [vmem:[#allocation2 + $0x4] sm:$0xf] %vm1690, %v1659
    %1693 = vst.msk [vmem:[#allocation2 + $0x8] sm:$0xf] %vm1690, %v1660
    %1694 = vst.msk [vmem:[#allocation2 + $0xc] sm:$0xf] %vm1690, %v1661
    %1695 = vst.msk [vmem:[#allocation2 + $0x10] sm:$0xf] %vm1690, %v1662
    %1696 = vst.msk [vmem:[#allocation2 + $0x14] sm:$0xf] %vm1690, %v1663
    %1697 = vst.msk [vmem:[#allocation2 + $0x18] sm:$0xf] %vm1690, %v1664
    %1698 = vst.msk [vmem:[#allocation2 + $0x1c] sm:$0xf] %vm1690, %v1665
    %1699 = vst.msk [vmem:[#allocation2 + $0x20] sm:$0xf] %vm1690, %v1666
    %1700 = vst.msk [vmem:[#allocation2 + $0x24] sm:$0xf] %vm1690, %v1667
    %1701 = vst.msk [vmem:[#allocation2 + $0x28] sm:$0xf] %vm1690, %v1668
    %1702 = vst.msk [vmem:[#allocation2 + $0x2c] sm:$0xf] %vm1690, %v1669
    %1703 = vst.msk [vmem:[#allocation2 + $0x30] sm:$0xf] %vm1690, %v1670
    %1704 = vst.msk [vmem:[#allocation2 + $0x34] sm:$0xf] %vm1690, %v1671
    %1705 = vst.msk [vmem:[#allocation2 + $0x38] sm:$0xf] %vm1690, %v1672
    %1706 = vst.msk [vmem:[#allocation2 + $0x3c] sm:$0xf] %vm1690, %v1673
    %1707 = vst.msk [vmem:[#allocation2 + $0x40] sm:$0xf] %vm1690, %v1674
    %1708 = vst.msk [vmem:[#allocation2 + $0x44] sm:$0xf] %vm1690, %v1675
    %1709 = vst.msk [vmem:[#allocation2 + $0x48] sm:$0xf] %vm1690, %v1676
    %1710 = vst.msk [vmem:[#allocation2 + $0x4c] sm:$0xf] %vm1690, %v1677
    %1711 = vst.msk [vmem:[#allocation2 + $0x50] sm:$0xf] %vm1690, %v1678
    %1712 = vst.msk [vmem:[#allocation2 + $0x54] sm:$0xf] %vm1690, %v1679
    %1713 = vst.msk [vmem:[#allocation2 + $0x58] sm:$0xf] %vm1690, %v1680
    %1714 = vst.msk [vmem:[#allocation2 + $0x5c] sm:$0xf] %vm1690, %v1681
    %1715 = vst.msk [vmem:[#allocation2 + $0x60] sm:$0xf] %vm1690, %v1682
    %1716 = vst.msk [vmem:[#allocation2 + $0x64] sm:$0xf] %vm1690, %v1683
    %1717 = vst.msk [vmem:[#allocation2 + $0x68] sm:$0xf] %vm1690, %v1684
    %1718 = vst.msk [vmem:[#allocation2 + $0x6c] sm:$0xf] %vm1690, %v1685
    %1719 = vst.msk [vmem:[#allocation2 + $0x70] sm:$0xf] %vm1690, %v1686
    %1720 = vst.msk [vmem:[#allocation2 + $0x74] sm:$0xf] %vm1690, %v1687
    %1721 = vst.msk [vmem:[#allocation2 + $0x78] sm:$0xf] %vm1690, %v1688
    %1722 = vst.msk [vmem:[#allocation2 + $0x7c] sm:$0xf] %vm1690, %v1689
    %1723 = vrot.lane.b32.xlu0 %v504, 112
    %v1724 = vpop.permute.xlu0 %1723
    %1725 = vrot.lane.b32.xlu0 %v505, 112
    %v1726 = vpop.permute.xlu0 %1725
    %1727 = vrot.lane.b32.xlu0 %v504, 48
    %v1728 = vpop.permute.xlu0 %1727
    %1729 = vrot.lane.b32.xlu0 %v505, 48
    %v1730 = vpop.permute.xlu0 %1729
    %v1732 = vsel %vm510, %v1724, 0
    %v1735 = vsel %vm510, %v1726, 0
    %v1738 = vsel %vm510, %v1728, 0
    %v1741 = vsel %vm510, %v1730, 0
    %1743 = vmatpush.bf16.xpose.msra.mxu0 0
    %1744 = vmatpush.bf16.xpose.msra.mxu0 0
    %1745 = vmatpush.bf16.xpose.msra.mxu0 0
    %1746 = vmatpush.bf16.xpose.msra.mxu0 0
    %1747 = vmatpush.bf16.xpose.msra.mxu0 0
    %1748 = vmatpush.bf16.xpose.msra.mxu0 0
    %1749 = vmatpush.bf16.xpose.msra.mxu0 %v1741
    %1750 = vmatpush.bf16.xpose.msra.mxu0 %v1738
    %1751 = vmatmul.bf16.gmra.mxu0 %v1732
    %v1752 = vpop.f32.mrf.mxu0
    %v1753 = vadd.f32 0.0, %v1752
    %v1754 = vpop.f32.mrf.mxu0
    %v1755 = vadd.f32 0.0, %v1754
    %1756 = vmatmul.bf16.gmra.mxu0 %v1735
    %v1757 = vpop.f32.mrf.mxu0
    %v1758 = vadd.f32 0.0, %v1757
    %v1759 = vpop.f32.mrf.mxu0
    %v1760 = vadd.f32 0.0, %v1759
    %1761 = vdwg.mxu0
    %1762 = vrot.lane.b32.xlu0 %v550, 112
    %v1763 = vpop.permute.xlu0 %1762
    %1764 = vrot.lane.b32.xlu0 %v551, 112
    %v1765 = vpop.permute.xlu0 %1764
    %1766 = vrot.lane.b32.xlu0 %v550, 48
    %v1767 = vpop.permute.xlu0 %1766
    %1768 = vrot.lane.b32.xlu0 %v551, 48
    %v1769 = vpop.permute.xlu0 %1768
    %v1771 = vsel %vm510, %v1763, 0
    %v1774 = vsel %vm510, %v1765, 0
    %v1777 = vsel %vm510, %v1767, 0
    %v1780 = vsel %vm510, %v1769, 0
    %1782 = vmatpush.bf16.xpose.msra.mxu0 0
    %1783 = vmatpush.bf16.xpose.msra.mxu0 0
    %1784 = vmatpush.bf16.xpose.msra.mxu0 0
    %1785 = vmatpush.bf16.xpose.msra.mxu0 0
    %1786 = vmatpush.bf16.xpose.msra.mxu0 0
    %1787 = vmatpush.bf16.xpose.msra.mxu0 0
    %1788 = vmatpush.bf16.xpose.msra.mxu0 %v1780
    %1789 = vmatpush.bf16.xpose.msra.mxu0 %v1777
    %1790 = vmatmul.bf16.gmra.mxu0 %v1771
    %v1791 = vpop.f32.mrf.mxu0
    %v1792 = vadd.f32 0.0, %v1791
    %v1793 = vpop.f32.mrf.mxu0
    %v1794 = vadd.f32 0.0, %v1793
    %1795 = vmatmul.bf16.gmra.mxu0 %v1774
    %v1796 = vpop.f32.mrf.mxu0
    %v1797 = vadd.f32 0.0, %v1796
    %v1798 = vpop.f32.mrf.mxu0
    %v1799 = vadd.f32 0.0, %v1798
    %1800 = vdwg.mxu0
    %1801 = vrot.lane.b32.xlu0 %v595, 112
    %v1802 = vpop.permute.xlu0 %1801
    %1803 = vrot.lane.b32.xlu0 %v596, 112
    %v1804 = vpop.permute.xlu0 %1803
    %1805 = vrot.lane.b32.xlu0 %v595, 48
    %v1806 = vpop.permute.xlu0 %1805
    %1807 = vrot.lane.b32.xlu0 %v596, 48
    %v1808 = vpop.permute.xlu0 %1807
    %v1810 = vsel %vm510, %v1802, 0
    %v1813 = vsel %vm510, %v1804, 0
    %v1816 = vsel %vm510, %v1806, 0
    %v1819 = vsel %vm510, %v1808, 0
    %1821 = vmatpush.bf16.xpose.msra.mxu0 0
    %1822 = vmatpush.bf16.xpose.msra.mxu0 0
    %1823 = vmatpush.bf16.xpose.msra.mxu0 0
    %1824 = vmatpush.bf16.xpose.msra.mxu0 0
    %1825 = vmatpush.bf16.xpose.msra.mxu0 0
    %1826 = vmatpush.bf16.xpose.msra.mxu0 0
    %1827 = vmatpush.bf16.xpose.msra.mxu0 %v1819
    %1828 = vmatpush.bf16.xpose.msra.mxu0 %v1816
    %1829 = vmatmul.bf16.gmra.mxu0 %v1810
    %v1830 = vpop.f32.mrf.mxu0
    %v1831 = vadd.f32 0.0, %v1830
    %v1832 = vpop.f32.mrf.mxu0
    %v1833 = vadd.f32 0.0, %v1832
    %1834 = vmatmul.bf16.gmra.mxu0 %v1813
    %v1835 = vpop.f32.mrf.mxu0
    %v1836 = vadd.f32 0.0, %v1835
    %v1837 = vpop.f32.mrf.mxu0
    %v1838 = vadd.f32 0.0, %v1837
    %1839 = vdwg.mxu0
    %1840 = vrot.lane.b32.xlu0 %v640, 112
    %v1841 = vpop.permute.xlu0 %1840
    %1842 = vrot.lane.b32.xlu0 %v641, 112
    %v1843 = vpop.permute.xlu0 %1842
    %1844 = vrot.lane.b32.xlu0 %v640, 48
    %v1845 = vpop.permute.xlu0 %1844
    %1846 = vrot.lane.b32.xlu0 %v641, 48
    %v1847 = vpop.permute.xlu0 %1846
    %v1849 = vsel %vm510, %v1841, 0
    %v1852 = vsel %vm510, %v1843, 0
    %v1855 = vsel %vm510, %v1845, 0
    %v1858 = vsel %vm510, %v1847, 0
    %1860 = vmatpush.bf16.xpose.msra.mxu0 0
    %1861 = vmatpush.bf16.xpose.msra.mxu0 0
    %1862 = vmatpush.bf16.xpose.msra.mxu0 0
    %1863 = vmatpush.bf16.xpose.msra.mxu0 0
    %1864 = vmatpush.bf16.xpose.msra.mxu0 0
    %1865 = vmatpush.bf16.xpose.msra.mxu0 0
    %1866 = vmatpush.bf16.xpose.msra.mxu0 %v1858
    %1867 = vmatpush.bf16.xpose.msra.mxu0 %v1855
    %1868 = vmatmul.bf16.gmra.mxu0 %v1849
    %v1869 = vpop.f32.mrf.mxu0
    %v1870 = vadd.f32 0.0, %v1869
    %v1871 = vpop.f32.mrf.mxu0
    %v1872 = vadd.f32 0.0, %v1871
    %1873 = vmatmul.bf16.gmra.mxu0 %v1852
    %v1874 = vpop.f32.mrf.mxu0
    %v1875 = vadd.f32 0.0, %v1874
    %v1876 = vpop.f32.mrf.mxu0
    %v1877 = vadd.f32 0.0, %v1876
    %1878 = vdwg.mxu0
    %1879 = vrot.lane.b32.xlu0 %v685, 112
    %v1880 = vpop.permute.xlu0 %1879
    %1881 = vrot.lane.b32.xlu0 %v686, 112
    %v1882 = vpop.permute.xlu0 %1881
    %1883 = vrot.lane.b32.xlu0 %v685, 48
    %v1884 = vpop.permute.xlu0 %1883
    %1885 = vrot.lane.b32.xlu0 %v686, 48
    %v1886 = vpop.permute.xlu0 %1885
    %v1888 = vsel %vm510, %v1880, 0
    %v1891 = vsel %vm510, %v1882, 0
    %v1894 = vsel %vm510, %v1884, 0
    %v1897 = vsel %vm510, %v1886, 0
    %1899 = vmatpush.bf16.xpose.msra.mxu0 0
    %1900 = vmatpush.bf16.xpose.msra.mxu0 0
    %1901 = vmatpush.bf16.xpose.msra.mxu0 0
    %1902 = vmatpush.bf16.xpose.msra.mxu0 0
    %1903 = vmatpush.bf16.xpose.msra.mxu0 0
    %1904 = vmatpush.bf16.xpose.msra.mxu0 0
    %1905 = vmatpush.bf16.xpose.msra.mxu0 %v1897
    %1906 = vmatpush.bf16.xpose.msra.mxu0 %v1894
    %1907 = vmatmul.bf16.gmra.mxu0 %v1888
    %v1908 = vpop.f32.mrf.mxu0
    %v1909 = vadd.f32 0.0, %v1908
    %v1910 = vpop.f32.mrf.mxu0
    %v1911 = vadd.f32 0.0, %v1910
    %1912 = vmatmul.bf16.gmra.mxu0 %v1891
    %v1913 = vpop.f32.mrf.mxu0
    %v1914 = vadd.f32 0.0, %v1913
    %v1915 = vpop.f32.mrf.mxu0
    %v1916 = vadd.f32 0.0, %v1915
    %1917 = vdwg.mxu0
    %1918 = vrot.lane.b32.xlu0 %v730, 112
    %v1919 = vpop.permute.xlu0 %1918
    %1920 = vrot.lane.b32.xlu0 %v731, 112
    %v1921 = vpop.permute.xlu0 %1920
    %1922 = vrot.lane.b32.xlu0 %v730, 48
    %v1923 = vpop.permute.xlu0 %1922
    %1924 = vrot.lane.b32.xlu0 %v731, 48
    %v1925 = vpop.permute.xlu0 %1924
    %v1927 = vsel %vm510, %v1919, 0
    %v1930 = vsel %vm510, %v1921, 0
    %v1933 = vsel %vm510, %v1923, 0
    %v1936 = vsel %vm510, %v1925, 0
    %1938 = vmatpush.bf16.xpose.msra.mxu0 0
    %1939 = vmatpush.bf16.xpose.msra.mxu0 0
    %1940 = vmatpush.bf16.xpose.msra.mxu0 0
    %1941 = vmatpush.bf16.xpose.msra.mxu0 0
    %1942 = vmatpush.bf16.xpose.msra.mxu0 0
    %1943 = vmatpush.bf16.xpose.msra.mxu0 0
    %1944 = vmatpush.bf16.xpose.msra.mxu0 %v1936
    %1945 = vmatpush.bf16.xpose.msra.mxu0 %v1933
    %1946 = vmatmul.bf16.gmra.mxu0 %v1927
    %v1947 = vpop.f32.mrf.mxu0
    %v1948 = vadd.f32 0.0, %v1947
    %v1949 = vpop.f32.mrf.mxu0
    %v1950 = vadd.f32 0.0, %v1949
    %1951 = vmatmul.bf16.gmra.mxu0 %v1930
    %v1952 = vpop.f32.mrf.mxu0
    %v1953 = vadd.f32 0.0, %v1952
    %v1954 = vpop.f32.mrf.mxu0
    %v1955 = vadd.f32 0.0, %v1954
    %1956 = vdwg.mxu0
    %1957 = vrot.lane.b32.xlu0 %v775, 112
    %v1958 = vpop.permute.xlu0 %1957
    %1959 = vrot.lane.b32.xlu0 %v776, 112
    %v1960 = vpop.permute.xlu0 %1959
    %1961 = vrot.lane.b32.xlu0 %v775, 48
    %v1962 = vpop.permute.xlu0 %1961
    %1963 = vrot.lane.b32.xlu0 %v776, 48
    %v1964 = vpop.permute.xlu0 %1963
    %v1966 = vsel %vm510, %v1958, 0
    %v1969 = vsel %vm510, %v1960, 0
    %v1972 = vsel %vm510, %v1962, 0
    %v1975 = vsel %vm510, %v1964, 0
    %1977 = vmatpush.bf16.xpose.msra.mxu0 0
    %1978 = vmatpush.bf16.xpose.msra.mxu0 0
    %1979 = vmatpush.bf16.xpose.msra.mxu0 0
    %1980 = vmatpush.bf16.xpose.msra.mxu0 0
    %1981 = vmatpush.bf16.xpose.msra.mxu0 0
    %1982 = vmatpush.bf16.xpose.msra.mxu0 0
    %1983 = vmatpush.bf16.xpose.msra.mxu0 %v1975
    %1984 = vmatpush.bf16.xpose.msra.mxu0 %v1972
    %1985 = vmatmul.bf16.gmra.mxu0 %v1966
    %v1986 = vpop.f32.mrf.mxu0
    %v1987 = vadd.f32 0.0, %v1986
    %v1988 = vpop.f32.mrf.mxu0
    %v1989 = vadd.f32 0.0, %v1988
    %1990 = vmatmul.bf16.gmra.mxu0 %v1969
    %v1991 = vpop.f32.mrf.mxu0
    %v1992 = vadd.f32 0.0, %v1991
    %v1993 = vpop.f32.mrf.mxu0
    %v1994 = vadd.f32 0.0, %v1993
    %1995 = vdwg.mxu0
    %1996 = vrot.lane.b32.xlu0 %v820, 112
    %v1997 = vpop.permute.xlu0 %1996
    %1998 = vrot.lane.b32.xlu0 %v821, 112
    %v1999 = vpop.permute.xlu0 %1998
    %2000 = vrot.lane.b32.xlu0 %v820, 48
    %v2001 = vpop.permute.xlu0 %2000
    %2002 = vrot.lane.b32.xlu0 %v821, 48
    %v2003 = vpop.permute.xlu0 %2002
    %v2005 = vsel %vm510, %v1997, 0
    %v2008 = vsel %vm510, %v1999, 0
    %v2011 = vsel %vm510, %v2001, 0
    %v2014 = vsel %vm510, %v2003, 0
    %2016 = vmatpush.bf16.xpose.msra.mxu0 0
    %2017 = vmatpush.bf16.xpose.msra.mxu0 0
    %2018 = vmatpush.bf16.xpose.msra.mxu0 0
    %2019 = vmatpush.bf16.xpose.msra.mxu0 0
    %2020 = vmatpush.bf16.xpose.msra.mxu0 0
    %2021 = vmatpush.bf16.xpose.msra.mxu0 0
    %2022 = vmatpush.bf16.xpose.msra.mxu0 %v2014
    %2023 = vmatpush.bf16.xpose.msra.mxu0 %v2011
    %2024 = vmatmul.bf16.gmra.mxu0 %v2005
    %v2025 = vpop.f32.mrf.mxu0
    %v2026 = vadd.f32 0.0, %v2025
    %v2027 = vpop.f32.mrf.mxu0
    %v2028 = vadd.f32 0.0, %v2027
    %2029 = vmatmul.bf16.gmra.mxu0 %v2008
    %v2030 = vpop.f32.mrf.mxu0
    %v2031 = vadd.f32 0.0, %v2030
    %v2032 = vpop.f32.mrf.mxu0
    %v2033 = vadd.f32 0.0, %v2032
    %2034 = vdwg.mxu0
    %v2035 = vsel %vm861, %v1753, -1e+30
    %v2036 = vsel %vm862, %v1755, -1e+30
    %v2037 = vsel %vm863, %v1758, -1e+30
    %v2038 = vsel %vm864, %v1760, -1e+30
    %v2039 = vsel %vm861, %v1792, -1e+30
    %v2040 = vsel %vm862, %v1794, -1e+30
    %v2041 = vsel %vm863, %v1797, -1e+30
    %v2042 = vsel %vm864, %v1799, -1e+30
    %v2043 = vsel %vm861, %v1831, -1e+30
    %v2044 = vsel %vm862, %v1833, -1e+30
    %v2045 = vsel %vm863, %v1836, -1e+30
    %v2046 = vsel %vm864, %v1838, -1e+30
    %v2047 = vsel %vm861, %v1870, -1e+30
    %v2048 = vsel %vm862, %v1872, -1e+30
    %v2049 = vsel %vm863, %v1875, -1e+30
    %v2050 = vsel %vm864, %v1877, -1e+30
    %v2051 = vsel %vm861, %v1909, -1e+30
    %v2052 = vsel %vm862, %v1911, -1e+30
    %v2053 = vsel %vm863, %v1914, -1e+30
    %v2054 = vsel %vm864, %v1916, -1e+30
    %v2055 = vsel %vm861, %v1948, -1e+30
    %v2056 = vsel %vm862, %v1950, -1e+30
    %v2057 = vsel %vm863, %v1953, -1e+30
    %v2058 = vsel %vm864, %v1955, -1e+30
    %v2059 = vsel %vm861, %v1987, -1e+30
    %v2060 = vsel %vm862, %v1989, -1e+30
    %v2061 = vsel %vm863, %v1992, -1e+30
    %v2062 = vsel %vm864, %v1994, -1e+30
    %v2063 = vsel %vm861, %v2026, -1e+30
    %v2064 = vsel %vm862, %v2028, -1e+30
    %v2065 = vsel %vm863, %v2031, -1e+30
    %v2066 = vsel %vm864, %v2033, -1e+30
    %v2067 = vsel %vm897, %v2035, -inf
    %2068 = vmax.xlane.f32.xlu0 %v2067
    %v2069 = vpop.xlane.xlu0 %2068
    %v2070 = vsel %vm897, %v2036, -inf
    %2071 = vmax.xlane.f32.xlu0 %v2070
    %v2072 = vpop.xlane.xlu0 %2071
    %v2073 = vsel %vm897, %v2037, -inf
    %2074 = vmax.xlane.f32.xlu0 %v2073
    %v2075 = vpop.xlane.xlu0 %2074
    %v2076 = vsel %vm897, %v2038, -inf
    %2077 = vmax.xlane.f32.xlu0 %v2076
    %v2078 = vpop.xlane.xlu0 %2077
    %v2079 = vsel %vm897, %v2039, -inf
    %2080 = vmax.xlane.f32.xlu0 %v2079
    %v2081 = vpop.xlane.xlu0 %2080
    %v2082 = vsel %vm897, %v2040, -inf
    %2083 = vmax.xlane.f32.xlu0 %v2082
    %v2084 = vpop.xlane.xlu0 %2083
    %v2085 = vsel %vm897, %v2041, -inf
    %2086 = vmax.xlane.f32.xlu0 %v2085
    %v2087 = vpop.xlane.xlu0 %2086
    %v2088 = vsel %vm897, %v2042, -inf
    %2089 = vmax.xlane.f32.xlu0 %v2088
    %v2090 = vpop.xlane.xlu0 %2089
    %v2091 = vsel %vm897, %v2043, -inf
    %2092 = vmax.xlane.f32.xlu0 %v2091
    %v2093 = vpop.xlane.xlu0 %2092
    %v2094 = vsel %vm897, %v2044, -inf
    %2095 = vmax.xlane.f32.xlu0 %v2094
    %v2096 = vpop.xlane.xlu0 %2095
    %v2097 = vsel %vm897, %v2045, -inf
    %2098 = vmax.xlane.f32.xlu0 %v2097
    %v2099 = vpop.xlane.xlu0 %2098
    %v2100 = vsel %vm897, %v2046, -inf
    %2101 = vmax.xlane.f32.xlu0 %v2100
    %v2102 = vpop.xlane.xlu0 %2101
    %v2103 = vsel %vm897, %v2047, -inf
    %2104 = vmax.xlane.f32.xlu0 %v2103
    %v2105 = vpop.xlane.xlu0 %2104
    %v2106 = vsel %vm897, %v2048, -inf
    %2107 = vmax.xlane.f32.xlu0 %v2106
    %v2108 = vpop.xlane.xlu0 %2107
    %v2109 = vsel %vm897, %v2049, -inf
    %2110 = vmax.xlane.f32.xlu0 %v2109
    %v2111 = vpop.xlane.xlu0 %2110
    %v2112 = vsel %vm897, %v2050, -inf
    %2113 = vmax.xlane.f32.xlu0 %v2112
    %v2114 = vpop.xlane.xlu0 %2113
    %v2115 = vsel %vm897, %v2051, -inf
    %2116 = vmax.xlane.f32.xlu0 %v2115
    %v2117 = vpop.xlane.xlu0 %2116
    %v2118 = vsel %vm897, %v2052, -inf
    %2119 = vmax.xlane.f32.xlu0 %v2118
    %v2120 = vpop.xlane.xlu0 %2119
    %v2121 = vsel %vm897, %v2053, -inf
    %2122 = vmax.xlane.f32.xlu0 %v2121
    %v2123 = vpop.xlane.xlu0 %2122
    %v2124 = vsel %vm897, %v2054, -inf
    %2125 = vmax.xlane.f32.xlu0 %v2124
    %v2126 = vpop.xlane.xlu0 %2125
    %v2127 = vsel %vm897, %v2055, -inf
    %2128 = vmax.xlane.f32.xlu0 %v2127
    %v2129 = vpop.xlane.xlu0 %2128
    %v2130 = vsel %vm897, %v2056, -inf
    %2131 = vmax.xlane.f32.xlu0 %v2130
    %v2132 = vpop.xlane.xlu0 %2131
    %v2133 = vsel %vm897, %v2057, -inf
    %2134 = vmax.xlane.f32.xlu0 %v2133
    %v2135 = vpop.xlane.xlu0 %2134
    %v2136 = vsel %vm897, %v2058, -inf
    %2137 = vmax.xlane.f32.xlu0 %v2136
    %v2138 = vpop.xlane.xlu0 %2137
    %v2139 = vsel %vm897, %v2059, -inf
    %2140 = vmax.xlane.f32.xlu0 %v2139
    %v2141 = vpop.xlane.xlu0 %2140
    %v2142 = vsel %vm897, %v2060, -inf
    %2143 = vmax.xlane.f32.xlu0 %v2142
    %v2144 = vpop.xlane.xlu0 %2143
    %v2145 = vsel %vm897, %v2061, -inf
    %2146 = vmax.xlane.f32.xlu0 %v2145
    %v2147 = vpop.xlane.xlu0 %2146
    %v2148 = vsel %vm897, %v2062, -inf
    %2149 = vmax.xlane.f32.xlu0 %v2148
    %v2150 = vpop.xlane.xlu0 %2149
    %v2151 = vsel %vm897, %v2063, -inf
    %2152 = vmax.xlane.f32.xlu0 %v2151
    %v2153 = vpop.xlane.xlu0 %2152
    %v2154 = vsel %vm897, %v2064, -inf
    %2155 = vmax.xlane.f32.xlu0 %v2154
    %v2156 = vpop.xlane.xlu0 %2155
    %v2157 = vsel %vm897, %v2065, -inf
    %2158 = vmax.xlane.f32.xlu0 %v2157
    %v2159 = vpop.xlane.xlu0 %2158
    %v2160 = vsel %vm897, %v2066, -inf
    %2161 = vmax.xlane.f32.xlu0 %v2160
    %v2162 = vpop.xlane.xlu0 %2161
    %v2163 = vsub.f32 %v2035, %v2069
    %v2164 = vsub.f32 %v2036, %v2072
    %v2165 = vsub.f32 %v2037, %v2075
    %v2166 = vsub.f32 %v2038, %v2078
    %v2167 = vsub.f32 %v2039, %v2081
    %v2168 = vsub.f32 %v2040, %v2084
    %v2169 = vsub.f32 %v2041, %v2087
    %v2170 = vsub.f32 %v2042, %v2090
    %v2171 = vsub.f32 %v2043, %v2093
    %v2172 = vsub.f32 %v2044, %v2096
    %v2173 = vsub.f32 %v2045, %v2099
    %v2174 = vsub.f32 %v2046, %v2102
    %v2175 = vsub.f32 %v2047, %v2105
    %v2176 = vsub.f32 %v2048, %v2108
    %v2177 = vsub.f32 %v2049, %v2111
    %v2178 = vsub.f32 %v2050, %v2114
    %v2179 = vsub.f32 %v2051, %v2117
    %v2180 = vsub.f32 %v2052, %v2120
    %v2181 = vsub.f32 %v2053, %v2123
    %v2182 = vsub.f32 %v2054, %v2126
    %v2183 = vsub.f32 %v2055, %v2129
    %v2184 = vsub.f32 %v2056, %v2132
    %v2185 = vsub.f32 %v2057, %v2135
    %v2186 = vsub.f32 %v2058, %v2138
    %v2187 = vsub.f32 %v2059, %v2141
    %v2188 = vsub.f32 %v2060, %v2144
    %v2189 = vsub.f32 %v2061, %v2147
    %v2190 = vsub.f32 %v2062, %v2150
    %v2191 = vsub.f32 %v2063, %v2153
    %v2192 = vsub.f32 %v2064, %v2156
    %v2193 = vsub.f32 %v2065, %v2159
    %v2194 = vsub.f32 %v2066, %v2162
    %v2195 = vmul.f32 %v2163, 1.442695
    %v2196 = vpow.pop %v2195
    %v2197 = vmul.f32 %v2164, 1.442695
    %v2198 = vpow.pop %v2197
    %v2199 = vmul.f32 %v2165, 1.442695
    %v2200 = vpow.pop %v2199
    %v2201 = vmul.f32 %v2166, 1.442695
    %v2202 = vpow.pop %v2201
    %v2203 = vmul.f32 %v2167, 1.442695
    %v2204 = vpow.pop %v2203
    %v2205 = vmul.f32 %v2168, 1.442695
    %v2206 = vpow.pop %v2205
    %v2207 = vmul.f32 %v2169, 1.442695
    %v2208 = vpow.pop %v2207
    %v2209 = vmul.f32 %v2170, 1.442695
    %v2210 = vpow.pop %v2209
    %v2211 = vmul.f32 %v2171, 1.442695
    %v2212 = vpow.pop %v2211
    %v2213 = vmul.f32 %v2172, 1.442695
    %v2214 = vpow.pop %v2213
    %v2215 = vmul.f32 %v2173, 1.442695
    %v2216 = vpow.pop %v2215
    %v2217 = vmul.f32 %v2174, 1.442695
    %v2218 = vpow.pop %v2217
    %v2219 = vmul.f32 %v2175, 1.442695
    %v2220 = vpow.pop %v2219
    %v2221 = vmul.f32 %v2176, 1.442695
    %v2222 = vpow.pop %v2221
    %v2223 = vmul.f32 %v2177, 1.442695
    %v2224 = vpow.pop %v2223
    %v2225 = vmul.f32 %v2178, 1.442695
    %v2226 = vpow.pop %v2225
    %v2227 = vmul.f32 %v2179, 1.442695
    %v2228 = vpow.pop %v2227
    %v2229 = vmul.f32 %v2180, 1.442695
    %v2230 = vpow.pop %v2229
    %v2231 = vmul.f32 %v2181, 1.442695
    %v2232 = vpow.pop %v2231
    %v2233 = vmul.f32 %v2182, 1.442695
    %v2234 = vpow.pop %v2233
    %v2235 = vmul.f32 %v2183, 1.442695
    %v2236 = vpow.pop %v2235
    %v2237 = vmul.f32 %v2184, 1.442695
    %v2238 = vpow.pop %v2237
    %v2239 = vmul.f32 %v2185, 1.442695
    %v2240 = vpow.pop %v2239
    %v2241 = vmul.f32 %v2186, 1.442695
    %v2242 = vpow.pop %v2241
    %v2243 = vmul.f32 %v2187, 1.442695
    %v2244 = vpow.pop %v2243
    %v2245 = vmul.f32 %v2188, 1.442695
    %v2246 = vpow.pop %v2245
    %v2247 = vmul.f32 %v2189, 1.442695
    %v2248 = vpow.pop %v2247
    %v2249 = vmul.f32 %v2190, 1.442695
    %v2250 = vpow.pop %v2249
    %v2251 = vmul.f32 %v2191, 1.442695
    %v2252 = vpow.pop %v2251
    %v2253 = vmul.f32 %v2192, 1.442695
    %v2254 = vpow.pop %v2253
    %v2255 = vmul.f32 %v2193, 1.442695
    %v2256 = vpow.pop %v2255
    %v2257 = vmul.f32 %v2194, 1.442695
    %v2258 = vpow.pop %v2257
    %v2259 = vsel %vm897, %v2196, 0.0
    %2260 = vadd.xlane.f32.xlu0 %v2259
    %v2261 = vpop.xlane.xlu0 %2260
    %v2262 = vsel %vm897, %v2198, 0.0
    %2263 = vadd.xlane.f32.xlu0 %v2262
    %v2264 = vpop.xlane.xlu0 %2263
    %v2265 = vsel %vm897, %v2200, 0.0
    %2266 = vadd.xlane.f32.xlu0 %v2265
    %v2267 = vpop.xlane.xlu0 %2266
    %v2268 = vsel %vm897, %v2202, 0.0
    %2269 = vadd.xlane.f32.xlu0 %v2268
    %v2270 = vpop.xlane.xlu0 %2269
    %v2271 = vsel %vm897, %v2204, 0.0
    %2272 = vadd.xlane.f32.xlu0 %v2271
    %v2273 = vpop.xlane.xlu0 %2272
    %v2274 = vsel %vm897, %v2206, 0.0
    %2275 = vadd.xlane.f32.xlu0 %v2274
    %v2276 = vpop.xlane.xlu0 %2275
    %v2277 = vsel %vm897, %v2208, 0.0
    %2278 = vadd.xlane.f32.xlu0 %v2277
    %v2279 = vpop.xlane.xlu0 %2278
    %v2280 = vsel %vm897, %v2210, 0.0
    %2281 = vadd.xlane.f32.xlu0 %v2280
    %v2282 = vpop.xlane.xlu0 %2281
    %v2283 = vsel %vm897, %v2212, 0.0
    %2284 = vadd.xlane.f32.xlu0 %v2283
    %v2285 = vpop.xlane.xlu0 %2284
    %v2286 = vsel %vm897, %v2214, 0.0
    %2287 = vadd.xlane.f32.xlu0 %v2286
    %v2288 = vpop.xlane.xlu0 %2287
    %v2289 = vsel %vm897, %v2216, 0.0
    %2290 = vadd.xlane.f32.xlu0 %v2289
    %v2291 = vpop.xlane.xlu0 %2290
    %v2292 = vsel %vm897, %v2218, 0.0
    %2293 = vadd.xlane.f32.xlu0 %v2292
    %v2294 = vpop.xlane.xlu0 %2293
    %v2295 = vsel %vm897, %v2220, 0.0
    %2296 = vadd.xlane.f32.xlu0 %v2295
    %v2297 = vpop.xlane.xlu0 %2296
    %v2298 = vsel %vm897, %v2222, 0.0
    %2299 = vadd.xlane.f32.xlu0 %v2298
    %v2300 = vpop.xlane.xlu0 %2299
    %v2301 = vsel %vm897, %v2224, 0.0
    %2302 = vadd.xlane.f32.xlu0 %v2301
    %v2303 = vpop.xlane.xlu0 %2302
    %v2304 = vsel %vm897, %v2226, 0.0
    %2305 = vadd.xlane.f32.xlu0 %v2304
    %v2306 = vpop.xlane.xlu0 %2305
    %v2307 = vsel %vm897, %v2228, 0.0
    %2308 = vadd.xlane.f32.xlu0 %v2307
    %v2309 = vpop.xlane.xlu0 %2308
    %v2310 = vsel %vm897, %v2230, 0.0
    %2311 = vadd.xlane.f32.xlu0 %v2310
    %v2312 = vpop.xlane.xlu0 %2311
    %v2313 = vsel %vm897, %v2232, 0.0
    %2314 = vadd.xlane.f32.xlu0 %v2313
    %v2315 = vpop.xlane.xlu0 %2314
    %v2316 = vsel %vm897, %v2234, 0.0
    %2317 = vadd.xlane.f32.xlu0 %v2316
    %v2318 = vpop.xlane.xlu0 %2317
    %v2319 = vsel %vm897, %v2236, 0.0
    %2320 = vadd.xlane.f32.xlu0 %v2319
    %v2321 = vpop.xlane.xlu0 %2320
    %v2322 = vsel %vm897, %v2238, 0.0
    %2323 = vadd.xlane.f32.xlu0 %v2322
    %v2324 = vpop.xlane.xlu0 %2323
    %v2325 = vsel %vm897, %v2240, 0.0
    %2326 = vadd.xlane.f32.xlu0 %v2325
    %v2327 = vpop.xlane.xlu0 %2326
    %v2328 = vsel %vm897, %v2242, 0.0
    %2329 = vadd.xlane.f32.xlu0 %v2328
    %v2330 = vpop.xlane.xlu0 %2329
    %v2331 = vsel %vm897, %v2244, 0.0
    %2332 = vadd.xlane.f32.xlu0 %v2331
    %v2333 = vpop.xlane.xlu0 %2332
    %v2334 = vsel %vm897, %v2246, 0.0
    %2335 = vadd.xlane.f32.xlu0 %v2334
    %v2336 = vpop.xlane.xlu0 %2335
    %v2337 = vsel %vm897, %v2248, 0.0
    %2338 = vadd.xlane.f32.xlu0 %v2337
    %v2339 = vpop.xlane.xlu0 %2338
    %v2340 = vsel %vm897, %v2250, 0.0
    %2341 = vadd.xlane.f32.xlu0 %v2340
    %v2342 = vpop.xlane.xlu0 %2341
    %v2343 = vsel %vm897, %v2252, 0.0
    %2344 = vadd.xlane.f32.xlu0 %v2343
    %v2345 = vpop.xlane.xlu0 %2344
    %v2346 = vsel %vm897, %v2254, 0.0
    %2347 = vadd.xlane.f32.xlu0 %v2346
    %v2348 = vpop.xlane.xlu0 %2347
    %v2349 = vsel %vm897, %v2256, 0.0
    %2350 = vadd.xlane.f32.xlu0 %v2349
    %v2351 = vpop.xlane.xlu0 %2350
    %v2352 = vsel %vm897, %v2258, 0.0
    %2353 = vadd.xlane.f32.xlu0 %v2352
    %v2354 = vpop.xlane.xlu0 %2353
    %v2355 = vrcp.pop %v2261
    %v2356 = vrcp.pop %v2264
    %v2357 = vrcp.pop %v2267
    %v2358 = vrcp.pop %v2270
    %v2359 = vrcp.pop %v2273
    %v2360 = vrcp.pop %v2276
    %v2361 = vrcp.pop %v2279
    %v2362 = vrcp.pop %v2282
    %v2363 = vrcp.pop %v2285
    %v2364 = vrcp.pop %v2288
    %v2365 = vrcp.pop %v2291
    %v2366 = vrcp.pop %v2294
    %v2367 = vrcp.pop %v2297
    %v2368 = vrcp.pop %v2300
    %v2369 = vrcp.pop %v2303
    %v2370 = vrcp.pop %v2306
    %v2371 = vrcp.pop %v2309
    %v2372 = vrcp.pop %v2312
    %v2373 = vrcp.pop %v2315
    %v2374 = vrcp.pop %v2318
    %v2375 = vrcp.pop %v2321
    %v2376 = vrcp.pop %v2324
    %v2377 = vrcp.pop %v2327
    %v2378 = vrcp.pop %v2330
    %v2379 = vrcp.pop %v2333
    %v2380 = vrcp.pop %v2336
    %v2381 = vrcp.pop %v2339
    %v2382 = vrcp.pop %v2342
    %v2383 = vrcp.pop %v2345
    %v2384 = vrcp.pop %v2348
    %v2385 = vrcp.pop %v2351
    %v2386 = vrcp.pop %v2354
    %v2387 = vmul.f32 %v2196, %v2355
    %v2388 = vmul.f32 %v2198, %v2356
    %v2389 = vmul.f32 %v2200, %v2357
    %v2390 = vmul.f32 %v2202, %v2358
    %v2391 = vmul.f32 %v2204, %v2359
    %v2392 = vmul.f32 %v2206, %v2360
    %v2393 = vmul.f32 %v2208, %v2361
    %v2394 = vmul.f32 %v2210, %v2362
    %v2395 = vmul.f32 %v2212, %v2363
    %v2396 = vmul.f32 %v2214, %v2364
    %v2397 = vmul.f32 %v2216, %v2365
    %v2398 = vmul.f32 %v2218, %v2366
    %v2399 = vmul.f32 %v2220, %v2367
    %v2400 = vmul.f32 %v2222, %v2368
    %v2401 = vmul.f32 %v2224, %v2369
    %v2402 = vmul.f32 %v2226, %v2370
    %v2403 = vmul.f32 %v2228, %v2371
    %v2404 = vmul.f32 %v2230, %v2372
    %v2405 = vmul.f32 %v2232, %v2373
    %v2406 = vmul.f32 %v2234, %v2374
    %v2407 = vmul.f32 %v2236, %v2375
    %v2408 = vmul.f32 %v2238, %v2376
    %v2409 = vmul.f32 %v2240, %v2377
    %v2410 = vmul.f32 %v2242, %v2378
    %v2411 = vmul.f32 %v2244, %v2379
    %v2412 = vmul.f32 %v2246, %v2380
    %v2413 = vmul.f32 %v2248, %v2381
    %v2414 = vmul.f32 %v2250, %v2382
    %v2415 = vmul.f32 %v2252, %v2383
    %v2416 = vmul.f32 %v2254, %v2384
    %v2417 = vmul.f32 %v2256, %v2385
    %v2418 = vmul.f32 %v2258, %v2386
    %v2419 = vpack.c.bf16 %v2387, %v2387
    %v2420 = vpack.c.bf16 %v2388, %v2388
    %v2421 = vpack.c.bf16 %v2389, %v2389
    %v2422 = vpack.c.bf16 %v2390, %v2390
    %v2423 = vpack.c.bf16 %v2391, %v2391
    %v2424 = vpack.c.bf16 %v2392, %v2392
    %v2425 = vpack.c.bf16 %v2393, %v2393
    %v2426 = vpack.c.bf16 %v2394, %v2394
    %v2427 = vpack.c.bf16 %v2395, %v2395
    %v2428 = vpack.c.bf16 %v2396, %v2396
    %v2429 = vpack.c.bf16 %v2397, %v2397
    %v2430 = vpack.c.bf16 %v2398, %v2398
    %v2431 = vpack.c.bf16 %v2399, %v2399
    %v2432 = vpack.c.bf16 %v2400, %v2400
    %v2433 = vpack.c.bf16 %v2401, %v2401
    %v2434 = vpack.c.bf16 %v2402, %v2402
    %v2435 = vpack.c.bf16 %v2403, %v2403
    %v2436 = vpack.c.bf16 %v2404, %v2404
    %v2437 = vpack.c.bf16 %v2405, %v2405
    %v2438 = vpack.c.bf16 %v2406, %v2406
    %v2439 = vpack.c.bf16 %v2407, %v2407
    %v2440 = vpack.c.bf16 %v2408, %v2408
    %v2441 = vpack.c.bf16 %v2409, %v2409
    %v2442 = vpack.c.bf16 %v2410, %v2410
    %v2443 = vpack.c.bf16 %v2411, %v2411
    %v2444 = vpack.c.bf16 %v2412, %v2412
    %v2445 = vpack.c.bf16 %v2413, %v2413
    %v2446 = vpack.c.bf16 %v2414, %v2414
    %v2447 = vpack.c.bf16 %v2415, %v2415
    %v2448 = vpack.c.bf16 %v2416, %v2416
    %v2449 = vpack.c.bf16 %v2417, %v2417
    %v2450 = vpack.c.bf16 %v2418, %v2418
    %2451 = vrot.lane.b32.xlu0 %v453, 112
    %v2452 = vpop.permute.xlu0 %2451
    %2453 = vrot.lane.b32.xlu0 %v454, 112
    %v2454 = vpop.permute.xlu0 %2453
    %2455 = vrot.lane.b32.xlu0 %v455, 112
    %v2456 = vpop.permute.xlu0 %2455
    %2457 = vrot.lane.b32.xlu0 %v456, 112
    %v2458 = vpop.permute.xlu0 %2457
    %v2459 = vrot.slane %v2452, 4
    %v2460 = vrot.slane %v2454, 4
    %v2461 = vrot.slane %v2456, 4
    %v2462 = vrot.slane %v2458, 4
    %v2467 = vunpack.c.l.b16 %v2419
    %v2468 = vunpack.c.l.b16 %v2420
    %v2469 = vunpack.c.l.b16 %v2421
    %v2470 = vunpack.c.l.b16 %v2422
    %v2471 = vpack.c.b16 %v2468, %v2467
    %v2472 = vpack.c.b16 %v2470, %v2469
    %v2473 = vunpack.c.l.b16 %v2459
    %v2474 = vunpack.c.l.b16 %v2460
    %v2475 = vunpack.c.l.b16 %v2461
    %v2476 = vunpack.c.l.b16 %v2462
    %v2477 = vpack.c.b16 %v2474, %v2473
    %v2478 = vpack.c.b16 %v2476, %v2475
    %v2482 = vsel %vm897, %v2471, 0
    %v2485 = vsel %vm897, %v2472, 0
    %2487 = vmatpush.bf16.msra.mxu0 0
    %2488 = vmatpush.bf16.msra.mxu0 0
    %2489 = vmatpush.bf16.msra.mxu0 0
    %2490 = vmatpush.bf16.msra.mxu0 0
    %2491 = vmatpush.bf16.msra.mxu0 0
    %2492 = vmatpush.bf16.msra.mxu0 0
    %2493 = vmatpush.bf16.msra.mxu0 %v2478
    %2494 = vmatpush.bf16.msra.mxu0 %v2477
    %2495 = vmatmul.bf16.gmra.mxu0 %v2482
    %v2496 = vpop.f32.mrf.mxu0
    %v2497 = vadd.f32 0.0, %v2496
    %v2498 = vpop.f32.mrf.mxu0
    %v2499 = vadd.f32 0.0, %v2498
    %2500 = vmatmul.bf16.gmra.mxu0 %v2485
    %v2501 = vpop.f32.mrf.mxu0
    %v2502 = vadd.f32 0.0, %v2501
    %v2503 = vpop.f32.mrf.mxu0
    %v2504 = vadd.f32 0.0, %v2503
    %2505 = vdwg.mxu0
    %2506 = vrot.lane.b32.xlu0 %v457, 112
    %v2507 = vpop.permute.xlu0 %2506
    %2508 = vrot.lane.b32.xlu0 %v458, 112
    %v2509 = vpop.permute.xlu0 %2508
    %2510 = vrot.lane.b32.xlu0 %v459, 112
    %v2511 = vpop.permute.xlu0 %2510
    %2512 = vrot.lane.b32.xlu0 %v460, 112
    %v2513 = vpop.permute.xlu0 %2512
    %v2514 = vrot.slane %v2507, 4
    %v2515 = vrot.slane %v2509, 4
    %v2516 = vrot.slane %v2511, 4
    %v2517 = vrot.slane %v2513, 4
    %v2522 = vunpack.c.l.b16 %v2423
    %v2523 = vunpack.c.l.b16 %v2424
    %v2524 = vunpack.c.l.b16 %v2425
    %v2525 = vunpack.c.l.b16 %v2426
    %v2526 = vpack.c.b16 %v2523, %v2522
    %v2527 = vpack.c.b16 %v2525, %v2524
    %v2528 = vunpack.c.l.b16 %v2514
    %v2529 = vunpack.c.l.b16 %v2515
    %v2530 = vunpack.c.l.b16 %v2516
    %v2531 = vunpack.c.l.b16 %v2517
    %v2532 = vpack.c.b16 %v2529, %v2528
    %v2533 = vpack.c.b16 %v2531, %v2530
    %v2537 = vsel %vm897, %v2526, 0
    %v2540 = vsel %vm897, %v2527, 0
    %2542 = vmatpush.bf16.msra.mxu0 0
    %2543 = vmatpush.bf16.msra.mxu0 0
    %2544 = vmatpush.bf16.msra.mxu0 0
    %2545 = vmatpush.bf16.msra.mxu0 0
    %2546 = vmatpush.bf16.msra.mxu0 0
    %2547 = vmatpush.bf16.msra.mxu0 0
    %2548 = vmatpush.bf16.msra.mxu0 %v2533
    %2549 = vmatpush.bf16.msra.mxu0 %v2532
    %2550 = vmatmul.bf16.gmra.mxu0 %v2537
    %v2551 = vpop.f32.mrf.mxu0
    %v2552 = vadd.f32 0.0, %v2551
    %v2553 = vpop.f32.mrf.mxu0
    %v2554 = vadd.f32 0.0, %v2553
    %2555 = vmatmul.bf16.gmra.mxu0 %v2540
    %v2556 = vpop.f32.mrf.mxu0
    %v2557 = vadd.f32 0.0, %v2556
    %v2558 = vpop.f32.mrf.mxu0
    %v2559 = vadd.f32 0.0, %v2558
    %2560 = vdwg.mxu0
    %2561 = vrot.lane.b32.xlu0 %v461, 112
    %v2562 = vpop.permute.xlu0 %2561
    %2563 = vrot.lane.b32.xlu0 %v462, 112
    %v2564 = vpop.permute.xlu0 %2563
    %2565 = vrot.lane.b32.xlu0 %v463, 112
    %v2566 = vpop.permute.xlu0 %2565
    %2567 = vrot.lane.b32.xlu0 %v464, 112
    %v2568 = vpop.permute.xlu0 %2567
    %v2569 = vrot.slane %v2562, 4
    %v2570 = vrot.slane %v2564, 4
    %v2571 = vrot.slane %v2566, 4
    %v2572 = vrot.slane %v2568, 4
    %v2577 = vunpack.c.l.b16 %v2427
    %v2578 = vunpack.c.l.b16 %v2428
    %v2579 = vunpack.c.l.b16 %v2429
    %v2580 = vunpack.c.l.b16 %v2430
    %v2581 = vpack.c.b16 %v2578, %v2577
    %v2582 = vpack.c.b16 %v2580, %v2579
    %v2583 = vunpack.c.l.b16 %v2569
    %v2584 = vunpack.c.l.b16 %v2570
    %v2585 = vunpack.c.l.b16 %v2571
    %v2586 = vunpack.c.l.b16 %v2572
    %v2587 = vpack.c.b16 %v2584, %v2583
    %v2588 = vpack.c.b16 %v2586, %v2585
    %v2592 = vsel %vm897, %v2581, 0
    %v2595 = vsel %vm897, %v2582, 0
    %2597 = vmatpush.bf16.msra.mxu0 0
    %2598 = vmatpush.bf16.msra.mxu0 0
    %2599 = vmatpush.bf16.msra.mxu0 0
    %2600 = vmatpush.bf16.msra.mxu0 0
    %2601 = vmatpush.bf16.msra.mxu0 0
    %2602 = vmatpush.bf16.msra.mxu0 0
    %2603 = vmatpush.bf16.msra.mxu0 %v2588
    %2604 = vmatpush.bf16.msra.mxu0 %v2587
    %2605 = vmatmul.bf16.gmra.mxu0 %v2592
    %v2606 = vpop.f32.mrf.mxu0
    %v2607 = vadd.f32 0.0, %v2606
    %v2608 = vpop.f32.mrf.mxu0
    %v2609 = vadd.f32 0.0, %v2608
    %2610 = vmatmul.bf16.gmra.mxu0 %v2595
    %v2611 = vpop.f32.mrf.mxu0
    %v2612 = vadd.f32 0.0, %v2611
    %v2613 = vpop.f32.mrf.mxu0
    %v2614 = vadd.f32 0.0, %v2613
    %2615 = vdwg.mxu0
    %2616 = vrot.lane.b32.xlu0 %v465, 112
    %v2617 = vpop.permute.xlu0 %2616
    %2618 = vrot.lane.b32.xlu0 %v466, 112
    %v2619 = vpop.permute.xlu0 %2618
    %2620 = vrot.lane.b32.xlu0 %v467, 112
    %v2621 = vpop.permute.xlu0 %2620
    %2622 = vrot.lane.b32.xlu0 %v468, 112
    %v2623 = vpop.permute.xlu0 %2622
    %v2624 = vrot.slane %v2617, 4
    %v2625 = vrot.slane %v2619, 4
    %v2626 = vrot.slane %v2621, 4
    %v2627 = vrot.slane %v2623, 4
    %v2632 = vunpack.c.l.b16 %v2431
    %v2633 = vunpack.c.l.b16 %v2432
    %v2634 = vunpack.c.l.b16 %v2433
    %v2635 = vunpack.c.l.b16 %v2434
    %v2636 = vpack.c.b16 %v2633, %v2632
    %v2637 = vpack.c.b16 %v2635, %v2634
    %v2638 = vunpack.c.l.b16 %v2624
    %v2639 = vunpack.c.l.b16 %v2625
    %v2640 = vunpack.c.l.b16 %v2626
    %v2641 = vunpack.c.l.b16 %v2627
    %v2642 = vpack.c.b16 %v2639, %v2638
    %v2643 = vpack.c.b16 %v2641, %v2640
    %v2647 = vsel %vm897, %v2636, 0
    %v2650 = vsel %vm897, %v2637, 0
    %2652 = vmatpush.bf16.msra.mxu0 0
    %2653 = vmatpush.bf16.msra.mxu0 0
    %2654 = vmatpush.bf16.msra.mxu0 0
    %2655 = vmatpush.bf16.msra.mxu0 0
    %2656 = vmatpush.bf16.msra.mxu0 0
    %2657 = vmatpush.bf16.msra.mxu0 0
    %2658 = vmatpush.bf16.msra.mxu0 %v2643
    %2659 = vmatpush.bf16.msra.mxu0 %v2642
    %2660 = vmatmul.bf16.gmra.mxu0 %v2647
    %v2661 = vpop.f32.mrf.mxu0
    %v2662 = vadd.f32 0.0, %v2661
    %v2663 = vpop.f32.mrf.mxu0
    %v2664 = vadd.f32 0.0, %v2663
    %2665 = vmatmul.bf16.gmra.mxu0 %v2650
    %v2666 = vpop.f32.mrf.mxu0
    %v2667 = vadd.f32 0.0, %v2666
    %v2668 = vpop.f32.mrf.mxu0
    %v2669 = vadd.f32 0.0, %v2668
    %2670 = vdwg.mxu0
    %2671 = vrot.lane.b32.xlu0 %v469, 112
    %v2672 = vpop.permute.xlu0 %2671
    %2673 = vrot.lane.b32.xlu0 %v470, 112
    %v2674 = vpop.permute.xlu0 %2673
    %2675 = vrot.lane.b32.xlu0 %v471, 112
    %v2676 = vpop.permute.xlu0 %2675
    %2677 = vrot.lane.b32.xlu0 %v472, 112
    %v2678 = vpop.permute.xlu0 %2677
    %v2679 = vrot.slane %v2672, 4
    %v2680 = vrot.slane %v2674, 4
    %v2681 = vrot.slane %v2676, 4
    %v2682 = vrot.slane %v2678, 4
    %v2687 = vunpack.c.l.b16 %v2435
    %v2688 = vunpack.c.l.b16 %v2436
    %v2689 = vunpack.c.l.b16 %v2437
    %v2690 = vunpack.c.l.b16 %v2438
    %v2691 = vpack.c.b16 %v2688, %v2687
    %v2692 = vpack.c.b16 %v2690, %v2689
    %v2693 = vunpack.c.l.b16 %v2679
    %v2694 = vunpack.c.l.b16 %v2680
    %v2695 = vunpack.c.l.b16 %v2681
    %v2696 = vunpack.c.l.b16 %v2682
    %v2697 = vpack.c.b16 %v2694, %v2693
    %v2698 = vpack.c.b16 %v2696, %v2695
    %v2702 = vsel %vm897, %v2691, 0
    %v2705 = vsel %vm897, %v2692, 0
    %2707 = vmatpush.bf16.msra.mxu0 0
    %2708 = vmatpush.bf16.msra.mxu0 0
    %2709 = vmatpush.bf16.msra.mxu0 0
    %2710 = vmatpush.bf16.msra.mxu0 0
    %2711 = vmatpush.bf16.msra.mxu0 0
    %2712 = vmatpush.bf16.msra.mxu0 0
    %2713 = vmatpush.bf16.msra.mxu0 %v2698
    %2714 = vmatpush.bf16.msra.mxu0 %v2697
    %2715 = vmatmul.bf16.gmra.mxu0 %v2702
    %v2716 = vpop.f32.mrf.mxu0
    %v2717 = vadd.f32 0.0, %v2716
    %v2718 = vpop.f32.mrf.mxu0
    %v2719 = vadd.f32 0.0, %v2718
    %2720 = vmatmul.bf16.gmra.mxu0 %v2705
    %v2721 = vpop.f32.mrf.mxu0
    %v2722 = vadd.f32 0.0, %v2721
    %v2723 = vpop.f32.mrf.mxu0
    %v2724 = vadd.f32 0.0, %v2723
    %2725 = vdwg.mxu0
    %2726 = vrot.lane.b32.xlu0 %v473, 112
    %v2727 = vpop.permute.xlu0 %2726
    %2728 = vrot.lane.b32.xlu0 %v474, 112
    %v2729 = vpop.permute.xlu0 %2728
    %2730 = vrot.lane.b32.xlu0 %v475, 112
    %v2731 = vpop.permute.xlu0 %2730
    %2732 = vrot.lane.b32.xlu0 %v476, 112
    %v2733 = vpop.permute.xlu0 %2732
    %v2734 = vrot.slane %v2727, 4
    %v2735 = vrot.slane %v2729, 4
    %v2736 = vrot.slane %v2731, 4
    %v2737 = vrot.slane %v2733, 4
    %v2742 = vunpack.c.l.b16 %v2439
    %v2743 = vunpack.c.l.b16 %v2440
    %v2744 = vunpack.c.l.b16 %v2441
    %v2745 = vunpack.c.l.b16 %v2442
    %v2746 = vpack.c.b16 %v2743, %v2742
    %v2747 = vpack.c.b16 %v2745, %v2744
    %v2748 = vunpack.c.l.b16 %v2734
    %v2749 = vunpack.c.l.b16 %v2735
    %v2750 = vunpack.c.l.b16 %v2736
    %v2751 = vunpack.c.l.b16 %v2737
    %v2752 = vpack.c.b16 %v2749, %v2748
    %v2753 = vpack.c.b16 %v2751, %v2750
    %v2757 = vsel %vm897, %v2746, 0
    %v2760 = vsel %vm897, %v2747, 0
    %2762 = vmatpush.bf16.msra.mxu0 0
    %2763 = vmatpush.bf16.msra.mxu0 0
    %2764 = vmatpush.bf16.msra.mxu0 0
    %2765 = vmatpush.bf16.msra.mxu0 0
    %2766 = vmatpush.bf16.msra.mxu0 0
    %2767 = vmatpush.bf16.msra.mxu0 0
    %2768 = vmatpush.bf16.msra.mxu0 %v2753
    %2769 = vmatpush.bf16.msra.mxu0 %v2752
    %2770 = vmatmul.bf16.gmra.mxu0 %v2757
    %v2771 = vpop.f32.mrf.mxu0
    %v2772 = vadd.f32 0.0, %v2771
    %v2773 = vpop.f32.mrf.mxu0
    %v2774 = vadd.f32 0.0, %v2773
    %2775 = vmatmul.bf16.gmra.mxu0 %v2760
    %v2776 = vpop.f32.mrf.mxu0
    %v2777 = vadd.f32 0.0, %v2776
    %v2778 = vpop.f32.mrf.mxu0
    %v2779 = vadd.f32 0.0, %v2778
    %2780 = vdwg.mxu0
    %2781 = vrot.lane.b32.xlu0 %v477, 112
    %v2782 = vpop.permute.xlu0 %2781
    %2783 = vrot.lane.b32.xlu0 %v478, 112
    %v2784 = vpop.permute.xlu0 %2783
    %2785 = vrot.lane.b32.xlu0 %v479, 112
    %v2786 = vpop.permute.xlu0 %2785
    %2787 = vrot.lane.b32.xlu0 %v480, 112
    %v2788 = vpop.permute.xlu0 %2787
    %v2789 = vrot.slane %v2782, 4
    %v2790 = vrot.slane %v2784, 4
    %v2791 = vrot.slane %v2786, 4
    %v2792 = vrot.slane %v2788, 4
    %v2797 = vunpack.c.l.b16 %v2443
    %v2798 = vunpack.c.l.b16 %v2444
    %v2799 = vunpack.c.l.b16 %v2445
    %v2800 = vunpack.c.l.b16 %v2446
    %v2801 = vpack.c.b16 %v2798, %v2797
    %v2802 = vpack.c.b16 %v2800, %v2799
    %v2803 = vunpack.c.l.b16 %v2789
    %v2804 = vunpack.c.l.b16 %v2790
    %v2805 = vunpack.c.l.b16 %v2791
    %v2806 = vunpack.c.l.b16 %v2792
    %v2807 = vpack.c.b16 %v2804, %v2803
    %v2808 = vpack.c.b16 %v2806, %v2805
    %v2812 = vsel %vm897, %v2801, 0
    %v2815 = vsel %vm897, %v2802, 0
    %2817 = vmatpush.bf16.msra.mxu0 0
    %2818 = vmatpush.bf16.msra.mxu0 0
    %2819 = vmatpush.bf16.msra.mxu0 0
    %2820 = vmatpush.bf16.msra.mxu0 0
    %2821 = vmatpush.bf16.msra.mxu0 0
    %2822 = vmatpush.bf16.msra.mxu0 0
    %2823 = vmatpush.bf16.msra.mxu0 %v2808
    %2824 = vmatpush.bf16.msra.mxu0 %v2807
    %2825 = vmatmul.bf16.gmra.mxu0 %v2812
    %v2826 = vpop.f32.mrf.mxu0
    %v2827 = vadd.f32 0.0, %v2826
    %v2828 = vpop.f32.mrf.mxu0
    %v2829 = vadd.f32 0.0, %v2828
    %2830 = vmatmul.bf16.gmra.mxu0 %v2815
    %v2831 = vpop.f32.mrf.mxu0
    %v2832 = vadd.f32 0.0, %v2831
    %v2833 = vpop.f32.mrf.mxu0
    %v2834 = vadd.f32 0.0, %v2833
    %2835 = vdwg.mxu0
    %2836 = vrot.lane.b32.xlu0 %v481, 112
    %v2837 = vpop.permute.xlu0 %2836
    %2838 = vrot.lane.b32.xlu0 %v482, 112
    %v2839 = vpop.permute.xlu0 %2838
    %2840 = vrot.lane.b32.xlu0 %v483, 112
    %v2841 = vpop.permute.xlu0 %2840
    %2842 = vrot.lane.b32.xlu0 %v484, 112
    %v2843 = vpop.permute.xlu0 %2842
    %v2844 = vrot.slane %v2837, 4
    %v2845 = vrot.slane %v2839, 4
    %v2846 = vrot.slane %v2841, 4
    %v2847 = vrot.slane %v2843, 4
    %v2852 = vunpack.c.l.b16 %v2447
    %v2853 = vunpack.c.l.b16 %v2448
    %v2854 = vunpack.c.l.b16 %v2449
    %v2855 = vunpack.c.l.b16 %v2450
    %v2856 = vpack.c.b16 %v2853, %v2852
    %v2857 = vpack.c.b16 %v2855, %v2854
    %v2858 = vunpack.c.l.b16 %v2844
    %v2859 = vunpack.c.l.b16 %v2845
    %v2860 = vunpack.c.l.b16 %v2846
    %v2861 = vunpack.c.l.b16 %v2847
    %v2862 = vpack.c.b16 %v2859, %v2858
    %v2863 = vpack.c.b16 %v2861, %v2860
    %v2867 = vsel %vm897, %v2856, 0
    %v2870 = vsel %vm897, %v2857, 0
    %2872 = vmatpush.bf16.msra.mxu0 0
    %2873 = vmatpush.bf16.msra.mxu0 0
    %2874 = vmatpush.bf16.msra.mxu0 0
    %2875 = vmatpush.bf16.msra.mxu0 0
    %2876 = vmatpush.bf16.msra.mxu0 0
    %2877 = vmatpush.bf16.msra.mxu0 0
    %2878 = vmatpush.bf16.msra.mxu0 %v2863
    %2879 = vmatpush.bf16.msra.mxu0 %v2862
    %2880 = vmatmul.bf16.gmra.mxu0 %v2867
    %v2881 = vpop.f32.mrf.mxu0
    %v2882 = vadd.f32 0.0, %v2881
    %v2883 = vpop.f32.mrf.mxu0
    %v2884 = vadd.f32 0.0, %v2883
    %2885 = vmatmul.bf16.gmra.mxu0 %v2870
    %v2886 = vpop.f32.mrf.mxu0
    %v2887 = vadd.f32 0.0, %v2886
    %v2888 = vpop.f32.mrf.mxu0
    %v2889 = vadd.f32 0.0, %v2888
    %2890 = vdwg.mxu0
    %v2891 = vpack.c.bf16 %v2497, %v2497
    %v2892 = vpack.c.bf16 %v2499, %v2499
    %v2893 = vpack.c.bf16 %v2502, %v2502
    %v2894 = vpack.c.bf16 %v2504, %v2504
    %v2895 = vpack.c.bf16 %v2552, %v2552
    %v2896 = vpack.c.bf16 %v2554, %v2554
    %v2897 = vpack.c.bf16 %v2557, %v2557
    %v2898 = vpack.c.bf16 %v2559, %v2559
    %v2899 = vpack.c.bf16 %v2607, %v2607
    %v2900 = vpack.c.bf16 %v2609, %v2609
    %v2901 = vpack.c.bf16 %v2612, %v2612
    %v2902 = vpack.c.bf16 %v2614, %v2614
    %v2903 = vpack.c.bf16 %v2662, %v2662
    %v2904 = vpack.c.bf16 %v2664, %v2664
    %v2905 = vpack.c.bf16 %v2667, %v2667
    %v2906 = vpack.c.bf16 %v2669, %v2669
    %v2907 = vpack.c.bf16 %v2717, %v2717
    %v2908 = vpack.c.bf16 %v2719, %v2719
    %v2909 = vpack.c.bf16 %v2722, %v2722
    %v2910 = vpack.c.bf16 %v2724, %v2724
    %v2911 = vpack.c.bf16 %v2772, %v2772
    %v2912 = vpack.c.bf16 %v2774, %v2774
    %v2913 = vpack.c.bf16 %v2777, %v2777
    %v2914 = vpack.c.bf16 %v2779, %v2779
    %v2915 = vpack.c.bf16 %v2827, %v2827
    %v2916 = vpack.c.bf16 %v2829, %v2829
    %v2917 = vpack.c.bf16 %v2832, %v2832
    %v2918 = vpack.c.bf16 %v2834, %v2834
    %v2919 = vpack.c.bf16 %v2882, %v2882
    %v2920 = vpack.c.bf16 %v2884, %v2884
    %v2921 = vpack.c.bf16 %v2887, %v2887
    %v2922 = vpack.c.bf16 %v2889, %v2889
    %2955 = vrot.lane.b32.xlu0 %v2891, 16
    %v2956 = vpop.permute.xlu0 %2955
    %2957 = vrot.lane.b32.xlu0 %v2892, 16
    %v2958 = vpop.permute.xlu0 %2957
    %2959 = vrot.lane.b32.xlu0 %v2893, 16
    %v2960 = vpop.permute.xlu0 %2959
    %2961 = vrot.lane.b32.xlu0 %v2894, 16
    %v2962 = vpop.permute.xlu0 %2961
    %2963 = vrot.lane.b32.xlu0 %v2895, 16
    %v2964 = vpop.permute.xlu0 %2963
    %2965 = vrot.lane.b32.xlu0 %v2896, 16
    %v2966 = vpop.permute.xlu0 %2965
    %2967 = vrot.lane.b32.xlu0 %v2897, 16
    %v2968 = vpop.permute.xlu0 %2967
    %2969 = vrot.lane.b32.xlu0 %v2898, 16
    %v2970 = vpop.permute.xlu0 %2969
    %2971 = vrot.lane.b32.xlu0 %v2899, 16
    %v2972 = vpop.permute.xlu0 %2971
    %2973 = vrot.lane.b32.xlu0 %v2900, 16
    %v2974 = vpop.permute.xlu0 %2973
    %2975 = vrot.lane.b32.xlu0 %v2901, 16
    %v2976 = vpop.permute.xlu0 %2975
    %2977 = vrot.lane.b32.xlu0 %v2902, 16
    %v2978 = vpop.permute.xlu0 %2977
    %2979 = vrot.lane.b32.xlu0 %v2903, 16
    %v2980 = vpop.permute.xlu0 %2979
    %2981 = vrot.lane.b32.xlu0 %v2904, 16
    %v2982 = vpop.permute.xlu0 %2981
    %2983 = vrot.lane.b32.xlu0 %v2905, 16
    %v2984 = vpop.permute.xlu0 %2983
    %2985 = vrot.lane.b32.xlu0 %v2906, 16
    %v2986 = vpop.permute.xlu0 %2985
    %2987 = vrot.lane.b32.xlu0 %v2907, 16
    %v2988 = vpop.permute.xlu0 %2987
    %2989 = vrot.lane.b32.xlu0 %v2908, 16
    %v2990 = vpop.permute.xlu0 %2989
    %2991 = vrot.lane.b32.xlu0 %v2909, 16
    %v2992 = vpop.permute.xlu0 %2991
    %2993 = vrot.lane.b32.xlu0 %v2910, 16
    %v2994 = vpop.permute.xlu0 %2993
    %2995 = vrot.lane.b32.xlu0 %v2911, 16
    %v2996 = vpop.permute.xlu0 %2995
    %2997 = vrot.lane.b32.xlu0 %v2912, 16
    %v2998 = vpop.permute.xlu0 %2997
    %2999 = vrot.lane.b32.xlu0 %v2913, 16
    %v3000 = vpop.permute.xlu0 %2999
    %3001 = vrot.lane.b32.xlu0 %v2914, 16
    %v3002 = vpop.permute.xlu0 %3001
    %3003 = vrot.lane.b32.xlu0 %v2915, 16
    %v3004 = vpop.permute.xlu0 %3003
    %3005 = vrot.lane.b32.xlu0 %v2916, 16
    %v3006 = vpop.permute.xlu0 %3005
    %3007 = vrot.lane.b32.xlu0 %v2917, 16
    %v3008 = vpop.permute.xlu0 %3007
    %3009 = vrot.lane.b32.xlu0 %v2918, 16
    %v3010 = vpop.permute.xlu0 %3009
    %3011 = vrot.lane.b32.xlu0 %v2919, 16
    %v3012 = vpop.permute.xlu0 %3011
    %3013 = vrot.lane.b32.xlu0 %v2920, 16
    %v3014 = vpop.permute.xlu0 %3013
    %3015 = vrot.lane.b32.xlu0 %v2921, 16
    %v3016 = vpop.permute.xlu0 %3015
    %3017 = vrot.lane.b32.xlu0 %v2922, 16
    %v3018 = vpop.permute.xlu0 %3017
    %vm3051 = vcmask 257152
    %3052 = vst.msk [vmem:[#allocation2] sm:$0xf] %vm3051, %v2956
    %3053 = vst.msk [vmem:[#allocation2 + $0x4] sm:$0xf] %vm3051, %v2958
    %3054 = vst.msk [vmem:[#allocation2 + $0x8] sm:$0xf] %vm3051, %v2960
    %3055 = vst.msk [vmem:[#allocation2 + $0xc] sm:$0xf] %vm3051, %v2962
    %3056 = vst.msk [vmem:[#allocation2 + $0x10] sm:$0xf] %vm3051, %v2964
    %3057 = vst.msk [vmem:[#allocation2 + $0x14] sm:$0xf] %vm3051, %v2966
    %3058 = vst.msk [vmem:[#allocation2 + $0x18] sm:$0xf] %vm3051, %v2968
    %3059 = vst.msk [vmem:[#allocation2 + $0x1c] sm:$0xf] %vm3051, %v2970
    %3060 = vst.msk [vmem:[#allocation2 + $0x20] sm:$0xf] %vm3051, %v2972
    %3061 = vst.msk [vmem:[#allocation2 + $0x24] sm:$0xf] %vm3051, %v2974
    %3062 = vst.msk [vmem:[#allocation2 + $0x28] sm:$0xf] %vm3051, %v2976
    %3063 = vst.msk [vmem:[#allocation2 + $0x2c] sm:$0xf] %vm3051, %v2978
    %3064 = vst.msk [vmem:[#allocation2 + $0x30] sm:$0xf] %vm3051, %v2980
    %3065 = vst.msk [vmem:[#allocation2 + $0x34] sm:$0xf] %vm3051, %v2982
    %3066 = vst.msk [vmem:[#allocation2 + $0x38] sm:$0xf] %vm3051, %v2984
    %3067 = vst.msk [vmem:[#allocation2 + $0x3c] sm:$0xf] %vm3051, %v2986
    %3068 = vst.msk [vmem:[#allocation2 + $0x40] sm:$0xf] %vm3051, %v2988
    %3069 = vst.msk [vmem:[#allocation2 + $0x44] sm:$0xf] %vm3051, %v2990
    %3070 = vst.msk [vmem:[#allocation2 + $0x48] sm:$0xf] %vm3051, %v2992
    %3071 = vst.msk [vmem:[#allocation2 + $0x4c] sm:$0xf] %vm3051, %v2994
    %3072 = vst.msk [vmem:[#allocation2 + $0x50] sm:$0xf] %vm3051, %v2996
    %3073 = vst.msk [vmem:[#allocation2 + $0x54] sm:$0xf] %vm3051, %v2998
    %3074 = vst.msk [vmem:[#allocation2 + $0x58] sm:$0xf] %vm3051, %v3000
    %3075 = vst.msk [vmem:[#allocation2 + $0x5c] sm:$0xf] %vm3051, %v3002
    %3076 = vst.msk [vmem:[#allocation2 + $0x60] sm:$0xf] %vm3051, %v3004
    %3077 = vst.msk [vmem:[#allocation2 + $0x64] sm:$0xf] %vm3051, %v3006
    %3078 = vst.msk [vmem:[#allocation2 + $0x68] sm:$0xf] %vm3051, %v3008
    %3079 = vst.msk [vmem:[#allocation2 + $0x6c] sm:$0xf] %vm3051, %v3010
    %3080 = vst.msk [vmem:[#allocation2 + $0x70] sm:$0xf] %vm3051, %v3012
    %3081 = vst.msk [vmem:[#allocation2 + $0x74] sm:$0xf] %vm3051, %v3014
    %3082 = vst.msk [vmem:[#allocation2 + $0x78] sm:$0xf] %vm3051, %v3016
    %3083 = vst.msk [vmem:[#allocation2 + $0x7c] sm:$0xf] %vm3051, %v3018
    %3084 = vrot.lane.b32.xlu0 %v504, 96
    %v3085 = vpop.permute.xlu0 %3084
    %3086 = vrot.lane.b32.xlu0 %v505, 96
    %v3087 = vpop.permute.xlu0 %3086
    %3088 = vrot.lane.b32.xlu0 %v504, 32
    %v3089 = vpop.permute.xlu0 %3088
    %3090 = vrot.lane.b32.xlu0 %v505, 32
    %v3091 = vpop.permute.xlu0 %3090
    %v3093 = vsel %vm510, %v3085, 0
    %v3096 = vsel %vm510, %v3087, 0
    %v3099 = vsel %vm510, %v3089, 0
    %v3102 = vsel %vm510, %v3091, 0
    %3104 = vmatpush.bf16.xpose.msra.mxu0 0
    %3105 = vmatpush.bf16.xpose.msra.mxu0 0
    %3106 = vmatpush.bf16.xpose.msra.mxu0 0
    %3107 = vmatpush.bf16.xpose.msra.mxu0 0
    %3108 = vmatpush.bf16.xpose.msra.mxu0 0
    %3109 = vmatpush.bf16.xpose.msra.mxu0 0
    %3110 = vmatpush.bf16.xpose.msra.mxu0 %v3102
    %3111 = vmatpush.bf16.xpose.msra.mxu0 %v3099
    %3112 = vmatmul.bf16.gmra.mxu0 %v3093
    %v3113 = vpop.f32.mrf.mxu0
    %v3114 = vadd.f32 0.0, %v3113
    %v3115 = vpop.f32.mrf.mxu0
    %v3116 = vadd.f32 0.0, %v3115
    %3117 = vmatmul.bf16.gmra.mxu0 %v3096
    %v3118 = vpop.f32.mrf.mxu0
    %v3119 = vadd.f32 0.0, %v3118
    %v3120 = vpop.f32.mrf.mxu0
    %v3121 = vadd.f32 0.0, %v3120
    %3122 = vdwg.mxu0
    %3123 = vrot.lane.b32.xlu0 %v550, 96
    %v3124 = vpop.permute.xlu0 %3123
    %3125 = vrot.lane.b32.xlu0 %v551, 96
    %v3126 = vpop.permute.xlu0 %3125
    %3127 = vrot.lane.b32.xlu0 %v550, 32
    %v3128 = vpop.permute.xlu0 %3127
    %3129 = vrot.lane.b32.xlu0 %v551, 32
    %v3130 = vpop.permute.xlu0 %3129
    %v3132 = vsel %vm510, %v3124, 0
    %v3135 = vsel %vm510, %v3126, 0
    %v3138 = vsel %vm510, %v3128, 0
    %v3141 = vsel %vm510, %v3130, 0
    %3143 = vmatpush.bf16.xpose.msra.mxu0 0
    %3144 = vmatpush.bf16.xpose.msra.mxu0 0
    %3145 = vmatpush.bf16.xpose.msra.mxu0 0
    %3146 = vmatpush.bf16.xpose.msra.mxu0 0
    %3147 = vmatpush.bf16.xpose.msra.mxu0 0
    %3148 = vmatpush.bf16.xpose.msra.mxu0 0
    %3149 = vmatpush.bf16.xpose.msra.mxu0 %v3141
    %3150 = vmatpush.bf16.xpose.msra.mxu0 %v3138
    %3151 = vmatmul.bf16.gmra.mxu0 %v3132
    %v3152 = vpop.f32.mrf.mxu0
    %v3153 = vadd.f32 0.0, %v3152
    %v3154 = vpop.f32.mrf.mxu0
    %v3155 = vadd.f32 0.0, %v3154
    %3156 = vmatmul.bf16.gmra.mxu0 %v3135
    %v3157 = vpop.f32.mrf.mxu0
    %v3158 = vadd.f32 0.0, %v3157
    %v3159 = vpop.f32.mrf.mxu0
    %v3160 = vadd.f32 0.0, %v3159
    %3161 = vdwg.mxu0
    %3162 = vrot.lane.b32.xlu0 %v595, 96
    %v3163 = vpop.permute.xlu0 %3162
    %3164 = vrot.lane.b32.xlu0 %v596, 96
    %v3165 = vpop.permute.xlu0 %3164
    %3166 = vrot.lane.b32.xlu0 %v595, 32
    %v3167 = vpop.permute.xlu0 %3166
    %3168 = vrot.lane.b32.xlu0 %v596, 32
    %v3169 = vpop.permute.xlu0 %3168
    %v3171 = vsel %vm510, %v3163, 0
    %v3174 = vsel %vm510, %v3165, 0
    %v3177 = vsel %vm510, %v3167, 0
    %v3180 = vsel %vm510, %v3169, 0
    %3182 = vmatpush.bf16.xpose.msra.mxu0 0
    %3183 = vmatpush.bf16.xpose.msra.mxu0 0
    %3184 = vmatpush.bf16.xpose.msra.mxu0 0
    %3185 = vmatpush.bf16.xpose.msra.mxu0 0
    %3186 = vmatpush.bf16.xpose.msra.mxu0 0
    %3187 = vmatpush.bf16.xpose.msra.mxu0 0
    %3188 = vmatpush.bf16.xpose.msra.mxu0 %v3180
    %3189 = vmatpush.bf16.xpose.msra.mxu0 %v3177
    %3190 = vmatmul.bf16.gmra.mxu0 %v3171
    %v3191 = vpop.f32.mrf.mxu0
    %v3192 = vadd.f32 0.0, %v3191
    %v3193 = vpop.f32.mrf.mxu0
    %v3194 = vadd.f32 0.0, %v3193
    %3195 = vmatmul.bf16.gmra.mxu0 %v3174
    %v3196 = vpop.f32.mrf.mxu0
    %v3197 = vadd.f32 0.0, %v3196
    %v3198 = vpop.f32.mrf.mxu0
    %v3199 = vadd.f32 0.0, %v3198
    %3200 = vdwg.mxu0
    %3201 = vrot.lane.b32.xlu0 %v640, 96
    %v3202 = vpop.permute.xlu0 %3201
    %3203 = vrot.lane.b32.xlu0 %v641, 96
    %v3204 = vpop.permute.xlu0 %3203
    %3205 = vrot.lane.b32.xlu0 %v640, 32
    %v3206 = vpop.permute.xlu0 %3205
    %3207 = vrot.lane.b32.xlu0 %v641, 32
    %v3208 = vpop.permute.xlu0 %3207
    %v3210 = vsel %vm510, %v3202, 0
    %v3213 = vsel %vm510, %v3204, 0
    %v3216 = vsel %vm510, %v3206, 0
    %v3219 = vsel %vm510, %v3208, 0
    %3221 = vmatpush.bf16.xpose.msra.mxu0 0
    %3222 = vmatpush.bf16.xpose.msra.mxu0 0
    %3223 = vmatpush.bf16.xpose.msra.mxu0 0
    %3224 = vmatpush.bf16.xpose.msra.mxu0 0
    %3225 = vmatpush.bf16.xpose.msra.mxu0 0
    %3226 = vmatpush.bf16.xpose.msra.mxu0 0
    %3227 = vmatpush.bf16.xpose.msra.mxu0 %v3219
    %3228 = vmatpush.bf16.xpose.msra.mxu0 %v3216
    %3229 = vmatmul.bf16.gmra.mxu0 %v3210
    %v3230 = vpop.f32.mrf.mxu0
    %v3231 = vadd.f32 0.0, %v3230
    %v3232 = vpop.f32.mrf.mxu0
    %v3233 = vadd.f32 0.0, %v3232
    %3234 = vmatmul.bf16.gmra.mxu0 %v3213
    %v3235 = vpop.f32.mrf.mxu0
    %v3236 = vadd.f32 0.0, %v3235
    %v3237 = vpop.f32.mrf.mxu0
    %v3238 = vadd.f32 0.0, %v3237
    %3239 = vdwg.mxu0
    %3240 = vrot.lane.b32.xlu0 %v685, 96
    %v3241 = vpop.permute.xlu0 %3240
    %3242 = vrot.lane.b32.xlu0 %v686, 96
    %v3243 = vpop.permute.xlu0 %3242
    %3244 = vrot.lane.b32.xlu0 %v685, 32
    %v3245 = vpop.permute.xlu0 %3244
    %3246 = vrot.lane.b32.xlu0 %v686, 32
    %v3247 = vpop.permute.xlu0 %3246
    %v3249 = vsel %vm510, %v3241, 0
    %v3252 = vsel %vm510, %v3243, 0
    %v3255 = vsel %vm510, %v3245, 0
    %v3258 = vsel %vm510, %v3247, 0
    %3260 = vmatpush.bf16.xpose.msra.mxu0 0
    %3261 = vmatpush.bf16.xpose.msra.mxu0 0
    %3262 = vmatpush.bf16.xpose.msra.mxu0 0
    %3263 = vmatpush.bf16.xpose.msra.mxu0 0
    %3264 = vmatpush.bf16.xpose.msra.mxu0 0
    %3265 = vmatpush.bf16.xpose.msra.mxu0 0
    %3266 = vmatpush.bf16.xpose.msra.mxu0 %v3258
    %3267 = vmatpush.bf16.xpose.msra.mxu0 %v3255
    %3268 = vmatmul.bf16.gmra.mxu0 %v3249
    %v3269 = vpop.f32.mrf.mxu0
    %v3270 = vadd.f32 0.0, %v3269
    %v3271 = vpop.f32.mrf.mxu0
    %v3272 = vadd.f32 0.0, %v3271
    %3273 = vmatmul.bf16.gmra.mxu0 %v3252
    %v3274 = vpop.f32.mrf.mxu0
    %v3275 = vadd.f32 0.0, %v3274
    %v3276 = vpop.f32.mrf.mxu0
    %v3277 = vadd.f32 0.0, %v3276
    %3278 = vdwg.mxu0
    %3279 = vrot.lane.b32.xlu0 %v730, 96
    %v3280 = vpop.permute.xlu0 %3279
    %3281 = vrot.lane.b32.xlu0 %v731, 96
    %v3282 = vpop.permute.xlu0 %3281
    %3283 = vrot.lane.b32.xlu0 %v730, 32
    %v3284 = vpop.permute.xlu0 %3283
    %3285 = vrot.lane.b32.xlu0 %v731, 32
    %v3286 = vpop.permute.xlu0 %3285
    %v3288 = vsel %vm510, %v3280, 0
    %v3291 = vsel %vm510, %v3282, 0
    %v3294 = vsel %vm510, %v3284, 0
    %v3297 = vsel %vm510, %v3286, 0
    %3299 = vmatpush.bf16.xpose.msra.mxu0 0
    %3300 = vmatpush.bf16.xpose.msra.mxu0 0
    %3301 = vmatpush.bf16.xpose.msra.mxu0 0
    %3302 = vmatpush.bf16.xpose.msra.mxu0 0
    %3303 = vmatpush.bf16.xpose.msra.mxu0 0
    %3304 = vmatpush.bf16.xpose.msra.mxu0 0
    %3305 = vmatpush.bf16.xpose.msra.mxu0 %v3297
    %3306 = vmatpush.bf16.xpose.msra.mxu0 %v3294
    %3307 = vmatmul.bf16.gmra.mxu0 %v3288
    %v3308 = vpop.f32.mrf.mxu0
    %v3309 = vadd.f32 0.0, %v3308
    %v3310 = vpop.f32.mrf.mxu0
    %v3311 = vadd.f32 0.0, %v3310
    %3312 = vmatmul.bf16.gmra.mxu0 %v3291
    %v3313 = vpop.f32.mrf.mxu0
    %v3314 = vadd.f32 0.0, %v3313
    %v3315 = vpop.f32.mrf.mxu0
    %v3316 = vadd.f32 0.0, %v3315
    %3317 = vdwg.mxu0
    %3318 = vrot.lane.b32.xlu0 %v775, 96
    %v3319 = vpop.permute.xlu0 %3318
    %3320 = vrot.lane.b32.xlu0 %v776, 96
    %v3321 = vpop.permute.xlu0 %3320
    %3322 = vrot.lane.b32.xlu0 %v775, 32
    %v3323 = vpop.permute.xlu0 %3322
    %3324 = vrot.lane.b32.xlu0 %v776, 32
    %v3325 = vpop.permute.xlu0 %3324
    %v3327 = vsel %vm510, %v3319, 0
    %v3330 = vsel %vm510, %v3321, 0
    %v3333 = vsel %vm510, %v3323, 0
    %v3336 = vsel %vm510, %v3325, 0
    %3338 = vmatpush.bf16.xpose.msra.mxu0 0
    %3339 = vmatpush.bf16.xpose.msra.mxu0 0
    %3340 = vmatpush.bf16.xpose.msra.mxu0 0
    %3341 = vmatpush.bf16.xpose.msra.mxu0 0
    %3342 = vmatpush.bf16.xpose.msra.mxu0 0
    %3343 = vmatpush.bf16.xpose.msra.mxu0 0
    %3344 = vmatpush.bf16.xpose.msra.mxu0 %v3336
    %3345 = vmatpush.bf16.xpose.msra.mxu0 %v3333
    %3346 = vmatmul.bf16.gmra.mxu0 %v3327
    %v3347 = vpop.f32.mrf.mxu0
    %v3348 = vadd.f32 0.0, %v3347
    %v3349 = vpop.f32.mrf.mxu0
    %v3350 = vadd.f32 0.0, %v3349
    %3351 = vmatmul.bf16.gmra.mxu0 %v3330
    %v3352 = vpop.f32.mrf.mxu0
    %v3353 = vadd.f32 0.0, %v3352
    %v3354 = vpop.f32.mrf.mxu0
    %v3355 = vadd.f32 0.0, %v3354
    %3356 = vdwg.mxu0
    %3357 = vrot.lane.b32.xlu0 %v820, 96
    %v3358 = vpop.permute.xlu0 %3357
    %3359 = vrot.lane.b32.xlu0 %v821, 96
    %v3360 = vpop.permute.xlu0 %3359
    %3361 = vrot.lane.b32.xlu0 %v820, 32
    %v3362 = vpop.permute.xlu0 %3361
    %3363 = vrot.lane.b32.xlu0 %v821, 32
    %v3364 = vpop.permute.xlu0 %3363
    %v3366 = vsel %vm510, %v3358, 0
    %v3369 = vsel %vm510, %v3360, 0
    %v3372 = vsel %vm510, %v3362, 0
    %v3375 = vsel %vm510, %v3364, 0
    %3377 = vmatpush.bf16.xpose.msra.mxu0 0
    %3378 = vmatpush.bf16.xpose.msra.mxu0 0
    %3379 = vmatpush.bf16.xpose.msra.mxu0 0
    %3380 = vmatpush.bf16.xpose.msra.mxu0 0
    %3381 = vmatpush.bf16.xpose.msra.mxu0 0
    %3382 = vmatpush.bf16.xpose.msra.mxu0 0
    %3383 = vmatpush.bf16.xpose.msra.mxu0 %v3375
    %3384 = vmatpush.bf16.xpose.msra.mxu0 %v3372
    %3385 = vmatmul.bf16.gmra.mxu0 %v3366
    %v3386 = vpop.f32.mrf.mxu0
    %v3387 = vadd.f32 0.0, %v3386
    %v3388 = vpop.f32.mrf.mxu0
    %v3389 = vadd.f32 0.0, %v3388
    %3390 = vmatmul.bf16.gmra.mxu0 %v3369
    %v3391 = vpop.f32.mrf.mxu0
    %v3392 = vadd.f32 0.0, %v3391
    %v3393 = vpop.f32.mrf.mxu0
    %v3394 = vadd.f32 0.0, %v3393
    %3395 = vdwg.mxu0
    %v3396 = vsel %vm861, %v3114, -1e+30
    %v3397 = vsel %vm862, %v3116, -1e+30
    %v3398 = vsel %vm863, %v3119, -1e+30
    %v3399 = vsel %vm864, %v3121, -1e+30
    %v3400 = vsel %vm861, %v3153, -1e+30
    %v3401 = vsel %vm862, %v3155, -1e+30
    %v3402 = vsel %vm863, %v3158, -1e+30
    %v3403 = vsel %vm864, %v3160, -1e+30
    %v3404 = vsel %vm861, %v3192, -1e+30
    %v3405 = vsel %vm862, %v3194, -1e+30
    %v3406 = vsel %vm863, %v3197, -1e+30
    %v3407 = vsel %vm864, %v3199, -1e+30
    %v3408 = vsel %vm861, %v3231, -1e+30
    %v3409 = vsel %vm862, %v3233, -1e+30
    %v3410 = vsel %vm863, %v3236, -1e+30
    %v3411 = vsel %vm864, %v3238, -1e+30
    %v3412 = vsel %vm861, %v3270, -1e+30
    %v3413 = vsel %vm862, %v3272, -1e+30
    %v3414 = vsel %vm863, %v3275, -1e+30
    %v3415 = vsel %vm864, %v3277, -1e+30
    %v3416 = vsel %vm861, %v3309, -1e+30
    %v3417 = vsel %vm862, %v3311, -1e+30
    %v3418 = vsel %vm863, %v3314, -1e+30
    %v3419 = vsel %vm864, %v3316, -1e+30
    %v3420 = vsel %vm861, %v3348, -1e+30
    %v3421 = vsel %vm862, %v3350, -1e+30
    %v3422 = vsel %vm863, %v3353, -1e+30
    %v3423 = vsel %vm864, %v3355, -1e+30
    %v3424 = vsel %vm861, %v3387, -1e+30
    %v3425 = vsel %vm862, %v3389, -1e+30
    %v3426 = vsel %vm863, %v3392, -1e+30
    %v3427 = vsel %vm864, %v3394, -1e+30
    %v3428 = vsel %vm897, %v3396, -inf
    %3429 = vmax.xlane.f32.xlu0 %v3428
    %v3430 = vpop.xlane.xlu0 %3429
    %v3431 = vsel %vm897, %v3397, -inf
    %3432 = vmax.xlane.f32.xlu0 %v3431
    %v3433 = vpop.xlane.xlu0 %3432
    %v3434 = vsel %vm897, %v3398, -inf
    %3435 = vmax.xlane.f32.xlu0 %v3434
    %v3436 = vpop.xlane.xlu0 %3435
    %v3437 = vsel %vm897, %v3399, -inf
    %3438 = vmax.xlane.f32.xlu0 %v3437
    %v3439 = vpop.xlane.xlu0 %3438
    %v3440 = vsel %vm897, %v3400, -inf
    %3441 = vmax.xlane.f32.xlu0 %v3440
    %v3442 = vpop.xlane.xlu0 %3441
    %v3443 = vsel %vm897, %v3401, -inf
    %3444 = vmax.xlane.f32.xlu0 %v3443
    %v3445 = vpop.xlane.xlu0 %3444
    %v3446 = vsel %vm897, %v3402, -inf
    %3447 = vmax.xlane.f32.xlu0 %v3446
    %v3448 = vpop.xlane.xlu0 %3447
    %v3449 = vsel %vm897, %v3403, -inf
    %3450 = vmax.xlane.f32.xlu0 %v3449
    %v3451 = vpop.xlane.xlu0 %3450
    %v3452 = vsel %vm897, %v3404, -inf
    %3453 = vmax.xlane.f32.xlu0 %v3452
    %v3454 = vpop.xlane.xlu0 %3453
    %v3455 = vsel %vm897, %v3405, -inf
    %3456 = vmax.xlane.f32.xlu0 %v3455
    %v3457 = vpop.xlane.xlu0 %3456
    %v3458 = vsel %vm897, %v3406, -inf
    %3459 = vmax.xlane.f32.xlu0 %v3458
    %v3460 = vpop.xlane.xlu0 %3459
    %v3461 = vsel %vm897, %v3407, -inf
    %3462 = vmax.xlane.f32.xlu0 %v3461
    %v3463 = vpop.xlane.xlu0 %3462
    %v3464 = vsel %vm897, %v3408, -inf
    %3465 = vmax.xlane.f32.xlu0 %v3464
    %v3466 = vpop.xlane.xlu0 %3465
    %v3467 = vsel %vm897, %v3409, -inf
    %3468 = vmax.xlane.f32.xlu0 %v3467
    %v3469 = vpop.xlane.xlu0 %3468
    %v3470 = vsel %vm897, %v3410, -inf
    %3471 = vmax.xlane.f32.xlu0 %v3470
    %v3472 = vpop.xlane.xlu0 %3471
    %v3473 = vsel %vm897, %v3411, -inf
    %3474 = vmax.xlane.f32.xlu0 %v3473
    %v3475 = vpop.xlane.xlu0 %3474
    %v3476 = vsel %vm897, %v3412, -inf
    %3477 = vmax.xlane.f32.xlu0 %v3476
    %v3478 = vpop.xlane.xlu0 %3477
    %v3479 = vsel %vm897, %v3413, -inf
    %3480 = vmax.xlane.f32.xlu0 %v3479
    %v3481 = vpop.xlane.xlu0 %3480
    %v3482 = vsel %vm897, %v3414, -inf
    %3483 = vmax.xlane.f32.xlu0 %v3482
    %v3484 = vpop.xlane.xlu0 %3483
    %v3485 = vsel %vm897, %v3415, -inf
    %3486 = vmax.xlane.f32.xlu0 %v3485
    %v3487 = vpop.xlane.xlu0 %3486
    %v3488 = vsel %vm897, %v3416, -inf
    %3489 = vmax.xlane.f32.xlu0 %v3488
    %v3490 = vpop.xlane.xlu0 %3489
    %v3491 = vsel %vm897, %v3417, -inf
    %3492 = vmax.xlane.f32.xlu0 %v3491
    %v3493 = vpop.xlane.xlu0 %3492
    %v3494 = vsel %vm897, %v3418, -inf
    %3495 = vmax.xlane.f32.xlu0 %v3494
    %v3496 = vpop.xlane.xlu0 %3495
    %v3497 = vsel %vm897, %v3419, -inf
    %3498 = vmax.xlane.f32.xlu0 %v3497
    %v3499 = vpop.xlane.xlu0 %3498
    %v3500 = vsel %vm897, %v3420, -inf
    %3501 = vmax.xlane.f32.xlu0 %v3500
    %v3502 = vpop.xlane.xlu0 %3501
    %v3503 = vsel %vm897, %v3421, -inf
    %3504 = vmax.xlane.f32.xlu0 %v3503
    %v3505 = vpop.xlane.xlu0 %3504
    %v3506 = vsel %vm897, %v3422, -inf
    %3507 = vmax.xlane.f32.xlu0 %v3506
    %v3508 = vpop.xlane.xlu0 %3507
    %v3509 = vsel %vm897, %v3423, -inf
    %3510 = vmax.xlane.f32.xlu0 %v3509
    %v3511 = vpop.xlane.xlu0 %3510
    %v3512 = vsel %vm897, %v3424, -inf
    %3513 = vmax.xlane.f32.xlu0 %v3512
    %v3514 = vpop.xlane.xlu0 %3513
    %v3515 = vsel %vm897, %v3425, -inf
    %3516 = vmax.xlane.f32.xlu0 %v3515
    %v3517 = vpop.xlane.xlu0 %3516
    %v3518 = vsel %vm897, %v3426, -inf
    %3519 = vmax.xlane.f32.xlu0 %v3518
    %v3520 = vpop.xlane.xlu0 %3519
    %v3521 = vsel %vm897, %v3427, -inf
    %3522 = vmax.xlane.f32.xlu0 %v3521
    %v3523 = vpop.xlane.xlu0 %3522
    %v3524 = vsub.f32 %v3396, %v3430
    %v3525 = vsub.f32 %v3397, %v3433
    %v3526 = vsub.f32 %v3398, %v3436
    %v3527 = vsub.f32 %v3399, %v3439
    %v3528 = vsub.f32 %v3400, %v3442
    %v3529 = vsub.f32 %v3401, %v3445
    %v3530 = vsub.f32 %v3402, %v3448
    %v3531 = vsub.f32 %v3403, %v3451
    %v3532 = vsub.f32 %v3404, %v3454
    %v3533 = vsub.f32 %v3405, %v3457
    %v3534 = vsub.f32 %v3406, %v3460
    %v3535 = vsub.f32 %v3407, %v3463
    %v3536 = vsub.f32 %v3408, %v3466
    %v3537 = vsub.f32 %v3409, %v3469
    %v3538 = vsub.f32 %v3410, %v3472
    %v3539 = vsub.f32 %v3411, %v3475
    %v3540 = vsub.f32 %v3412, %v3478
    %v3541 = vsub.f32 %v3413, %v3481
    %v3542 = vsub.f32 %v3414, %v3484
    %v3543 = vsub.f32 %v3415, %v3487
    %v3544 = vsub.f32 %v3416, %v3490
    %v3545 = vsub.f32 %v3417, %v3493
    %v3546 = vsub.f32 %v3418, %v3496
    %v3547 = vsub.f32 %v3419, %v3499
    %v3548 = vsub.f32 %v3420, %v3502
    %v3549 = vsub.f32 %v3421, %v3505
    %v3550 = vsub.f32 %v3422, %v3508
    %v3551 = vsub.f32 %v3423, %v3511
    %v3552 = vsub.f32 %v3424, %v3514
    %v3553 = vsub.f32 %v3425, %v3517
    %v3554 = vsub.f32 %v3426, %v3520
    %v3555 = vsub.f32 %v3427, %v3523
    %v3556 = vmul.f32 %v3524, 1.442695
    %v3557 = vpow.pop %v3556
    %v3558 = vmul.f32 %v3525, 1.442695
    %v3559 = vpow.pop %v3558
    %v3560 = vmul.f32 %v3526, 1.442695
    %v3561 = vpow.pop %v3560
    %v3562 = vmul.f32 %v3527, 1.442695
    %v3563 = vpow.pop %v3562
    %v3564 = vmul.f32 %v3528, 1.442695
    %v3565 = vpow.pop %v3564
    %v3566 = vmul.f32 %v3529, 1.442695
    %v3567 = vpow.pop %v3566
    %v3568 = vmul.f32 %v3530, 1.442695
    %v3569 = vpow.pop %v3568
    %v3570 = vmul.f32 %v3531, 1.442695
    %v3571 = vpow.pop %v3570
    %v3572 = vmul.f32 %v3532, 1.442695
    %v3573 = vpow.pop %v3572
    %v3574 = vmul.f32 %v3533, 1.442695
    %v3575 = vpow.pop %v3574
    %v3576 = vmul.f32 %v3534, 1.442695
    %v3577 = vpow.pop %v3576
    %v3578 = vmul.f32 %v3535, 1.442695
    %v3579 = vpow.pop %v3578
    %v3580 = vmul.f32 %v3536, 1.442695
    %v3581 = vpow.pop %v3580
    %v3582 = vmul.f32 %v3537, 1.442695
    %v3583 = vpow.pop %v3582
    %v3584 = vmul.f32 %v3538, 1.442695
    %v3585 = vpow.pop %v3584
    %v3586 = vmul.f32 %v3539, 1.442695
    %v3587 = vpow.pop %v3586
    %v3588 = vmul.f32 %v3540, 1.442695
    %v3589 = vpow.pop %v3588
    %v3590 = vmul.f32 %v3541, 1.442695
    %v3591 = vpow.pop %v3590
    %v3592 = vmul.f32 %v3542, 1.442695
    %v3593 = vpow.pop %v3592
    %v3594 = vmul.f32 %v3543, 1.442695
    %v3595 = vpow.pop %v3594
    %v3596 = vmul.f32 %v3544, 1.442695
    %v3597 = vpow.pop %v3596
    %v3598 = vmul.f32 %v3545, 1.442695
    %v3599 = vpow.pop %v3598
    %v3600 = vmul.f32 %v3546, 1.442695
    %v3601 = vpow.pop %v3600
    %v3602 = vmul.f32 %v3547, 1.442695
    %v3603 = vpow.pop %v3602
    %v3604 = vmul.f32 %v3548, 1.442695
    %v3605 = vpow.pop %v3604
    %v3606 = vmul.f32 %v3549, 1.442695
    %v3607 = vpow.pop %v3606
    %v3608 = vmul.f32 %v3550, 1.442695
    %v3609 = vpow.pop %v3608
    %v3610 = vmul.f32 %v3551, 1.442695
    %v3611 = vpow.pop %v3610
    %v3612 = vmul.f32 %v3552, 1.442695
    %v3613 = vpow.pop %v3612
    %v3614 = vmul.f32 %v3553, 1.442695
    %v3615 = vpow.pop %v3614
    %v3616 = vmul.f32 %v3554, 1.442695
    %v3617 = vpow.pop %v3616
    %v3618 = vmul.f32 %v3555, 1.442695
    %v3619 = vpow.pop %v3618
    %v3620 = vsel %vm897, %v3557, 0.0
    %3621 = vadd.xlane.f32.xlu0 %v3620
    %v3622 = vpop.xlane.xlu0 %3621
    %v3623 = vsel %vm897, %v3559, 0.0
    %3624 = vadd.xlane.f32.xlu0 %v3623
    %v3625 = vpop.xlane.xlu0 %3624
    %v3626 = vsel %vm897, %v3561, 0.0
    %3627 = vadd.xlane.f32.xlu0 %v3626
    %v3628 = vpop.xlane.xlu0 %3627
    %v3629 = vsel %vm897, %v3563, 0.0
    %3630 = vadd.xlane.f32.xlu0 %v3629
    %v3631 = vpop.xlane.xlu0 %3630
    %v3632 = vsel %vm897, %v3565, 0.0
    %3633 = vadd.xlane.f32.xlu0 %v3632
    %v3634 = vpop.xlane.xlu0 %3633
    %v3635 = vsel %vm897, %v3567, 0.0
    %3636 = vadd.xlane.f32.xlu0 %v3635
    %v3637 = vpop.xlane.xlu0 %3636
    %v3638 = vsel %vm897, %v3569, 0.0
    %3639 = vadd.xlane.f32.xlu0 %v3638
    %v3640 = vpop.xlane.xlu0 %3639
    %v3641 = vsel %vm897, %v3571, 0.0
    %3642 = vadd.xlane.f32.xlu0 %v3641
    %v3643 = vpop.xlane.xlu0 %3642
    %v3644 = vsel %vm897, %v3573, 0.0
    %3645 = vadd.xlane.f32.xlu0 %v3644
    %v3646 = vpop.xlane.xlu0 %3645
    %v3647 = vsel %vm897, %v3575, 0.0
    %3648 = vadd.xlane.f32.xlu0 %v3647
    %v3649 = vpop.xlane.xlu0 %3648
    %v3650 = vsel %vm897, %v3577, 0.0
    %3651 = vadd.xlane.f32.xlu0 %v3650
    %v3652 = vpop.xlane.xlu0 %3651
    %v3653 = vsel %vm897, %v3579, 0.0
    %3654 = vadd.xlane.f32.xlu0 %v3653
    %v3655 = vpop.xlane.xlu0 %3654
    %v3656 = vsel %vm897, %v3581, 0.0
    %3657 = vadd.xlane.f32.xlu0 %v3656
    %v3658 = vpop.xlane.xlu0 %3657
    %v3659 = vsel %vm897, %v3583, 0.0
    %3660 = vadd.xlane.f32.xlu0 %v3659
    %v3661 = vpop.xlane.xlu0 %3660
    %v3662 = vsel %vm897, %v3585, 0.0
    %3663 = vadd.xlane.f32.xlu0 %v3662
    %v3664 = vpop.xlane.xlu0 %3663
    %v3665 = vsel %vm897, %v3587, 0.0
    %3666 = vadd.xlane.f32.xlu0 %v3665
    %v3667 = vpop.xlane.xlu0 %3666
    %v3668 = vsel %vm897, %v3589, 0.0
    %3669 = vadd.xlane.f32.xlu0 %v3668
    %v3670 = vpop.xlane.xlu0 %3669
    %v3671 = vsel %vm897, %v3591, 0.0
    %3672 = vadd.xlane.f32.xlu0 %v3671
    %v3673 = vpop.xlane.xlu0 %3672
    %v3674 = vsel %vm897, %v3593, 0.0
    %3675 = vadd.xlane.f32.xlu0 %v3674
    %v3676 = vpop.xlane.xlu0 %3675
    %v3677 = vsel %vm897, %v3595, 0.0
    %3678 = vadd.xlane.f32.xlu0 %v3677
    %v3679 = vpop.xlane.xlu0 %3678
    %v3680 = vsel %vm897, %v3597, 0.0
    %3681 = vadd.xlane.f32.xlu0 %v3680
    %v3682 = vpop.xlane.xlu0 %3681
    %v3683 = vsel %vm897, %v3599, 0.0
    %3684 = vadd.xlane.f32.xlu0 %v3683
    %v3685 = vpop.xlane.xlu0 %3684
    %v3686 = vsel %vm897, %v3601, 0.0
    %3687 = vadd.xlane.f32.xlu0 %v3686
    %v3688 = vpop.xlane.xlu0 %3687
    %v3689 = vsel %vm897, %v3603, 0.0
    %3690 = vadd.xlane.f32.xlu0 %v3689
    %v3691 = vpop.xlane.xlu0 %3690
    %v3692 = vsel %vm897, %v3605, 0.0
    %3693 = vadd.xlane.f32.xlu0 %v3692
    %v3694 = vpop.xlane.xlu0 %3693
    %v3695 = vsel %vm897, %v3607, 0.0
    %3696 = vadd.xlane.f32.xlu0 %v3695
    %v3697 = vpop.xlane.xlu0 %3696
    %v3698 = vsel %vm897, %v3609, 0.0
    %3699 = vadd.xlane.f32.xlu0 %v3698
    %v3700 = vpop.xlane.xlu0 %3699
    %v3701 = vsel %vm897, %v3611, 0.0
    %3702 = vadd.xlane.f32.xlu0 %v3701
    %v3703 = vpop.xlane.xlu0 %3702
    %v3704 = vsel %vm897, %v3613, 0.0
    %3705 = vadd.xlane.f32.xlu0 %v3704
    %v3706 = vpop.xlane.xlu0 %3705
    %v3707 = vsel %vm897, %v3615, 0.0
    %3708 = vadd.xlane.f32.xlu0 %v3707
    %v3709 = vpop.xlane.xlu0 %3708
    %v3710 = vsel %vm897, %v3617, 0.0
    %3711 = vadd.xlane.f32.xlu0 %v3710
    %v3712 = vpop.xlane.xlu0 %3711
    %v3713 = vsel %vm897, %v3619, 0.0
    %3714 = vadd.xlane.f32.xlu0 %v3713
    %v3715 = vpop.xlane.xlu0 %3714
    %v3716 = vrcp.pop %v3622
    %v3717 = vrcp.pop %v3625
    %v3718 = vrcp.pop %v3628
    %v3719 = vrcp.pop %v3631
    %v3720 = vrcp.pop %v3634
    %v3721 = vrcp.pop %v3637
    %v3722 = vrcp.pop %v3640
    %v3723 = vrcp.pop %v3643
    %v3724 = vrcp.pop %v3646
    %v3725 = vrcp.pop %v3649
    %v3726 = vrcp.pop %v3652
    %v3727 = vrcp.pop %v3655
    %v3728 = vrcp.pop %v3658
    %v3729 = vrcp.pop %v3661
    %v3730 = vrcp.pop %v3664
    %v3731 = vrcp.pop %v3667
    %v3732 = vrcp.pop %v3670
    %v3733 = vrcp.pop %v3673
    %v3734 = vrcp.pop %v3676
    %v3735 = vrcp.pop %v3679
    %v3736 = vrcp.pop %v3682
    %v3737 = vrcp.pop %v3685
    %v3738 = vrcp.pop %v3688
    %v3739 = vrcp.pop %v3691
    %v3740 = vrcp.pop %v3694
    %v3741 = vrcp.pop %v3697
    %v3742 = vrcp.pop %v3700
    %v3743 = vrcp.pop %v3703
    %v3744 = vrcp.pop %v3706
    %v3745 = vrcp.pop %v3709
    %v3746 = vrcp.pop %v3712
    %v3747 = vrcp.pop %v3715
    %v3748 = vmul.f32 %v3557, %v3716
    %v3749 = vmul.f32 %v3559, %v3717
    %v3750 = vmul.f32 %v3561, %v3718
    %v3751 = vmul.f32 %v3563, %v3719
    %v3752 = vmul.f32 %v3565, %v3720
    %v3753 = vmul.f32 %v3567, %v3721
    %v3754 = vmul.f32 %v3569, %v3722
    %v3755 = vmul.f32 %v3571, %v3723
    %v3756 = vmul.f32 %v3573, %v3724
    %v3757 = vmul.f32 %v3575, %v3725
    %v3758 = vmul.f32 %v3577, %v3726
    %v3759 = vmul.f32 %v3579, %v3727
    %v3760 = vmul.f32 %v3581, %v3728
    %v3761 = vmul.f32 %v3583, %v3729
    %v3762 = vmul.f32 %v3585, %v3730
    %v3763 = vmul.f32 %v3587, %v3731
    %v3764 = vmul.f32 %v3589, %v3732
    %v3765 = vmul.f32 %v3591, %v3733
    %v3766 = vmul.f32 %v3593, %v3734
    %v3767 = vmul.f32 %v3595, %v3735
    %v3768 = vmul.f32 %v3597, %v3736
    %v3769 = vmul.f32 %v3599, %v3737
    %v3770 = vmul.f32 %v3601, %v3738
    %v3771 = vmul.f32 %v3603, %v3739
    %v3772 = vmul.f32 %v3605, %v3740
    %v3773 = vmul.f32 %v3607, %v3741
    %v3774 = vmul.f32 %v3609, %v3742
    %v3775 = vmul.f32 %v3611, %v3743
    %v3776 = vmul.f32 %v3613, %v3744
    %v3777 = vmul.f32 %v3615, %v3745
    %v3778 = vmul.f32 %v3617, %v3746
    %v3779 = vmul.f32 %v3619, %v3747
    %v3780 = vpack.c.bf16 %v3748, %v3748
    %v3781 = vpack.c.bf16 %v3749, %v3749
    %v3782 = vpack.c.bf16 %v3750, %v3750
    %v3783 = vpack.c.bf16 %v3751, %v3751
    %v3784 = vpack.c.bf16 %v3752, %v3752
    %v3785 = vpack.c.bf16 %v3753, %v3753
    %v3786 = vpack.c.bf16 %v3754, %v3754
    %v3787 = vpack.c.bf16 %v3755, %v3755
    %v3788 = vpack.c.bf16 %v3756, %v3756
    %v3789 = vpack.c.bf16 %v3757, %v3757
    %v3790 = vpack.c.bf16 %v3758, %v3758
    %v3791 = vpack.c.bf16 %v3759, %v3759
    %v3792 = vpack.c.bf16 %v3760, %v3760
    %v3793 = vpack.c.bf16 %v3761, %v3761
    %v3794 = vpack.c.bf16 %v3762, %v3762
    %v3795 = vpack.c.bf16 %v3763, %v3763
    %v3796 = vpack.c.bf16 %v3764, %v3764
    %v3797 = vpack.c.bf16 %v3765, %v3765
    %v3798 = vpack.c.bf16 %v3766, %v3766
    %v3799 = vpack.c.bf16 %v3767, %v3767
    %v3800 = vpack.c.bf16 %v3768, %v3768
    %v3801 = vpack.c.bf16 %v3769, %v3769
    %v3802 = vpack.c.bf16 %v3770, %v3770
    %v3803 = vpack.c.bf16 %v3771, %v3771
    %v3804 = vpack.c.bf16 %v3772, %v3772
    %v3805 = vpack.c.bf16 %v3773, %v3773
    %v3806 = vpack.c.bf16 %v3774, %v3774
    %v3807 = vpack.c.bf16 %v3775, %v3775
    %v3808 = vpack.c.bf16 %v3776, %v3776
    %v3809 = vpack.c.bf16 %v3777, %v3777
    %v3810 = vpack.c.bf16 %v3778, %v3778
    %v3811 = vpack.c.bf16 %v3779, %v3779
    %3812 = vrot.lane.b32.xlu0 %v453, 96
    %v3813 = vpop.permute.xlu0 %3812
    %3814 = vrot.lane.b32.xlu0 %v454, 96
    %v3815 = vpop.permute.xlu0 %3814
    %3816 = vrot.lane.b32.xlu0 %v455, 96
    %v3817 = vpop.permute.xlu0 %3816
    %3818 = vrot.lane.b32.xlu0 %v456, 96
    %v3819 = vpop.permute.xlu0 %3818
    %v3820 = vrot.slane %v3813, 4
    %v3821 = vrot.slane %v3815, 4
    %v3822 = vrot.slane %v3817, 4
    %v3823 = vrot.slane %v3819, 4
    %v3828 = vunpack.c.l.b16 %v3780
    %v3829 = vunpack.c.l.b16 %v3781
    %v3830 = vunpack.c.l.b16 %v3782
    %v3831 = vunpack.c.l.b16 %v3783
    %v3832 = vpack.c.b16 %v3829, %v3828
    %v3833 = vpack.c.b16 %v3831, %v3830
    %v3834 = vunpack.c.l.b16 %v3820
    %v3835 = vunpack.c.l.b16 %v3821
    %v3836 = vunpack.c.l.b16 %v3822
    %v3837 = vunpack.c.l.b16 %v3823
    %v3838 = vpack.c.b16 %v3835, %v3834
    %v3839 = vpack.c.b16 %v3837, %v3836
    %v3843 = vsel %vm897, %v3832, 0
    %v3846 = vsel %vm897, %v3833, 0
    %3848 = vmatpush.bf16.msra.mxu0 0
    %3849 = vmatpush.bf16.msra.mxu0 0
    %3850 = vmatpush.bf16.msra.mxu0 0
    %3851 = vmatpush.bf16.msra.mxu0 0
    %3852 = vmatpush.bf16.msra.mxu0 0
    %3853 = vmatpush.bf16.msra.mxu0 0
    %3854 = vmatpush.bf16.msra.mxu0 %v3839
    %3855 = vmatpush.bf16.msra.mxu0 %v3838
    %3856 = vmatmul.bf16.gmra.mxu0 %v3843
    %v3857 = vpop.f32.mrf.mxu0
    %v3858 = vadd.f32 0.0, %v3857
    %v3859 = vpop.f32.mrf.mxu0
    %v3860 = vadd.f32 0.0, %v3859
    %3861 = vmatmul.bf16.gmra.mxu0 %v3846
    %v3862 = vpop.f32.mrf.mxu0
    %v3863 = vadd.f32 0.0, %v3862
    %v3864 = vpop.f32.mrf.mxu0
    %v3865 = vadd.f32 0.0, %v3864
    %3866 = vdwg.mxu0
    %3867 = vrot.lane.b32.xlu0 %v457, 96
    %v3868 = vpop.permute.xlu0 %3867
    %3869 = vrot.lane.b32.xlu0 %v458, 96
    %v3870 = vpop.permute.xlu0 %3869
    %3871 = vrot.lane.b32.xlu0 %v459, 96
    %v3872 = vpop.permute.xlu0 %3871
    %3873 = vrot.lane.b32.xlu0 %v460, 96
    %v3874 = vpop.permute.xlu0 %3873
    %v3875 = vrot.slane %v3868, 4
    %v3876 = vrot.slane %v3870, 4
    %v3877 = vrot.slane %v3872, 4
    %v3878 = vrot.slane %v3874, 4
    %v3883 = vunpack.c.l.b16 %v3784
    %v3884 = vunpack.c.l.b16 %v3785
    %v3885 = vunpack.c.l.b16 %v3786
    %v3886 = vunpack.c.l.b16 %v3787
    %v3887 = vpack.c.b16 %v3884, %v3883
    %v3888 = vpack.c.b16 %v3886, %v3885
    %v3889 = vunpack.c.l.b16 %v3875
    %v3890 = vunpack.c.l.b16 %v3876
    %v3891 = vunpack.c.l.b16 %v3877
    %v3892 = vunpack.c.l.b16 %v3878
    %v3893 = vpack.c.b16 %v3890, %v3889
    %v3894 = vpack.c.b16 %v3892, %v3891
    %v3898 = vsel %vm897, %v3887, 0
    %v3901 = vsel %vm897, %v3888, 0
    %3903 = vmatpush.bf16.msra.mxu0 0
    %3904 = vmatpush.bf16.msra.mxu0 0
    %3905 = vmatpush.bf16.msra.mxu0 0
    %3906 = vmatpush.bf16.msra.mxu0 0
    %3907 = vmatpush.bf16.msra.mxu0 0
    %3908 = vmatpush.bf16.msra.mxu0 0
    %3909 = vmatpush.bf16.msra.mxu0 %v3894
    %3910 = vmatpush.bf16.msra.mxu0 %v3893
    %3911 = vmatmul.bf16.gmra.mxu0 %v3898
    %v3912 = vpop.f32.mrf.mxu0
    %v3913 = vadd.f32 0.0, %v3912
    %v3914 = vpop.f32.mrf.mxu0
    %v3915 = vadd.f32 0.0, %v3914
    %3916 = vmatmul.bf16.gmra.mxu0 %v3901
    %v3917 = vpop.f32.mrf.mxu0
    %v3918 = vadd.f32 0.0, %v3917
    %v3919 = vpop.f32.mrf.mxu0
    %v3920 = vadd.f32 0.0, %v3919
    %3921 = vdwg.mxu0
    %3922 = vrot.lane.b32.xlu0 %v461, 96
    %v3923 = vpop.permute.xlu0 %3922
    %3924 = vrot.lane.b32.xlu0 %v462, 96
    %v3925 = vpop.permute.xlu0 %3924
    %3926 = vrot.lane.b32.xlu0 %v463, 96
    %v3927 = vpop.permute.xlu0 %3926
    %3928 = vrot.lane.b32.xlu0 %v464, 96
    %v3929 = vpop.permute.xlu0 %3928
    %v3930 = vrot.slane %v3923, 4
    %v3931 = vrot.slane %v3925, 4
    %v3932 = vrot.slane %v3927, 4
    %v3933 = vrot.slane %v3929, 4
    %v3938 = vunpack.c.l.b16 %v3788
    %v3939 = vunpack.c.l.b16 %v3789
    %v3940 = vunpack.c.l.b16 %v3790
    %v3941 = vunpack.c.l.b16 %v3791
    %v3942 = vpack.c.b16 %v3939, %v3938
    %v3943 = vpack.c.b16 %v3941, %v3940
    %v3944 = vunpack.c.l.b16 %v3930
    %v3945 = vunpack.c.l.b16 %v3931
    %v3946 = vunpack.c.l.b16 %v3932
    %v3947 = vunpack.c.l.b16 %v3933
    %v3948 = vpack.c.b16 %v3945, %v3944
    %v3949 = vpack.c.b16 %v3947, %v3946
    %v3953 = vsel %vm897, %v3942, 0
    %v3956 = vsel %vm897, %v3943, 0
    %3958 = vmatpush.bf16.msra.mxu0 0
    %3959 = vmatpush.bf16.msra.mxu0 0
    %3960 = vmatpush.bf16.msra.mxu0 0
    %3961 = vmatpush.bf16.msra.mxu0 0
    %3962 = vmatpush.bf16.msra.mxu0 0
    %3963 = vmatpush.bf16.msra.mxu0 0
    %3964 = vmatpush.bf16.msra.mxu0 %v3949
    %3965 = vmatpush.bf16.msra.mxu0 %v3948
    %3966 = vmatmul.bf16.gmra.mxu0 %v3953
    %v3967 = vpop.f32.mrf.mxu0
    %v3968 = vadd.f32 0.0, %v3967
    %v3969 = vpop.f32.mrf.mxu0
    %v3970 = vadd.f32 0.0, %v3969
    %3971 = vmatmul.bf16.gmra.mxu0 %v3956
    %v3972 = vpop.f32.mrf.mxu0
    %v3973 = vadd.f32 0.0, %v3972
    %v3974 = vpop.f32.mrf.mxu0
    %v3975 = vadd.f32 0.0, %v3974
    %3976 = vdwg.mxu0
    %3977 = vrot.lane.b32.xlu0 %v465, 96
    %v3978 = vpop.permute.xlu0 %3977
    %3979 = vrot.lane.b32.xlu0 %v466, 96
    %v3980 = vpop.permute.xlu0 %3979
    %3981 = vrot.lane.b32.xlu0 %v467, 96
    %v3982 = vpop.permute.xlu0 %3981
    %3983 = vrot.lane.b32.xlu0 %v468, 96
    %v3984 = vpop.permute.xlu0 %3983
    %v3985 = vrot.slane %v3978, 4
    %v3986 = vrot.slane %v3980, 4
    %v3987 = vrot.slane %v3982, 4
    %v3988 = vrot.slane %v3984, 4
    %v3993 = vunpack.c.l.b16 %v3792
    %v3994 = vunpack.c.l.b16 %v3793
    %v3995 = vunpack.c.l.b16 %v3794
    %v3996 = vunpack.c.l.b16 %v3795
    %v3997 = vpack.c.b16 %v3994, %v3993
    %v3998 = vpack.c.b16 %v3996, %v3995
    %v3999 = vunpack.c.l.b16 %v3985
    %v4000 = vunpack.c.l.b16 %v3986
    %v4001 = vunpack.c.l.b16 %v3987
    %v4002 = vunpack.c.l.b16 %v3988
    %v4003 = vpack.c.b16 %v4000, %v3999
    %v4004 = vpack.c.b16 %v4002, %v4001
    %v4008 = vsel %vm897, %v3997, 0
    %v4011 = vsel %vm897, %v3998, 0
    %4013 = vmatpush.bf16.msra.mxu0 0
    %4014 = vmatpush.bf16.msra.mxu0 0
    %4015 = vmatpush.bf16.msra.mxu0 0
    %4016 = vmatpush.bf16.msra.mxu0 0
    %4017 = vmatpush.bf16.msra.mxu0 0
    %4018 = vmatpush.bf16.msra.mxu0 0
    %4019 = vmatpush.bf16.msra.mxu0 %v4004
    %4020 = vmatpush.bf16.msra.mxu0 %v4003
    %4021 = vmatmul.bf16.gmra.mxu0 %v4008
    %v4022 = vpop.f32.mrf.mxu0
    %v4023 = vadd.f32 0.0, %v4022
    %v4024 = vpop.f32.mrf.mxu0
    %v4025 = vadd.f32 0.0, %v4024
    %4026 = vmatmul.bf16.gmra.mxu0 %v4011
    %v4027 = vpop.f32.mrf.mxu0
    %v4028 = vadd.f32 0.0, %v4027
    %v4029 = vpop.f32.mrf.mxu0
    %v4030 = vadd.f32 0.0, %v4029
    %4031 = vdwg.mxu0
    %4032 = vrot.lane.b32.xlu0 %v469, 96
    %v4033 = vpop.permute.xlu0 %4032
    %4034 = vrot.lane.b32.xlu0 %v470, 96
    %v4035 = vpop.permute.xlu0 %4034
    %4036 = vrot.lane.b32.xlu0 %v471, 96
    %v4037 = vpop.permute.xlu0 %4036
    %4038 = vrot.lane.b32.xlu0 %v472, 96
    %v4039 = vpop.permute.xlu0 %4038
    %v4040 = vrot.slane %v4033, 4
    %v4041 = vrot.slane %v4035, 4
    %v4042 = vrot.slane %v4037, 4
    %v4043 = vrot.slane %v4039, 4
    %v4048 = vunpack.c.l.b16 %v3796
    %v4049 = vunpack.c.l.b16 %v3797
    %v4050 = vunpack.c.l.b16 %v3798
    %v4051 = vunpack.c.l.b16 %v3799
    %v4052 = vpack.c.b16 %v4049, %v4048
    %v4053 = vpack.c.b16 %v4051, %v4050
    %v4054 = vunpack.c.l.b16 %v4040
    %v4055 = vunpack.c.l.b16 %v4041
    %v4056 = vunpack.c.l.b16 %v4042
    %v4057 = vunpack.c.l.b16 %v4043
    %v4058 = vpack.c.b16 %v4055, %v4054
    %v4059 = vpack.c.b16 %v4057, %v4056
    %v4063 = vsel %vm897, %v4052, 0
    %v4066 = vsel %vm897, %v4053, 0
    %4068 = vmatpush.bf16.msra.mxu0 0
    %4069 = vmatpush.bf16.msra.mxu0 0
    %4070 = vmatpush.bf16.msra.mxu0 0
    %4071 = vmatpush.bf16.msra.mxu0 0
    %4072 = vmatpush.bf16.msra.mxu0 0
    %4073 = vmatpush.bf16.msra.mxu0 0
    %4074 = vmatpush.bf16.msra.mxu0 %v4059
    %4075 = vmatpush.bf16.msra.mxu0 %v4058
    %4076 = vmatmul.bf16.gmra.mxu0 %v4063
    %v4077 = vpop.f32.mrf.mxu0
    %v4078 = vadd.f32 0.0, %v4077
    %v4079 = vpop.f32.mrf.mxu0
    %v4080 = vadd.f32 0.0, %v4079
    %4081 = vmatmul.bf16.gmra.mxu0 %v4066
    %v4082 = vpop.f32.mrf.mxu0
    %v4083 = vadd.f32 0.0, %v4082
    %v4084 = vpop.f32.mrf.mxu0
    %v4085 = vadd.f32 0.0, %v4084
    %4086 = vdwg.mxu0
    %4087 = vrot.lane.b32.xlu0 %v473, 96
    %v4088 = vpop.permute.xlu0 %4087
    %4089 = vrot.lane.b32.xlu0 %v474, 96
    %v4090 = vpop.permute.xlu0 %4089
    %4091 = vrot.lane.b32.xlu0 %v475, 96
    %v4092 = vpop.permute.xlu0 %4091
    %4093 = vrot.lane.b32.xlu0 %v476, 96
    %v4094 = vpop.permute.xlu0 %4093
    %v4095 = vrot.slane %v4088, 4
    %v4096 = vrot.slane %v4090, 4
    %v4097 = vrot.slane %v4092, 4
    %v4098 = vrot.slane %v4094, 4
    %v4103 = vunpack.c.l.b16 %v3800
    %v4104 = vunpack.c.l.b16 %v3801
    %v4105 = vunpack.c.l.b16 %v3802
    %v4106 = vunpack.c.l.b16 %v3803
    %v4107 = vpack.c.b16 %v4104, %v4103
    %v4108 = vpack.c.b16 %v4106, %v4105
    %v4109 = vunpack.c.l.b16 %v4095
    %v4110 = vunpack.c.l.b16 %v4096
    %v4111 = vunpack.c.l.b16 %v4097
    %v4112 = vunpack.c.l.b16 %v4098
    %v4113 = vpack.c.b16 %v4110, %v4109
    %v4114 = vpack.c.b16 %v4112, %v4111
    %v4118 = vsel %vm897, %v4107, 0
    %v4121 = vsel %vm897, %v4108, 0
    %4123 = vmatpush.bf16.msra.mxu0 0
    %4124 = vmatpush.bf16.msra.mxu0 0
    %4125 = vmatpush.bf16.msra.mxu0 0
    %4126 = vmatpush.bf16.msra.mxu0 0
    %4127 = vmatpush.bf16.msra.mxu0 0
    %4128 = vmatpush.bf16.msra.mxu0 0
    %4129 = vmatpush.bf16.msra.mxu0 %v4114
    %4130 = vmatpush.bf16.msra.mxu0 %v4113
    %4131 = vmatmul.bf16.gmra.mxu0 %v4118
    %v4132 = vpop.f32.mrf.mxu0
    %v4133 = vadd.f32 0.0, %v4132
    %v4134 = vpop.f32.mrf.mxu0
    %v4135 = vadd.f32 0.0, %v4134
    %4136 = vmatmul.bf16.gmra.mxu0 %v4121
    %v4137 = vpop.f32.mrf.mxu0
    %v4138 = vadd.f32 0.0, %v4137
    %v4139 = vpop.f32.mrf.mxu0
    %v4140 = vadd.f32 0.0, %v4139
    %4141 = vdwg.mxu0
    %4142 = vrot.lane.b32.xlu0 %v477, 96
    %v4143 = vpop.permute.xlu0 %4142
    %4144 = vrot.lane.b32.xlu0 %v478, 96
    %v4145 = vpop.permute.xlu0 %4144
    %4146 = vrot.lane.b32.xlu0 %v479, 96
    %v4147 = vpop.permute.xlu0 %4146
    %4148 = vrot.lane.b32.xlu0 %v480, 96
    %v4149 = vpop.permute.xlu0 %4148
    %v4150 = vrot.slane %v4143, 4
    %v4151 = vrot.slane %v4145, 4
    %v4152 = vrot.slane %v4147, 4
    %v4153 = vrot.slane %v4149, 4
    %v4158 = vunpack.c.l.b16 %v3804
    %v4159 = vunpack.c.l.b16 %v3805
    %v4160 = vunpack.c.l.b16 %v3806
    %v4161 = vunpack.c.l.b16 %v3807
    %v4162 = vpack.c.b16 %v4159, %v4158
    %v4163 = vpack.c.b16 %v4161, %v4160
    %v4164 = vunpack.c.l.b16 %v4150
    %v4165 = vunpack.c.l.b16 %v4151
    %v4166 = vunpack.c.l.b16 %v4152
    %v4167 = vunpack.c.l.b16 %v4153
    %v4168 = vpack.c.b16 %v4165, %v4164
    %v4169 = vpack.c.b16 %v4167, %v4166
    %v4173 = vsel %vm897, %v4162, 0
    %v4176 = vsel %vm897, %v4163, 0
    %4178 = vmatpush.bf16.msra.mxu0 0
    %4179 = vmatpush.bf16.msra.mxu0 0
    %4180 = vmatpush.bf16.msra.mxu0 0
    %4181 = vmatpush.bf16.msra.mxu0 0
    %4182 = vmatpush.bf16.msra.mxu0 0
    %4183 = vmatpush.bf16.msra.mxu0 0
    %4184 = vmatpush.bf16.msra.mxu0 %v4169
    %4185 = vmatpush.bf16.msra.mxu0 %v4168
    %4186 = vmatmul.bf16.gmra.mxu0 %v4173
    %v4187 = vpop.f32.mrf.mxu0
    %v4188 = vadd.f32 0.0, %v4187
    %v4189 = vpop.f32.mrf.mxu0
    %v4190 = vadd.f32 0.0, %v4189
    %4191 = vmatmul.bf16.gmra.mxu0 %v4176
    %v4192 = vpop.f32.mrf.mxu0
    %v4193 = vadd.f32 0.0, %v4192
    %v4194 = vpop.f32.mrf.mxu0
    %v4195 = vadd.f32 0.0, %v4194
    %4196 = vdwg.mxu0
    %4197 = vrot.lane.b32.xlu0 %v481, 96
    %v4198 = vpop.permute.xlu0 %4197
    %4199 = vrot.lane.b32.xlu0 %v482, 96
    %v4200 = vpop.permute.xlu0 %4199
    %4201 = vrot.lane.b32.xlu0 %v483, 96
    %v4202 = vpop.permute.xlu0 %4201
    %4203 = vrot.lane.b32.xlu0 %v484, 96
    %v4204 = vpop.permute.xlu0 %4203
    %v4205 = vrot.slane %v4198, 4
    %v4206 = vrot.slane %v4200, 4
    %v4207 = vrot.slane %v4202, 4
    %v4208 = vrot.slane %v4204, 4
    %v4213 = vunpack.c.l.b16 %v3808
    %v4214 = vunpack.c.l.b16 %v3809
    %v4215 = vunpack.c.l.b16 %v3810
    %v4216 = vunpack.c.l.b16 %v3811
    %v4217 = vpack.c.b16 %v4214, %v4213
    %v4218 = vpack.c.b16 %v4216, %v4215
    %v4219 = vunpack.c.l.b16 %v4205
    %v4220 = vunpack.c.l.b16 %v4206
    %v4221 = vunpack.c.l.b16 %v4207
    %v4222 = vunpack.c.l.b16 %v4208
    %v4223 = vpack.c.b16 %v4220, %v4219
    %v4224 = vpack.c.b16 %v4222, %v4221
    %v4228 = vsel %vm897, %v4217, 0
    %v4231 = vsel %vm897, %v4218, 0
    %4233 = vmatpush.bf16.msra.mxu0 0
    %4234 = vmatpush.bf16.msra.mxu0 0
    %4235 = vmatpush.bf16.msra.mxu0 0
    %4236 = vmatpush.bf16.msra.mxu0 0
    %4237 = vmatpush.bf16.msra.mxu0 0
    %4238 = vmatpush.bf16.msra.mxu0 0
    %4239 = vmatpush.bf16.msra.mxu0 %v4224
    %4240 = vmatpush.bf16.msra.mxu0 %v4223
    %4241 = vmatmul.bf16.gmra.mxu0 %v4228
    %v4242 = vpop.f32.mrf.mxu0
    %v4243 = vadd.f32 0.0, %v4242
    %v4244 = vpop.f32.mrf.mxu0
    %v4245 = vadd.f32 0.0, %v4244
    %4246 = vmatmul.bf16.gmra.mxu0 %v4231
    %v4247 = vpop.f32.mrf.mxu0
    %v4248 = vadd.f32 0.0, %v4247
    %v4249 = vpop.f32.mrf.mxu0
    %v4250 = vadd.f32 0.0, %v4249
    %4251 = vdwg.mxu0
    %v4252 = vpack.c.bf16 %v3858, %v3858
    %v4253 = vpack.c.bf16 %v3860, %v3860
    %v4254 = vpack.c.bf16 %v3863, %v3863
    %v4255 = vpack.c.bf16 %v3865, %v3865
    %v4256 = vpack.c.bf16 %v3913, %v3913
    %v4257 = vpack.c.bf16 %v3915, %v3915
    %v4258 = vpack.c.bf16 %v3918, %v3918
    %v4259 = vpack.c.bf16 %v3920, %v3920
    %v4260 = vpack.c.bf16 %v3968, %v3968
    %v4261 = vpack.c.bf16 %v3970, %v3970
    %v4262 = vpack.c.bf16 %v3973, %v3973
    %v4263 = vpack.c.bf16 %v3975, %v3975
    %v4264 = vpack.c.bf16 %v4023, %v4023
    %v4265 = vpack.c.bf16 %v4025, %v4025
    %v4266 = vpack.c.bf16 %v4028, %v4028
    %v4267 = vpack.c.bf16 %v4030, %v4030
    %v4268 = vpack.c.bf16 %v4078, %v4078
    %v4269 = vpack.c.bf16 %v4080, %v4080
    %v4270 = vpack.c.bf16 %v4083, %v4083
    %v4271 = vpack.c.bf16 %v4085, %v4085
    %v4272 = vpack.c.bf16 %v4133, %v4133
    %v4273 = vpack.c.bf16 %v4135, %v4135
    %v4274 = vpack.c.bf16 %v4138, %v4138
    %v4275 = vpack.c.bf16 %v4140, %v4140
    %v4276 = vpack.c.bf16 %v4188, %v4188
    %v4277 = vpack.c.bf16 %v4190, %v4190
    %v4278 = vpack.c.bf16 %v4193, %v4193
    %v4279 = vpack.c.bf16 %v4195, %v4195
    %v4280 = vpack.c.bf16 %v4243, %v4243
    %v4281 = vpack.c.bf16 %v4245, %v4245
    %v4282 = vpack.c.bf16 %v4248, %v4248
    %v4283 = vpack.c.bf16 %v4250, %v4250
    %4316 = vrot.lane.b32.xlu0 %v4252, 32
    %v4317 = vpop.permute.xlu0 %4316
    %4318 = vrot.lane.b32.xlu0 %v4253, 32
    %v4319 = vpop.permute.xlu0 %4318
    %4320 = vrot.lane.b32.xlu0 %v4254, 32
    %v4321 = vpop.permute.xlu0 %4320
    %4322 = vrot.lane.b32.xlu0 %v4255, 32
    %v4323 = vpop.permute.xlu0 %4322
    %4324 = vrot.lane.b32.xlu0 %v4256, 32
    %v4325 = vpop.permute.xlu0 %4324
    %4326 = vrot.lane.b32.xlu0 %v4257, 32
    %v4327 = vpop.permute.xlu0 %4326
    %4328 = vrot.lane.b32.xlu0 %v4258, 32
    %v4329 = vpop.permute.xlu0 %4328
    %4330 = vrot.lane.b32.xlu0 %v4259, 32
    %v4331 = vpop.permute.xlu0 %4330
    %4332 = vrot.lane.b32.xlu0 %v4260, 32
    %v4333 = vpop.permute.xlu0 %4332
    %4334 = vrot.lane.b32.xlu0 %v4261, 32
    %v4335 = vpop.permute.xlu0 %4334
    %4336 = vrot.lane.b32.xlu0 %v4262, 32
    %v4337 = vpop.permute.xlu0 %4336
    %4338 = vrot.lane.b32.xlu0 %v4263, 32
    %v4339 = vpop.permute.xlu0 %4338
    %4340 = vrot.lane.b32.xlu0 %v4264, 32
    %v4341 = vpop.permute.xlu0 %4340
    %4342 = vrot.lane.b32.xlu0 %v4265, 32
    %v4343 = vpop.permute.xlu0 %4342
    %4344 = vrot.lane.b32.xlu0 %v4266, 32
    %v4345 = vpop.permute.xlu0 %4344
    %4346 = vrot.lane.b32.xlu0 %v4267, 32
    %v4347 = vpop.permute.xlu0 %4346
    %4348 = vrot.lane.b32.xlu0 %v4268, 32
    %v4349 = vpop.permute.xlu0 %4348
    %4350 = vrot.lane.b32.xlu0 %v4269, 32
    %v4351 = vpop.permute.xlu0 %4350
    %4352 = vrot.lane.b32.xlu0 %v4270, 32
    %v4353 = vpop.permute.xlu0 %4352
    %4354 = vrot.lane.b32.xlu0 %v4271, 32
    %v4355 = vpop.permute.xlu0 %4354
    %4356 = vrot.lane.b32.xlu0 %v4272, 32
    %v4357 = vpop.permute.xlu0 %4356
    %4358 = vrot.lane.b32.xlu0 %v4273, 32
    %v4359 = vpop.permute.xlu0 %4358
    %4360 = vrot.lane.b32.xlu0 %v4274, 32
    %v4361 = vpop.permute.xlu0 %4360
    %4362 = vrot.lane.b32.xlu0 %v4275, 32
    %v4363 = vpop.permute.xlu0 %4362
    %4364 = vrot.lane.b32.xlu0 %v4276, 32
    %v4365 = vpop.permute.xlu0 %4364
    %4366 = vrot.lane.b32.xlu0 %v4277, 32
    %v4367 = vpop.permute.xlu0 %4366
    %4368 = vrot.lane.b32.xlu0 %v4278, 32
    %v4369 = vpop.permute.xlu0 %4368
    %4370 = vrot.lane.b32.xlu0 %v4279, 32
    %v4371 = vpop.permute.xlu0 %4370
    %4372 = vrot.lane.b32.xlu0 %v4280, 32
    %v4373 = vpop.permute.xlu0 %4372
    %4374 = vrot.lane.b32.xlu0 %v4281, 32
    %v4375 = vpop.permute.xlu0 %4374
    %4376 = vrot.lane.b32.xlu0 %v4282, 32
    %v4377 = vpop.permute.xlu0 %4376
    %4378 = vrot.lane.b32.xlu0 %v4283, 32
    %v4379 = vpop.permute.xlu0 %4378
    %vm4412 = vcmask 388352
    %4413 = vst.msk [vmem:[#allocation2] sm:$0xf] %vm4412, %v4317
    %4414 = vst.msk [vmem:[#allocation2 + $0x4] sm:$0xf] %vm4412, %v4319
    %4415 = vst.msk [vmem:[#allocation2 + $0x8] sm:$0xf] %vm4412, %v4321
    %4416 = vst.msk [vmem:[#allocation2 + $0xc] sm:$0xf] %vm4412, %v4323
    %4417 = vst.msk [vmem:[#allocation2 + $0x10] sm:$0xf] %vm4412, %v4325
    %4418 = vst.msk [vmem:[#allocation2 + $0x14] sm:$0xf] %vm4412, %v4327
    %4419 = vst.msk [vmem:[#allocation2 + $0x18] sm:$0xf] %vm4412, %v4329
    %4420 = vst.msk [vmem:[#allocation2 + $0x1c] sm:$0xf] %vm4412, %v4331
    %4421 = vst.msk [vmem:[#allocation2 + $0x20] sm:$0xf] %vm4412, %v4333
    %4422 = vst.msk [vmem:[#allocation2 + $0x24] sm:$0xf] %vm4412, %v4335
    %4423 = vst.msk [vmem:[#allocation2 + $0x28] sm:$0xf] %vm4412, %v4337
    %4424 = vst.msk [vmem:[#allocation2 + $0x2c] sm:$0xf] %vm4412, %v4339
    %4425 = vst.msk [vmem:[#allocation2 + $0x30] sm:$0xf] %vm4412, %v4341
    %4426 = vst.msk [vmem:[#allocation2 + $0x34] sm:$0xf] %vm4412, %v4343
    %4427 = vst.msk [vmem:[#allocation2 + $0x38] sm:$0xf] %vm4412, %v4345
    %4428 = vst.msk [vmem:[#allocation2 + $0x3c] sm:$0xf] %vm4412, %v4347
    %4429 = vst.msk [vmem:[#allocation2 + $0x40] sm:$0xf] %vm4412, %v4349
    %4430 = vst.msk [vmem:[#allocation2 + $0x44] sm:$0xf] %vm4412, %v4351
    %4431 = vst.msk [vmem:[#allocation2 + $0x48] sm:$0xf] %vm4412, %v4353
    %4432 = vst.msk [vmem:[#allocation2 + $0x4c] sm:$0xf] %vm4412, %v4355
    %4433 = vst.msk [vmem:[#allocation2 + $0x50] sm:$0xf] %vm4412, %v4357
    %4434 = vst.msk [vmem:[#allocation2 + $0x54] sm:$0xf] %vm4412, %v4359
    %4435 = vst.msk [vmem:[#allocation2 + $0x58] sm:$0xf] %vm4412, %v4361
    %4436 = vst.msk [vmem:[#allocation2 + $0x5c] sm:$0xf] %vm4412, %v4363
    %4437 = vst.msk [vmem:[#allocation2 + $0x60] sm:$0xf] %vm4412, %v4365
    %4438 = vst.msk [vmem:[#allocation2 + $0x64] sm:$0xf] %vm4412, %v4367
    %4439 = vst.msk [vmem:[#allocation2 + $0x68] sm:$0xf] %vm4412, %v4369
    %4440 = vst.msk [vmem:[#allocation2 + $0x6c] sm:$0xf] %vm4412, %v4371
    %4441 = vst.msk [vmem:[#allocation2 + $0x70] sm:$0xf] %vm4412, %v4373
    %4442 = vst.msk [vmem:[#allocation2 + $0x74] sm:$0xf] %vm4412, %v4375
    %4443 = vst.msk [vmem:[#allocation2 + $0x78] sm:$0xf] %vm4412, %v4377
    %4444 = vst.msk [vmem:[#allocation2 + $0x7c] sm:$0xf] %vm4412, %v4379
    %4445 = vrot.lane.b32.xlu0 %v504, 80
    %v4446 = vpop.permute.xlu0 %4445
    %4447 = vrot.lane.b32.xlu0 %v505, 80
    %v4448 = vpop.permute.xlu0 %4447
    %4449 = vrot.lane.b32.xlu0 %v504, 16
    %v4450 = vpop.permute.xlu0 %4449
    %4451 = vrot.lane.b32.xlu0 %v505, 16
    %v4452 = vpop.permute.xlu0 %4451
    %v4454 = vsel %vm510, %v4446, 0
    %v4457 = vsel %vm510, %v4448, 0
    %v4460 = vsel %vm510, %v4450, 0
    %v4463 = vsel %vm510, %v4452, 0
    %4465 = vmatpush.bf16.xpose.msra.mxu0 0
    %4466 = vmatpush.bf16.xpose.msra.mxu0 0
    %4467 = vmatpush.bf16.xpose.msra.mxu0 0
    %4468 = vmatpush.bf16.xpose.msra.mxu0 0
    %4469 = vmatpush.bf16.xpose.msra.mxu0 0
    %4470 = vmatpush.bf16.xpose.msra.mxu0 0
    %4471 = vmatpush.bf16.xpose.msra.mxu0 %v4463
    %4472 = vmatpush.bf16.xpose.msra.mxu0 %v4460
    %4473 = vmatmul.bf16.gmra.mxu0 %v4454
    %v4474 = vpop.f32.mrf.mxu0
    %v4475 = vadd.f32 0.0, %v4474
    %v4476 = vpop.f32.mrf.mxu0
    %v4477 = vadd.f32 0.0, %v4476
    %4478 = vmatmul.bf16.gmra.mxu0 %v4457
    %v4479 = vpop.f32.mrf.mxu0
    %v4480 = vadd.f32 0.0, %v4479
    %v4481 = vpop.f32.mrf.mxu0
    %v4482 = vadd.f32 0.0, %v4481
    %4483 = vdwg.mxu0
    %4484 = vrot.lane.b32.xlu0 %v550, 80
    %v4485 = vpop.permute.xlu0 %4484
    %4486 = vrot.lane.b32.xlu0 %v551, 80
    %v4487 = vpop.permute.xlu0 %4486
    %4488 = vrot.lane.b32.xlu0 %v550, 16
    %v4489 = vpop.permute.xlu0 %4488
    %4490 = vrot.lane.b32.xlu0 %v551, 16
    %v4491 = vpop.permute.xlu0 %4490
    %v4493 = vsel %vm510, %v4485, 0
    %v4496 = vsel %vm510, %v4487, 0
    %v4499 = vsel %vm510, %v4489, 0
    %v4502 = vsel %vm510, %v4491, 0
    %4504 = vmatpush.bf16.xpose.msra.mxu0 0
    %4505 = vmatpush.bf16.xpose.msra.mxu0 0
    %4506 = vmatpush.bf16.xpose.msra.mxu0 0
    %4507 = vmatpush.bf16.xpose.msra.mxu0 0
    %4508 = vmatpush.bf16.xpose.msra.mxu0 0
    %4509 = vmatpush.bf16.xpose.msra.mxu0 0
    %4510 = vmatpush.bf16.xpose.msra.mxu0 %v4502
    %4511 = vmatpush.bf16.xpose.msra.mxu0 %v4499
    %4512 = vmatmul.bf16.gmra.mxu0 %v4493
    %v4513 = vpop.f32.mrf.mxu0
    %v4514 = vadd.f32 0.0, %v4513
    %v4515 = vpop.f32.mrf.mxu0
    %v4516 = vadd.f32 0.0, %v4515
    %4517 = vmatmul.bf16.gmra.mxu0 %v4496
    %v4518 = vpop.f32.mrf.mxu0
    %v4519 = vadd.f32 0.0, %v4518
    %v4520 = vpop.f32.mrf.mxu0
    %v4521 = vadd.f32 0.0, %v4520
    %4522 = vdwg.mxu0
    %4523 = vrot.lane.b32.xlu0 %v595, 80
    %v4524 = vpop.permute.xlu0 %4523
    %4525 = vrot.lane.b32.xlu0 %v596, 80
    %v4526 = vpop.permute.xlu0 %4525
    %4527 = vrot.lane.b32.xlu0 %v595, 16
    %v4528 = vpop.permute.xlu0 %4527
    %4529 = vrot.lane.b32.xlu0 %v596, 16
    %v4530 = vpop.permute.xlu0 %4529
    %v4532 = vsel %vm510, %v4524, 0
    %v4535 = vsel %vm510, %v4526, 0
    %v4538 = vsel %vm510, %v4528, 0
    %v4541 = vsel %vm510, %v4530, 0
    %4543 = vmatpush.bf16.xpose.msra.mxu0 0
    %4544 = vmatpush.bf16.xpose.msra.mxu0 0
    %4545 = vmatpush.bf16.xpose.msra.mxu0 0
    %4546 = vmatpush.bf16.xpose.msra.mxu0 0
    %4547 = vmatpush.bf16.xpose.msra.mxu0 0
    %4548 = vmatpush.bf16.xpose.msra.mxu0 0
    %4549 = vmatpush.bf16.xpose.msra.mxu0 %v4541
    %4550 = vmatpush.bf16.xpose.msra.mxu0 %v4538
    %4551 = vmatmul.bf16.gmra.mxu0 %v4532
    %v4552 = vpop.f32.mrf.mxu0
    %v4553 = vadd.f32 0.0, %v4552
    %v4554 = vpop.f32.mrf.mxu0
    %v4555 = vadd.f32 0.0, %v4554
    %4556 = vmatmul.bf16.gmra.mxu0 %v4535
    %v4557 = vpop.f32.mrf.mxu0
    %v4558 = vadd.f32 0.0, %v4557
    %v4559 = vpop.f32.mrf.mxu0
    %v4560 = vadd.f32 0.0, %v4559
    %4561 = vdwg.mxu0
    %4562 = vrot.lane.b32.xlu0 %v640, 80
    %v4563 = vpop.permute.xlu0 %4562
    %4564 = vrot.lane.b32.xlu0 %v641, 80
    %v4565 = vpop.permute.xlu0 %4564
    %4566 = vrot.lane.b32.xlu0 %v640, 16
    %v4567 = vpop.permute.xlu0 %4566
    %4568 = vrot.lane.b32.xlu0 %v641, 16
    %v4569 = vpop.permute.xlu0 %4568
    %v4571 = vsel %vm510, %v4563, 0
    %v4574 = vsel %vm510, %v4565, 0
    %v4577 = vsel %vm510, %v4567, 0
    %v4580 = vsel %vm510, %v4569, 0
    %4582 = vmatpush.bf16.xpose.msra.mxu0 0
    %4583 = vmatpush.bf16.xpose.msra.mxu0 0
    %4584 = vmatpush.bf16.xpose.msra.mxu0 0
    %4585 = vmatpush.bf16.xpose.msra.mxu0 0
    %4586 = vmatpush.bf16.xpose.msra.mxu0 0
    %4587 = vmatpush.bf16.xpose.msra.mxu0 0
    %4588 = vmatpush.bf16.xpose.msra.mxu0 %v4580
    %4589 = vmatpush.bf16.xpose.msra.mxu0 %v4577
    %4590 = vmatmul.bf16.gmra.mxu0 %v4571
    %v4591 = vpop.f32.mrf.mxu0
    %v4592 = vadd.f32 0.0, %v4591
    %v4593 = vpop.f32.mrf.mxu0
    %v4594 = vadd.f32 0.0, %v4593
    %4595 = vmatmul.bf16.gmra.mxu0 %v4574
    %v4596 = vpop.f32.mrf.mxu0
    %v4597 = vadd.f32 0.0, %v4596
    %v4598 = vpop.f32.mrf.mxu0
    %v4599 = vadd.f32 0.0, %v4598
    %4600 = vdwg.mxu0
    %4601 = vrot.lane.b32.xlu0 %v685, 80
    %v4602 = vpop.permute.xlu0 %4601
    %4603 = vrot.lane.b32.xlu0 %v686, 80
    %v4604 = vpop.permute.xlu0 %4603
    %4605 = vrot.lane.b32.xlu0 %v685, 16
    %v4606 = vpop.permute.xlu0 %4605
    %4607 = vrot.lane.b32.xlu0 %v686, 16
    %v4608 = vpop.permute.xlu0 %4607
    %v4610 = vsel %vm510, %v4602, 0
    %v4613 = vsel %vm510, %v4604, 0
    %v4616 = vsel %vm510, %v4606, 0
    %v4619 = vsel %vm510, %v4608, 0
    %4621 = vmatpush.bf16.xpose.msra.mxu0 0
    %4622 = vmatpush.bf16.xpose.msra.mxu0 0
    %4623 = vmatpush.bf16.xpose.msra.mxu0 0
    %4624 = vmatpush.bf16.xpose.msra.mxu0 0
    %4625 = vmatpush.bf16.xpose.msra.mxu0 0
    %4626 = vmatpush.bf16.xpose.msra.mxu0 0
    %4627 = vmatpush.bf16.xpose.msra.mxu0 %v4619
    %4628 = vmatpush.bf16.xpose.msra.mxu0 %v4616
    %4629 = vmatmul.bf16.gmra.mxu0 %v4610
    %v4630 = vpop.f32.mrf.mxu0
    %v4631 = vadd.f32 0.0, %v4630
    %v4632 = vpop.f32.mrf.mxu0
    %v4633 = vadd.f32 0.0, %v4632
    %4634 = vmatmul.bf16.gmra.mxu0 %v4613
    %v4635 = vpop.f32.mrf.mxu0
    %v4636 = vadd.f32 0.0, %v4635
    %v4637 = vpop.f32.mrf.mxu0
    %v4638 = vadd.f32 0.0, %v4637
    %4639 = vdwg.mxu0
    %4640 = vrot.lane.b32.xlu0 %v730, 80
    %v4641 = vpop.permute.xlu0 %4640
    %4642 = vrot.lane.b32.xlu0 %v731, 80
    %v4643 = vpop.permute.xlu0 %4642
    %4644 = vrot.lane.b32.xlu0 %v730, 16
    %v4645 = vpop.permute.xlu0 %4644
    %4646 = vrot.lane.b32.xlu0 %v731, 16
    %v4647 = vpop.permute.xlu0 %4646
    %v4649 = vsel %vm510, %v4641, 0
    %v4652 = vsel %vm510, %v4643, 0
    %v4655 = vsel %vm510, %v4645, 0
    %v4658 = vsel %vm510, %v4647, 0
    %4660 = vmatpush.bf16.xpose.msra.mxu0 0
    %4661 = vmatpush.bf16.xpose.msra.mxu0 0
    %4662 = vmatpush.bf16.xpose.msra.mxu0 0
    %4663 = vmatpush.bf16.xpose.msra.mxu0 0
    %4664 = vmatpush.bf16.xpose.msra.mxu0 0
    %4665 = vmatpush.bf16.xpose.msra.mxu0 0
    %4666 = vmatpush.bf16.xpose.msra.mxu0 %v4658
    %4667 = vmatpush.bf16.xpose.msra.mxu0 %v4655
    %4668 = vmatmul.bf16.gmra.mxu0 %v4649
    %v4669 = vpop.f32.mrf.mxu0
    %v4670 = vadd.f32 0.0, %v4669
    %v4671 = vpop.f32.mrf.mxu0
    %v4672 = vadd.f32 0.0, %v4671
    %4673 = vmatmul.bf16.gmra.mxu0 %v4652
    %v4674 = vpop.f32.mrf.mxu0
    %v4675 = vadd.f32 0.0, %v4674
    %v4676 = vpop.f32.mrf.mxu0
    %v4677 = vadd.f32 0.0, %v4676
    %4678 = vdwg.mxu0
    %4679 = vrot.lane.b32.xlu0 %v775, 80
    %v4680 = vpop.permute.xlu0 %4679
    %4681 = vrot.lane.b32.xlu0 %v776, 80
    %v4682 = vpop.permute.xlu0 %4681
    %4683 = vrot.lane.b32.xlu0 %v775, 16
    %v4684 = vpop.permute.xlu0 %4683
    %4685 = vrot.lane.b32.xlu0 %v776, 16
    %v4686 = vpop.permute.xlu0 %4685
    %v4688 = vsel %vm510, %v4680, 0
    %v4691 = vsel %vm510, %v4682, 0
    %v4694 = vsel %vm510, %v4684, 0
    %v4697 = vsel %vm510, %v4686, 0
    %4699 = vmatpush.bf16.xpose.msra.mxu0 0
    %4700 = vmatpush.bf16.xpose.msra.mxu0 0
    %4701 = vmatpush.bf16.xpose.msra.mxu0 0
    %4702 = vmatpush.bf16.xpose.msra.mxu0 0
    %4703 = vmatpush.bf16.xpose.msra.mxu0 0
    %4704 = vmatpush.bf16.xpose.msra.mxu0 0
    %4705 = vmatpush.bf16.xpose.msra.mxu0 %v4697
    %4706 = vmatpush.bf16.xpose.msra.mxu0 %v4694
    %4707 = vmatmul.bf16.gmra.mxu0 %v4688
    %v4708 = vpop.f32.mrf.mxu0
    %v4709 = vadd.f32 0.0, %v4708
    %v4710 = vpop.f32.mrf.mxu0
    %v4711 = vadd.f32 0.0, %v4710
    %4712 = vmatmul.bf16.gmra.mxu0 %v4691
    %v4713 = vpop.f32.mrf.mxu0
    %v4714 = vadd.f32 0.0, %v4713
    %v4715 = vpop.f32.mrf.mxu0
    %v4716 = vadd.f32 0.0, %v4715
    %4717 = vdwg.mxu0
    %4718 = vrot.lane.b32.xlu0 %v820, 80
    %v4719 = vpop.permute.xlu0 %4718
    %4720 = vrot.lane.b32.xlu0 %v821, 80
    %v4721 = vpop.permute.xlu0 %4720
    %4722 = vrot.lane.b32.xlu0 %v820, 16
    %v4723 = vpop.permute.xlu0 %4722
    %4724 = vrot.lane.b32.xlu0 %v821, 16
    %v4725 = vpop.permute.xlu0 %4724
    %v4727 = vsel %vm510, %v4719, 0
    %v4730 = vsel %vm510, %v4721, 0
    %v4733 = vsel %vm510, %v4723, 0
    %v4736 = vsel %vm510, %v4725, 0
    %4738 = vmatpush.bf16.xpose.msra.mxu0 0
    %4739 = vmatpush.bf16.xpose.msra.mxu0 0
    %4740 = vmatpush.bf16.xpose.msra.mxu0 0
    %4741 = vmatpush.bf16.xpose.msra.mxu0 0
    %4742 = vmatpush.bf16.xpose.msra.mxu0 0
    %4743 = vmatpush.bf16.xpose.msra.mxu0 0
    %4744 = vmatpush.bf16.xpose.msra.mxu0 %v4736
    %4745 = vmatpush.bf16.xpose.msra.mxu0 %v4733
    %4746 = vmatmul.bf16.gmra.mxu0 %v4727
    %v4747 = vpop.f32.mrf.mxu0
    %v4748 = vadd.f32 0.0, %v4747
    %v4749 = vpop.f32.mrf.mxu0
    %v4750 = vadd.f32 0.0, %v4749
    %4751 = vmatmul.bf16.gmra.mxu0 %v4730
    %v4752 = vpop.f32.mrf.mxu0
    %v4753 = vadd.f32 0.0, %v4752
    %v4754 = vpop.f32.mrf.mxu0
    %v4755 = vadd.f32 0.0, %v4754
    %4756 = vdwg.mxu0
    %v4757 = vsel %vm861, %v4475, -1e+30
    %v4758 = vsel %vm862, %v4477, -1e+30
    %v4759 = vsel %vm863, %v4480, -1e+30
    %v4760 = vsel %vm864, %v4482, -1e+30
    %v4761 = vsel %vm861, %v4514, -1e+30
    %v4762 = vsel %vm862, %v4516, -1e+30
    %v4763 = vsel %vm863, %v4519, -1e+30
    %v4764 = vsel %vm864, %v4521, -1e+30
    %v4765 = vsel %vm861, %v4553, -1e+30
    %v4766 = vsel %vm862, %v4555, -1e+30
    %v4767 = vsel %vm863, %v4558, -1e+30
    %v4768 = vsel %vm864, %v4560, -1e+30
    %v4769 = vsel %vm861, %v4592, -1e+30
    %v4770 = vsel %vm862, %v4594, -1e+30
    %v4771 = vsel %vm863, %v4597, -1e+30
    %v4772 = vsel %vm864, %v4599, -1e+30
    %v4773 = vsel %vm861, %v4631, -1e+30
    %v4774 = vsel %vm862, %v4633, -1e+30
    %v4775 = vsel %vm863, %v4636, -1e+30
    %v4776 = vsel %vm864, %v4638, -1e+30
    %v4777 = vsel %vm861, %v4670, -1e+30
    %v4778 = vsel %vm862, %v4672, -1e+30
    %v4779 = vsel %vm863, %v4675, -1e+30
    %v4780 = vsel %vm864, %v4677, -1e+30
    %v4781 = vsel %vm861, %v4709, -1e+30
    %v4782 = vsel %vm862, %v4711, -1e+30
    %v4783 = vsel %vm863, %v4714, -1e+30
    %v4784 = vsel %vm864, %v4716, -1e+30
    %v4785 = vsel %vm861, %v4748, -1e+30
    %v4786 = vsel %vm862, %v4750, -1e+30
    %v4787 = vsel %vm863, %v4753, -1e+30
    %v4788 = vsel %vm864, %v4755, -1e+30
    %v4789 = vsel %vm897, %v4757, -inf
    %4790 = vmax.xlane.f32.xlu0 %v4789
    %v4791 = vpop.xlane.xlu0 %4790
    %v4792 = vsel %vm897, %v4758, -inf
    %4793 = vmax.xlane.f32.xlu0 %v4792
    %v4794 = vpop.xlane.xlu0 %4793
    %v4795 = vsel %vm897, %v4759, -inf
    %4796 = vmax.xlane.f32.xlu0 %v4795
    %v4797 = vpop.xlane.xlu0 %4796
    %v4798 = vsel %vm897, %v4760, -inf
    %4799 = vmax.xlane.f32.xlu0 %v4798
    %v4800 = vpop.xlane.xlu0 %4799
    %v4801 = vsel %vm897, %v4761, -inf
    %4802 = vmax.xlane.f32.xlu0 %v4801
    %v4803 = vpop.xlane.xlu0 %4802
    %v4804 = vsel %vm897, %v4762, -inf
    %4805 = vmax.xlane.f32.xlu0 %v4804
    %v4806 = vpop.xlane.xlu0 %4805
    %v4807 = vsel %vm897, %v4763, -inf
    %4808 = vmax.xlane.f32.xlu0 %v4807
    %v4809 = vpop.xlane.xlu0 %4808
    %v4810 = vsel %vm897, %v4764, -inf
    %4811 = vmax.xlane.f32.xlu0 %v4810
    %v4812 = vpop.xlane.xlu0 %4811
    %v4813 = vsel %vm897, %v4765, -inf
    %4814 = vmax.xlane.f32.xlu0 %v4813
    %v4815 = vpop.xlane.xlu0 %4814
    %v4816 = vsel %vm897, %v4766, -inf
    %4817 = vmax.xlane.f32.xlu0 %v4816
    %v4818 = vpop.xlane.xlu0 %4817
    %v4819 = vsel %vm897, %v4767, -inf
    %4820 = vmax.xlane.f32.xlu0 %v4819
    %v4821 = vpop.xlane.xlu0 %4820
    %v4822 = vsel %vm897, %v4768, -inf
    %4823 = vmax.xlane.f32.xlu0 %v4822
    %v4824 = vpop.xlane.xlu0 %4823
    %v4825 = vsel %vm897, %v4769, -inf
    %4826 = vmax.xlane.f32.xlu0 %v4825
    %v4827 = vpop.xlane.xlu0 %4826
    %v4828 = vsel %vm897, %v4770, -inf
    %4829 = vmax.xlane.f32.xlu0 %v4828
    %v4830 = vpop.xlane.xlu0 %4829
    %v4831 = vsel %vm897, %v4771, -inf
    %4832 = vmax.xlane.f32.xlu0 %v4831
    %v4833 = vpop.xlane.xlu0 %4832
    %v4834 = vsel %vm897, %v4772, -inf
    %4835 = vmax.xlane.f32.xlu0 %v4834
    %v4836 = vpop.xlane.xlu0 %4835
    %v4837 = vsel %vm897, %v4773, -inf
    %4838 = vmax.xlane.f32.xlu0 %v4837
    %v4839 = vpop.xlane.xlu0 %4838
    %v4840 = vsel %vm897, %v4774, -inf
    %4841 = vmax.xlane.f32.xlu0 %v4840
    %v4842 = vpop.xlane.xlu0 %4841
    %v4843 = vsel %vm897, %v4775, -inf
    %4844 = vmax.xlane.f32.xlu0 %v4843
    %v4845 = vpop.xlane.xlu0 %4844
    %v4846 = vsel %vm897, %v4776, -inf
    %4847 = vmax.xlane.f32.xlu0 %v4846
    %v4848 = vpop.xlane.xlu0 %4847
    %v4849 = vsel %vm897, %v4777, -inf
    %4850 = vmax.xlane.f32.xlu0 %v4849
    %v4851 = vpop.xlane.xlu0 %4850
    %v4852 = vsel %vm897, %v4778, -inf
    %4853 = vmax.xlane.f32.xlu0 %v4852
    %v4854 = vpop.xlane.xlu0 %4853
    %v4855 = vsel %vm897, %v4779, -inf
    %4856 = vmax.xlane.f32.xlu0 %v4855
    %v4857 = vpop.xlane.xlu0 %4856
    %v4858 = vsel %vm897, %v4780, -inf
    %4859 = vmax.xlane.f32.xlu0 %v4858
    %v4860 = vpop.xlane.xlu0 %4859
    %v4861 = vsel %vm897, %v4781, -inf
    %4862 = vmax.xlane.f32.xlu0 %v4861
    %v4863 = vpop.xlane.xlu0 %4862
    %v4864 = vsel %vm897, %v4782, -inf
    %4865 = vmax.xlane.f32.xlu0 %v4864
    %v4866 = vpop.xlane.xlu0 %4865
    %v4867 = vsel %vm897, %v4783, -inf
    %4868 = vmax.xlane.f32.xlu0 %v4867
    %v4869 = vpop.xlane.xlu0 %4868
    %v4870 = vsel %vm897, %v4784, -inf
    %4871 = vmax.xlane.f32.xlu0 %v4870
    %v4872 = vpop.xlane.xlu0 %4871
    %v4873 = vsel %vm897, %v4785, -inf
    %4874 = vmax.xlane.f32.xlu0 %v4873
    %v4875 = vpop.xlane.xlu0 %4874
    %v4876 = vsel %vm897, %v4786, -inf
    %4877 = vmax.xlane.f32.xlu0 %v4876
    %v4878 = vpop.xlane.xlu0 %4877
    %v4879 = vsel %vm897, %v4787, -inf
    %4880 = vmax.xlane.f32.xlu0 %v4879
    %v4881 = vpop.xlane.xlu0 %4880
    %v4882 = vsel %vm897, %v4788, -inf
    %4883 = vmax.xlane.f32.xlu0 %v4882
    %v4884 = vpop.xlane.xlu0 %4883
    %v4885 = vsub.f32 %v4757, %v4791
    %v4886 = vsub.f32 %v4758, %v4794
    %v4887 = vsub.f32 %v4759, %v4797
    %v4888 = vsub.f32 %v4760, %v4800
    %v4889 = vsub.f32 %v4761, %v4803
    %v4890 = vsub.f32 %v4762, %v4806
    %v4891 = vsub.f32 %v4763, %v4809
    %v4892 = vsub.f32 %v4764, %v4812
    %v4893 = vsub.f32 %v4765, %v4815
    %v4894 = vsub.f32 %v4766, %v4818
    %v4895 = vsub.f32 %v4767, %v4821
    %v4896 = vsub.f32 %v4768, %v4824
    %v4897 = vsub.f32 %v4769, %v4827
    %v4898 = vsub.f32 %v4770, %v4830
    %v4899 = vsub.f32 %v4771, %v4833
    %v4900 = vsub.f32 %v4772, %v4836
    %v4901 = vsub.f32 %v4773, %v4839
    %v4902 = vsub.f32 %v4774, %v4842
    %v4903 = vsub.f32 %v4775, %v4845
    %v4904 = vsub.f32 %v4776, %v4848
    %v4905 = vsub.f32 %v4777, %v4851
    %v4906 = vsub.f32 %v4778, %v4854
    %v4907 = vsub.f32 %v4779, %v4857
    %v4908 = vsub.f32 %v4780, %v4860
    %v4909 = vsub.f32 %v4781, %v4863
    %v4910 = vsub.f32 %v4782, %v4866
    %v4911 = vsub.f32 %v4783, %v4869
    %v4912 = vsub.f32 %v4784, %v4872
    %v4913 = vsub.f32 %v4785, %v4875
    %v4914 = vsub.f32 %v4786, %v4878
    %v4915 = vsub.f32 %v4787, %v4881
    %v4916 = vsub.f32 %v4788, %v4884
    %v4917 = vmul.f32 %v4885, 1.442695
    %v4918 = vpow.pop %v4917
    %v4919 = vmul.f32 %v4886, 1.442695
    %v4920 = vpow.pop %v4919
    %v4921 = vmul.f32 %v4887, 1.442695
    %v4922 = vpow.pop %v4921
    %v4923 = vmul.f32 %v4888, 1.442695
    %v4924 = vpow.pop %v4923
    %v4925 = vmul.f32 %v4889, 1.442695
    %v4926 = vpow.pop %v4925
    %v4927 = vmul.f32 %v4890, 1.442695
    %v4928 = vpow.pop %v4927
    %v4929 = vmul.f32 %v4891, 1.442695
    %v4930 = vpow.pop %v4929
    %v4931 = vmul.f32 %v4892, 1.442695
    %v4932 = vpow.pop %v4931
    %v4933 = vmul.f32 %v4893, 1.442695
    %v4934 = vpow.pop %v4933
    %v4935 = vmul.f32 %v4894, 1.442695
    %v4936 = vpow.pop %v4935
    %v4937 = vmul.f32 %v4895, 1.442695
    %v4938 = vpow.pop %v4937
    %v4939 = vmul.f32 %v4896, 1.442695
    %v4940 = vpow.pop %v4939
    %v4941 = vmul.f32 %v4897, 1.442695
    %v4942 = vpow.pop %v4941
    %v4943 = vmul.f32 %v4898, 1.442695
    %v4944 = vpow.pop %v4943
    %v4945 = vmul.f32 %v4899, 1.442695
    %v4946 = vpow.pop %v4945
    %v4947 = vmul.f32 %v4900, 1.442695
    %v4948 = vpow.pop %v4947
    %v4949 = vmul.f32 %v4901, 1.442695
    %v4950 = vpow.pop %v4949
    %v4951 = vmul.f32 %v4902, 1.442695
    %v4952 = vpow.pop %v4951
    %v4953 = vmul.f32 %v4903, 1.442695
    %v4954 = vpow.pop %v4953
    %v4955 = vmul.f32 %v4904, 1.442695
    %v4956 = vpow.pop %v4955
    %v4957 = vmul.f32 %v4905, 1.442695
    %v4958 = vpow.pop %v4957
    %v4959 = vmul.f32 %v4906, 1.442695
    %v4960 = vpow.pop %v4959
    %v4961 = vmul.f32 %v4907, 1.442695
    %v4962 = vpow.pop %v4961
    %v4963 = vmul.f32 %v4908, 1.442695
    %v4964 = vpow.pop %v4963
    %v4965 = vmul.f32 %v4909, 1.442695
    %v4966 = vpow.pop %v4965
    %v4967 = vmul.f32 %v4910, 1.442695
    %v4968 = vpow.pop %v4967
    %v4969 = vmul.f32 %v4911, 1.442695
    %v4970 = vpow.pop %v4969
    %v4971 = vmul.f32 %v4912, 1.442695
    %v4972 = vpow.pop %v4971
    %v4973 = vmul.f32 %v4913, 1.442695
    %v4974 = vpow.pop %v4973
    %v4975 = vmul.f32 %v4914, 1.442695
    %v4976 = vpow.pop %v4975
    %v4977 = vmul.f32 %v4915, 1.442695
    %v4978 = vpow.pop %v4977
    %v4979 = vmul.f32 %v4916, 1.442695
    %v4980 = vpow.pop %v4979
    %v4981 = vsel %vm897, %v4918, 0.0
    %4982 = vadd.xlane.f32.xlu0 %v4981
    %v4983 = vpop.xlane.xlu0 %4982
    %v4984 = vsel %vm897, %v4920, 0.0
    %4985 = vadd.xlane.f32.xlu0 %v4984
    %v4986 = vpop.xlane.xlu0 %4985
    %v4987 = vsel %vm897, %v4922, 0.0
    %4988 = vadd.xlane.f32.xlu0 %v4987
    %v4989 = vpop.xlane.xlu0 %4988
    %v4990 = vsel %vm897, %v4924, 0.0
    %4991 = vadd.xlane.f32.xlu0 %v4990
    %v4992 = vpop.xlane.xlu0 %4991
    %v4993 = vsel %vm897, %v4926, 0.0
    %4994 = vadd.xlane.f32.xlu0 %v4993
    %v4995 = vpop.xlane.xlu0 %4994
    %v4996 = vsel %vm897, %v4928, 0.0
    %4997 = vadd.xlane.f32.xlu0 %v4996
    %v4998 = vpop.xlane.xlu0 %4997
    %v4999 = vsel %vm897, %v4930, 0.0
    %5000 = vadd.xlane.f32.xlu0 %v4999
    %v5001 = vpop.xlane.xlu0 %5000
    %v5002 = vsel %vm897, %v4932, 0.0
    %5003 = vadd.xlane.f32.xlu0 %v5002
    %v5004 = vpop.xlane.xlu0 %5003
    %v5005 = vsel %vm897, %v4934, 0.0
    %5006 = vadd.xlane.f32.xlu0 %v5005
    %v5007 = vpop.xlane.xlu0 %5006
    %v5008 = vsel %vm897, %v4936, 0.0
    %5009 = vadd.xlane.f32.xlu0 %v5008
    %v5010 = vpop.xlane.xlu0 %5009
    %v5011 = vsel %vm897, %v4938, 0.0
    %5012 = vadd.xlane.f32.xlu0 %v5011
    %v5013 = vpop.xlane.xlu0 %5012
    %v5014 = vsel %vm897, %v4940, 0.0
    %5015 = vadd.xlane.f32.xlu0 %v5014
    %v5016 = vpop.xlane.xlu0 %5015
    %v5017 = vsel %vm897, %v4942, 0.0
    %5018 = vadd.xlane.f32.xlu0 %v5017
    %v5019 = vpop.xlane.xlu0 %5018
    %v5020 = vsel %vm897, %v4944, 0.0
    %5021 = vadd.xlane.f32.xlu0 %v5020
    %v5022 = vpop.xlane.xlu0 %5021
    %v5023 = vsel %vm897, %v4946, 0.0
    %5024 = vadd.xlane.f32.xlu0 %v5023
    %v5025 = vpop.xlane.xlu0 %5024
    %v5026 = vsel %vm897, %v4948, 0.0
    %5027 = vadd.xlane.f32.xlu0 %v5026
    %v5028 = vpop.xlane.xlu0 %5027
    %v5029 = vsel %vm897, %v4950, 0.0
    %5030 = vadd.xlane.f32.xlu0 %v5029
    %v5031 = vpop.xlane.xlu0 %5030
    %v5032 = vsel %vm897, %v4952, 0.0
    %5033 = vadd.xlane.f32.xlu0 %v5032
    %v5034 = vpop.xlane.xlu0 %5033
    %v5035 = vsel %vm897, %v4954, 0.0
    %5036 = vadd.xlane.f32.xlu0 %v5035
    %v5037 = vpop.xlane.xlu0 %5036
    %v5038 = vsel %vm897, %v4956, 0.0
    %5039 = vadd.xlane.f32.xlu0 %v5038
    %v5040 = vpop.xlane.xlu0 %5039
    %v5041 = vsel %vm897, %v4958, 0.0
    %5042 = vadd.xlane.f32.xlu0 %v5041
    %v5043 = vpop.xlane.xlu0 %5042
    %v5044 = vsel %vm897, %v4960, 0.0
    %5045 = vadd.xlane.f32.xlu0 %v5044
    %v5046 = vpop.xlane.xlu0 %5045
    %v5047 = vsel %vm897, %v4962, 0.0
    %5048 = vadd.xlane.f32.xlu0 %v5047
    %v5049 = vpop.xlane.xlu0 %5048
    %v5050 = vsel %vm897, %v4964, 0.0
    %5051 = vadd.xlane.f32.xlu0 %v5050
    %v5052 = vpop.xlane.xlu0 %5051
    %v5053 = vsel %vm897, %v4966, 0.0
    %5054 = vadd.xlane.f32.xlu0 %v5053
    %v5055 = vpop.xlane.xlu0 %5054
    %v5056 = vsel %vm897, %v4968, 0.0
    %5057 = vadd.xlane.f32.xlu0 %v5056
    %v5058 = vpop.xlane.xlu0 %5057
    %v5059 = vsel %vm897, %v4970, 0.0
    %5060 = vadd.xlane.f32.xlu0 %v5059
    %v5061 = vpop.xlane.xlu0 %5060
    %v5062 = vsel %vm897, %v4972, 0.0
    %5063 = vadd.xlane.f32.xlu0 %v5062
    %v5064 = vpop.xlane.xlu0 %5063
    %v5065 = vsel %vm897, %v4974, 0.0
    %5066 = vadd.xlane.f32.xlu0 %v5065
    %v5067 = vpop.xlane.xlu0 %5066
    %v5068 = vsel %vm897, %v4976, 0.0
    %5069 = vadd.xlane.f32.xlu0 %v5068
    %v5070 = vpop.xlane.xlu0 %5069
    %v5071 = vsel %vm897, %v4978, 0.0
    %5072 = vadd.xlane.f32.xlu0 %v5071
    %v5073 = vpop.xlane.xlu0 %5072
    %v5074 = vsel %vm897, %v4980, 0.0
    %5075 = vadd.xlane.f32.xlu0 %v5074
    %v5076 = vpop.xlane.xlu0 %5075
    %v5077 = vrcp.pop %v4983
    %v5078 = vrcp.pop %v4986
    %v5079 = vrcp.pop %v4989
    %v5080 = vrcp.pop %v4992
    %v5081 = vrcp.pop %v4995
    %v5082 = vrcp.pop %v4998
    %v5083 = vrcp.pop %v5001
    %v5084 = vrcp.pop %v5004
    %v5085 = vrcp.pop %v5007
    %v5086 = vrcp.pop %v5010
    %v5087 = vrcp.pop %v5013
    %v5088 = vrcp.pop %v5016
    %v5089 = vrcp.pop %v5019
    %v5090 = vrcp.pop %v5022
    %v5091 = vrcp.pop %v5025
    %v5092 = vrcp.pop %v5028
    %v5093 = vrcp.pop %v5031
    %v5094 = vrcp.pop %v5034
    %v5095 = vrcp.pop %v5037
    %v5096 = vrcp.pop %v5040
    %v5097 = vrcp.pop %v5043
    %v5098 = vrcp.pop %v5046
    %v5099 = vrcp.pop %v5049
    %v5100 = vrcp.pop %v5052
    %v5101 = vrcp.pop %v5055
    %v5102 = vrcp.pop %v5058
    %v5103 = vrcp.pop %v5061
    %v5104 = vrcp.pop %v5064
    %v5105 = vrcp.pop %v5067
    %v5106 = vrcp.pop %v5070
    %v5107 = vrcp.pop %v5073
    %v5108 = vrcp.pop %v5076
    %v5109 = vmul.f32 %v4918, %v5077
    %v5110 = vmul.f32 %v4920, %v5078
    %v5111 = vmul.f32 %v4922, %v5079
    %v5112 = vmul.f32 %v4924, %v5080
    %v5113 = vmul.f32 %v4926, %v5081
    %v5114 = vmul.f32 %v4928, %v5082
    %v5115 = vmul.f32 %v4930, %v5083
    %v5116 = vmul.f32 %v4932, %v5084
    %v5117 = vmul.f32 %v4934, %v5085
    %v5118 = vmul.f32 %v4936, %v5086
    %v5119 = vmul.f32 %v4938, %v5087
    %v5120 = vmul.f32 %v4940, %v5088
    %v5121 = vmul.f32 %v4942, %v5089
    %v5122 = vmul.f32 %v4944, %v5090
    %v5123 = vmul.f32 %v4946, %v5091
    %v5124 = vmul.f32 %v4948, %v5092
    %v5125 = vmul.f32 %v4950, %v5093
    %v5126 = vmul.f32 %v4952, %v5094
    %v5127 = vmul.f32 %v4954, %v5095
    %v5128 = vmul.f32 %v4956, %v5096
    %v5129 = vmul.f32 %v4958, %v5097
    %v5130 = vmul.f32 %v4960, %v5098
    %v5131 = vmul.f32 %v4962, %v5099
    %v5132 = vmul.f32 %v4964, %v5100
    %v5133 = vmul.f32 %v4966, %v5101
    %v5134 = vmul.f32 %v4968, %v5102
    %v5135 = vmul.f32 %v4970, %v5103
    %v5136 = vmul.f32 %v4972, %v5104
    %v5137 = vmul.f32 %v4974, %v5105
    %v5138 = vmul.f32 %v4976, %v5106
    %v5139 = vmul.f32 %v4978, %v5107
    %v5140 = vmul.f32 %v4980, %v5108
    %v5141 = vpack.c.bf16 %v5109, %v5109
    %v5142 = vpack.c.bf16 %v5110, %v5110
    %v5143 = vpack.c.bf16 %v5111, %v5111
    %v5144 = vpack.c.bf16 %v5112, %v5112
    %v5145 = vpack.c.bf16 %v5113, %v5113
    %v5146 = vpack.c.bf16 %v5114, %v5114
    %v5147 = vpack.c.bf16 %v5115, %v5115
    %v5148 = vpack.c.bf16 %v5116, %v5116
    %v5149 = vpack.c.bf16 %v5117, %v5117
    %v5150 = vpack.c.bf16 %v5118, %v5118
    %v5151 = vpack.c.bf16 %v5119, %v5119
    %v5152 = vpack.c.bf16 %v5120, %v5120
    %v5153 = vpack.c.bf16 %v5121, %v5121
    %v5154 = vpack.c.bf16 %v5122, %v5122
    %v5155 = vpack.c.bf16 %v5123, %v5123
    %v5156 = vpack.c.bf16 %v5124, %v5124
    %v5157 = vpack.c.bf16 %v5125, %v5125
    %v5158 = vpack.c.bf16 %v5126, %v5126
    %v5159 = vpack.c.bf16 %v5127, %v5127
    %v5160 = vpack.c.bf16 %v5128, %v5128
    %v5161 = vpack.c.bf16 %v5129, %v5129
    %v5162 = vpack.c.bf16 %v5130, %v5130
    %v5163 = vpack.c.bf16 %v5131, %v5131
    %v5164 = vpack.c.bf16 %v5132, %v5132
    %v5165 = vpack.c.bf16 %v5133, %v5133
    %v5166 = vpack.c.bf16 %v5134, %v5134
    %v5167 = vpack.c.bf16 %v5135, %v5135
    %v5168 = vpack.c.bf16 %v5136, %v5136
    %v5169 = vpack.c.bf16 %v5137, %v5137
    %v5170 = vpack.c.bf16 %v5138, %v5138
    %v5171 = vpack.c.bf16 %v5139, %v5139
    %v5172 = vpack.c.bf16 %v5140, %v5140
    %5173 = vrot.lane.b32.xlu0 %v453, 80
    %v5174 = vpop.permute.xlu0 %5173
    %5175 = vrot.lane.b32.xlu0 %v454, 80
    %v5176 = vpop.permute.xlu0 %5175
    %5177 = vrot.lane.b32.xlu0 %v455, 80
    %v5178 = vpop.permute.xlu0 %5177
    %5179 = vrot.lane.b32.xlu0 %v456, 80
    %v5180 = vpop.permute.xlu0 %5179
    %v5181 = vrot.slane %v5174, 4
    %v5182 = vrot.slane %v5176, 4
    %v5183 = vrot.slane %v5178, 4
    %v5184 = vrot.slane %v5180, 4
    %v5189 = vunpack.c.l.b16 %v5141
    %v5190 = vunpack.c.l.b16 %v5142
    %v5191 = vunpack.c.l.b16 %v5143
    %v5192 = vunpack.c.l.b16 %v5144
    %v5193 = vpack.c.b16 %v5190, %v5189
    %v5194 = vpack.c.b16 %v5192, %v5191
    %v5195 = vunpack.c.l.b16 %v5181
    %v5196 = vunpack.c.l.b16 %v5182
    %v5197 = vunpack.c.l.b16 %v5183
    %v5198 = vunpack.c.l.b16 %v5184
    %v5199 = vpack.c.b16 %v5196, %v5195
    %v5200 = vpack.c.b16 %v5198, %v5197
    %v5204 = vsel %vm897, %v5193, 0
    %v5207 = vsel %vm897, %v5194, 0
    %5209 = vmatpush.bf16.msra.mxu0 0
    %5210 = vmatpush.bf16.msra.mxu0 0
    %5211 = vmatpush.bf16.msra.mxu0 0
    %5212 = vmatpush.bf16.msra.mxu0 0
    %5213 = vmatpush.bf16.msra.mxu0 0
    %5214 = vmatpush.bf16.msra.mxu0 0
    %5215 = vmatpush.bf16.msra.mxu0 %v5200
    %5216 = vmatpush.bf16.msra.mxu0 %v5199
    %5217 = vmatmul.bf16.gmra.mxu0 %v5204
    %v5218 = vpop.f32.mrf.mxu0
    %v5219 = vadd.f32 0.0, %v5218
    %v5220 = vpop.f32.mrf.mxu0
    %v5221 = vadd.f32 0.0, %v5220
    %5222 = vmatmul.bf16.gmra.mxu0 %v5207
    %v5223 = vpop.f32.mrf.mxu0
    %v5224 = vadd.f32 0.0, %v5223
    %v5225 = vpop.f32.mrf.mxu0
    %v5226 = vadd.f32 0.0, %v5225
    %5227 = vdwg.mxu0
    %5228 = vrot.lane.b32.xlu0 %v457, 80
    %v5229 = vpop.permute.xlu0 %5228
    %5230 = vrot.lane.b32.xlu0 %v458, 80
    %v5231 = vpop.permute.xlu0 %5230
    %5232 = vrot.lane.b32.xlu0 %v459, 80
    %v5233 = vpop.permute.xlu0 %5232
    %5234 = vrot.lane.b32.xlu0 %v460, 80
    %v5235 = vpop.permute.xlu0 %5234
    %v5236 = vrot.slane %v5229, 4
    %v5237 = vrot.slane %v5231, 4
    %v5238 = vrot.slane %v5233, 4
    %v5239 = vrot.slane %v5235, 4
    %v5244 = vunpack.c.l.b16 %v5145
    %v5245 = vunpack.c.l.b16 %v5146
    %v5246 = vunpack.c.l.b16 %v5147
    %v5247 = vunpack.c.l.b16 %v5148
    %v5248 = vpack.c.b16 %v5245, %v5244
    %v5249 = vpack.c.b16 %v5247, %v5246
    %v5250 = vunpack.c.l.b16 %v5236
    %v5251 = vunpack.c.l.b16 %v5237
    %v5252 = vunpack.c.l.b16 %v5238
    %v5253 = vunpack.c.l.b16 %v5239
    %v5254 = vpack.c.b16 %v5251, %v5250
    %v5255 = vpack.c.b16 %v5253, %v5252
    %v5259 = vsel %vm897, %v5248, 0
    %v5262 = vsel %vm897, %v5249, 0
    %5264 = vmatpush.bf16.msra.mxu0 0
    %5265 = vmatpush.bf16.msra.mxu0 0
    %5266 = vmatpush.bf16.msra.mxu0 0
    %5267 = vmatpush.bf16.msra.mxu0 0
    %5268 = vmatpush.bf16.msra.mxu0 0
    %5269 = vmatpush.bf16.msra.mxu0 0
    %5270 = vmatpush.bf16.msra.mxu0 %v5255
    %5271 = vmatpush.bf16.msra.mxu0 %v5254
    %5272 = vmatmul.bf16.gmra.mxu0 %v5259
    %v5273 = vpop.f32.mrf.mxu0
    %v5274 = vadd.f32 0.0, %v5273
    %v5275 = vpop.f32.mrf.mxu0
    %v5276 = vadd.f32 0.0, %v5275
    %5277 = vmatmul.bf16.gmra.mxu0 %v5262
    %v5278 = vpop.f32.mrf.mxu0
    %v5279 = vadd.f32 0.0, %v5278
    %v5280 = vpop.f32.mrf.mxu0
    %v5281 = vadd.f32 0.0, %v5280
    %5282 = vdwg.mxu0
    %5283 = vrot.lane.b32.xlu0 %v461, 80
    %v5284 = vpop.permute.xlu0 %5283
    %5285 = vrot.lane.b32.xlu0 %v462, 80
    %v5286 = vpop.permute.xlu0 %5285
    %5287 = vrot.lane.b32.xlu0 %v463, 80
    %v5288 = vpop.permute.xlu0 %5287
    %5289 = vrot.lane.b32.xlu0 %v464, 80
    %v5290 = vpop.permute.xlu0 %5289
    %v5291 = vrot.slane %v5284, 4
    %v5292 = vrot.slane %v5286, 4
    %v5293 = vrot.slane %v5288, 4
    %v5294 = vrot.slane %v5290, 4
    %v5299 = vunpack.c.l.b16 %v5149
    %v5300 = vunpack.c.l.b16 %v5150
    %v5301 = vunpack.c.l.b16 %v5151
    %v5302 = vunpack.c.l.b16 %v5152
    %v5303 = vpack.c.b16 %v5300, %v5299
    %v5304 = vpack.c.b16 %v5302, %v5301
    %v5305 = vunpack.c.l.b16 %v5291
    %v5306 = vunpack.c.l.b16 %v5292
    %v5307 = vunpack.c.l.b16 %v5293
    %v5308 = vunpack.c.l.b16 %v5294
    %v5309 = vpack.c.b16 %v5306, %v5305
    %v5310 = vpack.c.b16 %v5308, %v5307
    %v5314 = vsel %vm897, %v5303, 0
    %v5317 = vsel %vm897, %v5304, 0
    %5319 = vmatpush.bf16.msra.mxu0 0
    %5320 = vmatpush.bf16.msra.mxu0 0
    %5321 = vmatpush.bf16.msra.mxu0 0
    %5322 = vmatpush.bf16.msra.mxu0 0
    %5323 = vmatpush.bf16.msra.mxu0 0
    %5324 = vmatpush.bf16.msra.mxu0 0
    %5325 = vmatpush.bf16.msra.mxu0 %v5310
    %5326 = vmatpush.bf16.msra.mxu0 %v5309
    %5327 = vmatmul.bf16.gmra.mxu0 %v5314
    %v5328 = vpop.f32.mrf.mxu0
    %v5329 = vadd.f32 0.0, %v5328
    %v5330 = vpop.f32.mrf.mxu0
    %v5331 = vadd.f32 0.0, %v5330
    %5332 = vmatmul.bf16.gmra.mxu0 %v5317
    %v5333 = vpop.f32.mrf.mxu0
    %v5334 = vadd.f32 0.0, %v5333
    %v5335 = vpop.f32.mrf.mxu0
    %v5336 = vadd.f32 0.0, %v5335
    %5337 = vdwg.mxu0
    %5338 = vrot.lane.b32.xlu0 %v465, 80
    %v5339 = vpop.permute.xlu0 %5338
    %5340 = vrot.lane.b32.xlu0 %v466, 80
    %v5341 = vpop.permute.xlu0 %5340
    %5342 = vrot.lane.b32.xlu0 %v467, 80
    %v5343 = vpop.permute.xlu0 %5342
    %5344 = vrot.lane.b32.xlu0 %v468, 80
    %v5345 = vpop.permute.xlu0 %5344
    %v5346 = vrot.slane %v5339, 4
    %v5347 = vrot.slane %v5341, 4
    %v5348 = vrot.slane %v5343, 4
    %v5349 = vrot.slane %v5345, 4
    %v5354 = vunpack.c.l.b16 %v5153
    %v5355 = vunpack.c.l.b16 %v5154
    %v5356 = vunpack.c.l.b16 %v5155
    %v5357 = vunpack.c.l.b16 %v5156
    %v5358 = vpack.c.b16 %v5355, %v5354
    %v5359 = vpack.c.b16 %v5357, %v5356
    %v5360 = vunpack.c.l.b16 %v5346
    %v5361 = vunpack.c.l.b16 %v5347
    %v5362 = vunpack.c.l.b16 %v5348
    %v5363 = vunpack.c.l.b16 %v5349
    %v5364 = vpack.c.b16 %v5361, %v5360
    %v5365 = vpack.c.b16 %v5363, %v5362
    %v5369 = vsel %vm897, %v5358, 0
    %v5372 = vsel %vm897, %v5359, 0
    %5374 = vmatpush.bf16.msra.mxu0 0
    %5375 = vmatpush.bf16.msra.mxu0 0
    %5376 = vmatpush.bf16.msra.mxu0 0
    %5377 = vmatpush.bf16.msra.mxu0 0
    %5378 = vmatpush.bf16.msra.mxu0 0
    %5379 = vmatpush.bf16.msra.mxu0 0
    %5380 = vmatpush.bf16.msra.mxu0 %v5365
    %5381 = vmatpush.bf16.msra.mxu0 %v5364
    %5382 = vmatmul.bf16.gmra.mxu0 %v5369
    %v5383 = vpop.f32.mrf.mxu0
    %v5384 = vadd.f32 0.0, %v5383
    %v5385 = vpop.f32.mrf.mxu0
    %v5386 = vadd.f32 0.0, %v5385
    %5387 = vmatmul.bf16.gmra.mxu0 %v5372
    %v5388 = vpop.f32.mrf.mxu0
    %v5389 = vadd.f32 0.0, %v5388
    %v5390 = vpop.f32.mrf.mxu0
    %v5391 = vadd.f32 0.0, %v5390
    %5392 = vdwg.mxu0
    %5393 = vrot.lane.b32.xlu0 %v469, 80
    %v5394 = vpop.permute.xlu0 %5393
    %5395 = vrot.lane.b32.xlu0 %v470, 80
    %v5396 = vpop.permute.xlu0 %5395
    %5397 = vrot.lane.b32.xlu0 %v471, 80
    %v5398 = vpop.permute.xlu0 %5397
    %5399 = vrot.lane.b32.xlu0 %v472, 80
    %v5400 = vpop.permute.xlu0 %5399
    %v5401 = vrot.slane %v5394, 4
    %v5402 = vrot.slane %v5396, 4
    %v5403 = vrot.slane %v5398, 4
    %v5404 = vrot.slane %v5400, 4
    %v5409 = vunpack.c.l.b16 %v5157
    %v5410 = vunpack.c.l.b16 %v5158
    %v5411 = vunpack.c.l.b16 %v5159
    %v5412 = vunpack.c.l.b16 %v5160
    %v5413 = vpack.c.b16 %v5410, %v5409
    %v5414 = vpack.c.b16 %v5412, %v5411
    %v5415 = vunpack.c.l.b16 %v5401
    %v5416 = vunpack.c.l.b16 %v5402
    %v5417 = vunpack.c.l.b16 %v5403
    %v5418 = vunpack.c.l.b16 %v5404
    %v5419 = vpack.c.b16 %v5416, %v5415
    %v5420 = vpack.c.b16 %v5418, %v5417
    %v5424 = vsel %vm897, %v5413, 0
    %v5427 = vsel %vm897, %v5414, 0
    %5429 = vmatpush.bf16.msra.mxu0 0
    %5430 = vmatpush.bf16.msra.mxu0 0
    %5431 = vmatpush.bf16.msra.mxu0 0
    %5432 = vmatpush.bf16.msra.mxu0 0
    %5433 = vmatpush.bf16.msra.mxu0 0
    %5434 = vmatpush.bf16.msra.mxu0 0
    %5435 = vmatpush.bf16.msra.mxu0 %v5420
    %5436 = vmatpush.bf16.msra.mxu0 %v5419
    %5437 = vmatmul.bf16.gmra.mxu0 %v5424
    %v5438 = vpop.f32.mrf.mxu0
    %v5439 = vadd.f32 0.0, %v5438
    %v5440 = vpop.f32.mrf.mxu0
    %v5441 = vadd.f32 0.0, %v5440
    %5442 = vmatmul.bf16.gmra.mxu0 %v5427
    %v5443 = vpop.f32.mrf.mxu0
    %v5444 = vadd.f32 0.0, %v5443
    %v5445 = vpop.f32.mrf.mxu0
    %v5446 = vadd.f32 0.0, %v5445
    %5447 = vdwg.mxu0
    %5448 = vrot.lane.b32.xlu0 %v473, 80
    %v5449 = vpop.permute.xlu0 %5448
    %5450 = vrot.lane.b32.xlu0 %v474, 80
    %v5451 = vpop.permute.xlu0 %5450
    %5452 = vrot.lane.b32.xlu0 %v475, 80
    %v5453 = vpop.permute.xlu0 %5452
    %5454 = vrot.lane.b32.xlu0 %v476, 80
    %v5455 = vpop.permute.xlu0 %5454
    %v5456 = vrot.slane %v5449, 4
    %v5457 = vrot.slane %v5451, 4
    %v5458 = vrot.slane %v5453, 4
    %v5459 = vrot.slane %v5455, 4
    %v5464 = vunpack.c.l.b16 %v5161
    %v5465 = vunpack.c.l.b16 %v5162
    %v5466 = vunpack.c.l.b16 %v5163
    %v5467 = vunpack.c.l.b16 %v5164
    %v5468 = vpack.c.b16 %v5465, %v5464
    %v5469 = vpack.c.b16 %v5467, %v5466
    %v5470 = vunpack.c.l.b16 %v5456
    %v5471 = vunpack.c.l.b16 %v5457
    %v5472 = vunpack.c.l.b16 %v5458
    %v5473 = vunpack.c.l.b16 %v5459
    %v5474 = vpack.c.b16 %v5471, %v5470
    %v5475 = vpack.c.b16 %v5473, %v5472
    %v5479 = vsel %vm897, %v5468, 0
    %v5482 = vsel %vm897, %v5469, 0
    %5484 = vmatpush.bf16.msra.mxu0 0
    %5485 = vmatpush.bf16.msra.mxu0 0
    %5486 = vmatpush.bf16.msra.mxu0 0
    %5487 = vmatpush.bf16.msra.mxu0 0
    %5488 = vmatpush.bf16.msra.mxu0 0
    %5489 = vmatpush.bf16.msra.mxu0 0
    %5490 = vmatpush.bf16.msra.mxu0 %v5475
    %5491 = vmatpush.bf16.msra.mxu0 %v5474
    %5492 = vmatmul.bf16.gmra.mxu0 %v5479
    %v5493 = vpop.f32.mrf.mxu0
    %v5494 = vadd.f32 0.0, %v5493
    %v5495 = vpop.f32.mrf.mxu0
    %v5496 = vadd.f32 0.0, %v5495
    %5497 = vmatmul.bf16.gmra.mxu0 %v5482
    %v5498 = vpop.f32.mrf.mxu0
    %v5499 = vadd.f32 0.0, %v5498
    %v5500 = vpop.f32.mrf.mxu0
    %v5501 = vadd.f32 0.0, %v5500
    %5502 = vdwg.mxu0
    %5503 = vrot.lane.b32.xlu0 %v477, 80
    %v5504 = vpop.permute.xlu0 %5503
    %5505 = vrot.lane.b32.xlu0 %v478, 80
    %v5506 = vpop.permute.xlu0 %5505
    %5507 = vrot.lane.b32.xlu0 %v479, 80
    %v5508 = vpop.permute.xlu0 %5507
    %5509 = vrot.lane.b32.xlu0 %v480, 80
    %v5510 = vpop.permute.xlu0 %5509
    %v5511 = vrot.slane %v5504, 4
    %v5512 = vrot.slane %v5506, 4
    %v5513 = vrot.slane %v5508, 4
    %v5514 = vrot.slane %v5510, 4
    %v5519 = vunpack.c.l.b16 %v5165
    %v5520 = vunpack.c.l.b16 %v5166
    %v5521 = vunpack.c.l.b16 %v5167
    %v5522 = vunpack.c.l.b16 %v5168
    %v5523 = vpack.c.b16 %v5520, %v5519
    %v5524 = vpack.c.b16 %v5522, %v5521
    %v5525 = vunpack.c.l.b16 %v5511
    %v5526 = vunpack.c.l.b16 %v5512
    %v5527 = vunpack.c.l.b16 %v5513
    %v5528 = vunpack.c.l.b16 %v5514
    %v5529 = vpack.c.b16 %v5526, %v5525
    %v5530 = vpack.c.b16 %v5528, %v5527
    %v5534 = vsel %vm897, %v5523, 0
    %v5537 = vsel %vm897, %v5524, 0
    %5539 = vmatpush.bf16.msra.mxu0 0
    %5540 = vmatpush.bf16.msra.mxu0 0
    %5541 = vmatpush.bf16.msra.mxu0 0
    %5542 = vmatpush.bf16.msra.mxu0 0
    %5543 = vmatpush.bf16.msra.mxu0 0
    %5544 = vmatpush.bf16.msra.mxu0 0
    %5545 = vmatpush.bf16.msra.mxu0 %v5530
    %5546 = vmatpush.bf16.msra.mxu0 %v5529
    %5547 = vmatmul.bf16.gmra.mxu0 %v5534
    %v5548 = vpop.f32.mrf.mxu0
    %v5549 = vadd.f32 0.0, %v5548
    %v5550 = vpop.f32.mrf.mxu0
    %v5551 = vadd.f32 0.0, %v5550
    %5552 = vmatmul.bf16.gmra.mxu0 %v5537
    %v5553 = vpop.f32.mrf.mxu0
    %v5554 = vadd.f32 0.0, %v5553
    %v5555 = vpop.f32.mrf.mxu0
    %v5556 = vadd.f32 0.0, %v5555
    %5557 = vdwg.mxu0
    %5558 = vrot.lane.b32.xlu0 %v481, 80
    %v5559 = vpop.permute.xlu0 %5558
    %5560 = vrot.lane.b32.xlu0 %v482, 80
    %v5561 = vpop.permute.xlu0 %5560
    %5562 = vrot.lane.b32.xlu0 %v483, 80
    %v5563 = vpop.permute.xlu0 %5562
    %5564 = vrot.lane.b32.xlu0 %v484, 80
    %v5565 = vpop.permute.xlu0 %5564
    %v5566 = vrot.slane %v5559, 4
    %v5567 = vrot.slane %v5561, 4
    %v5568 = vrot.slane %v5563, 4
    %v5569 = vrot.slane %v5565, 4
    %v5574 = vunpack.c.l.b16 %v5169
    %v5575 = vunpack.c.l.b16 %v5170
    %v5576 = vunpack.c.l.b16 %v5171
    %v5577 = vunpack.c.l.b16 %v5172
    %v5578 = vpack.c.b16 %v5575, %v5574
    %v5579 = vpack.c.b16 %v5577, %v5576
    %v5580 = vunpack.c.l.b16 %v5566
    %v5581 = vunpack.c.l.b16 %v5567
    %v5582 = vunpack.c.l.b16 %v5568
    %v5583 = vunpack.c.l.b16 %v5569
    %v5584 = vpack.c.b16 %v5581, %v5580
    %v5585 = vpack.c.b16 %v5583, %v5582
    %v5589 = vsel %vm897, %v5578, 0
    %v5592 = vsel %vm897, %v5579, 0
    %5594 = vmatpush.bf16.msra.mxu0 0
    %5595 = vmatpush.bf16.msra.mxu0 0
    %5596 = vmatpush.bf16.msra.mxu0 0
    %5597 = vmatpush.bf16.msra.mxu0 0
    %5598 = vmatpush.bf16.msra.mxu0 0
    %5599 = vmatpush.bf16.msra.mxu0 0
    %5600 = vmatpush.bf16.msra.mxu0 %v5585
    %5601 = vmatpush.bf16.msra.mxu0 %v5584
    %5602 = vmatmul.bf16.gmra.mxu0 %v5589
    %v5603 = vpop.f32.mrf.mxu0
    %v5604 = vadd.f32 0.0, %v5603
    %v5605 = vpop.f32.mrf.mxu0
    %v5606 = vadd.f32 0.0, %v5605
    %5607 = vmatmul.bf16.gmra.mxu0 %v5592
    %v5608 = vpop.f32.mrf.mxu0
    %v5609 = vadd.f32 0.0, %v5608
    %v5610 = vpop.f32.mrf.mxu0
    %v5611 = vadd.f32 0.0, %v5610
    %5612 = vdwg.mxu0
    %v5613 = vpack.c.bf16 %v5219, %v5219
    %v5614 = vpack.c.bf16 %v5221, %v5221
    %v5615 = vpack.c.bf16 %v5224, %v5224
    %v5616 = vpack.c.bf16 %v5226, %v5226
    %v5617 = vpack.c.bf16 %v5274, %v5274
    %v5618 = vpack.c.bf16 %v5276, %v5276
    %v5619 = vpack.c.bf16 %v5279, %v5279
    %v5620 = vpack.c.bf16 %v5281, %v5281
    %v5621 = vpack.c.bf16 %v5329, %v5329
    %v5622 = vpack.c.bf16 %v5331, %v5331
    %v5623 = vpack.c.bf16 %v5334, %v5334
    %v5624 = vpack.c.bf16 %v5336, %v5336
    %v5625 = vpack.c.bf16 %v5384, %v5384
    %v5626 = vpack.c.bf16 %v5386, %v5386
    %v5627 = vpack.c.bf16 %v5389, %v5389
    %v5628 = vpack.c.bf16 %v5391, %v5391
    %v5629 = vpack.c.bf16 %v5439, %v5439
    %v5630 = vpack.c.bf16 %v5441, %v5441
    %v5631 = vpack.c.bf16 %v5444, %v5444
    %v5632 = vpack.c.bf16 %v5446, %v5446
    %v5633 = vpack.c.bf16 %v5494, %v5494
    %v5634 = vpack.c.bf16 %v5496, %v5496
    %v5635 = vpack.c.bf16 %v5499, %v5499
    %v5636 = vpack.c.bf16 %v5501, %v5501
    %v5637 = vpack.c.bf16 %v5549, %v5549
    %v5638 = vpack.c.bf16 %v5551, %v5551
    %v5639 = vpack.c.bf16 %v5554, %v5554
    %v5640 = vpack.c.bf16 %v5556, %v5556
    %v5641 = vpack.c.bf16 %v5604, %v5604
    %v5642 = vpack.c.bf16 %v5606, %v5606
    %v5643 = vpack.c.bf16 %v5609, %v5609
    %v5644 = vpack.c.bf16 %v5611, %v5611
    %5677 = vrot.lane.b32.xlu0 %v5613, 48
    %v5678 = vpop.permute.xlu0 %5677
    %5679 = vrot.lane.b32.xlu0 %v5614, 48
    %v5680 = vpop.permute.xlu0 %5679
    %5681 = vrot.lane.b32.xlu0 %v5615, 48
    %v5682 = vpop.permute.xlu0 %5681
    %5683 = vrot.lane.b32.xlu0 %v5616, 48
    %v5684 = vpop.permute.xlu0 %5683
    %5685 = vrot.lane.b32.xlu0 %v5617, 48
    %v5686 = vpop.permute.xlu0 %5685
    %5687 = vrot.lane.b32.xlu0 %v5618, 48
    %v5688 = vpop.permute.xlu0 %5687
    %5689 = vrot.lane.b32.xlu0 %v5619, 48
    %v5690 = vpop.permute.xlu0 %5689
    %5691 = vrot.lane.b32.xlu0 %v5620, 48
    %v5692 = vpop.permute.xlu0 %5691
    %5693 = vrot.lane.b32.xlu0 %v5621, 48
    %v5694 = vpop.permute.xlu0 %5693
    %5695 = vrot.lane.b32.xlu0 %v5622, 48
    %v5696 = vpop.permute.xlu0 %5695
    %5697 = vrot.lane.b32.xlu0 %v5623, 48
    %v5698 = vpop.permute.xlu0 %5697
    %5699 = vrot.lane.b32.xlu0 %v5624, 48
    %v5700 = vpop.permute.xlu0 %5699
    %5701 = vrot.lane.b32.xlu0 %v5625, 48
    %v5702 = vpop.permute.xlu0 %5701
    %5703 = vrot.lane.b32.xlu0 %v5626, 48
    %v5704 = vpop.permute.xlu0 %5703
    %5705 = vrot.lane.b32.xlu0 %v5627, 48
    %v5706 = vpop.permute.xlu0 %5705
    %5707 = vrot.lane.b32.xlu0 %v5628, 48
    %v5708 = vpop.permute.xlu0 %5707
    %5709 = vrot.lane.b32.xlu0 %v5629, 48
    %v5710 = vpop.permute.xlu0 %5709
    %5711 = vrot.lane.b32.xlu0 %v5630, 48
    %v5712 = vpop.permute.xlu0 %5711
    %5713 = vrot.lane.b32.xlu0 %v5631, 48
    %v5714 = vpop.permute.xlu0 %5713
    %5715 = vrot.lane.b32.xlu0 %v5632, 48
    %v5716 = vpop.permute.xlu0 %5715
    %5717 = vrot.lane.b32.xlu0 %v5633, 48
    %v5718 = vpop.permute.xlu0 %5717
    %5719 = vrot.lane.b32.xlu0 %v5634, 48
    %v5720 = vpop.permute.xlu0 %5719
    %5721 = vrot.lane.b32.xlu0 %v5635, 48
    %v5722 = vpop.permute.xlu0 %5721
    %5723 = vrot.lane.b32.xlu0 %v5636, 48
    %v5724 = vpop.permute.xlu0 %5723
    %5725 = vrot.lane.b32.xlu0 %v5637, 48
    %v5726 = vpop.permute.xlu0 %5725
    %5727 = vrot.lane.b32.xlu0 %v5638, 48
    %v5728 = vpop.permute.xlu0 %5727
    %5729 = vrot.lane.b32.xlu0 %v5639, 48
    %v5730 = vpop.permute.xlu0 %5729
    %5731 = vrot.lane.b32.xlu0 %v5640, 48
    %v5732 = vpop.permute.xlu0 %5731
    %5733 = vrot.lane.b32.xlu0 %v5641, 48
    %v5734 = vpop.permute.xlu0 %5733
    %5735 = vrot.lane.b32.xlu0 %v5642, 48
    %v5736 = vpop.permute.xlu0 %5735
    %5737 = vrot.lane.b32.xlu0 %v5643, 48
    %v5738 = vpop.permute.xlu0 %5737
    %5739 = vrot.lane.b32.xlu0 %v5644, 48
    %v5740 = vpop.permute.xlu0 %5739
    %vm5773 = vcmask 519552
    %5774 = vst.msk [vmem:[#allocation2] sm:$0xf] %vm5773, %v5678
    %5775 = vst.msk [vmem:[#allocation2 + $0x4] sm:$0xf] %vm5773, %v5680
    %5776 = vst.msk [vmem:[#allocation2 + $0x8] sm:$0xf] %vm5773, %v5682
    %5777 = vst.msk [vmem:[#allocation2 + $0xc] sm:$0xf] %vm5773, %v5684
    %5778 = vst.msk [vmem:[#allocation2 + $0x10] sm:$0xf] %vm5773, %v5686
    %5779 = vst.msk [vmem:[#allocation2 + $0x14] sm:$0xf] %vm5773, %v5688
    %5780 = vst.msk [vmem:[#allocation2 + $0x18] sm:$0xf] %vm5773, %v5690
    %5781 = vst.msk [vmem:[#allocation2 + $0x1c] sm:$0xf] %vm5773, %v5692
    %5782 = vst.msk [vmem:[#allocation2 + $0x20] sm:$0xf] %vm5773, %v5694
    %5783 = vst.msk [vmem:[#allocation2 + $0x24] sm:$0xf] %vm5773, %v5696
    %5784 = vst.msk [vmem:[#allocation2 + $0x28] sm:$0xf] %vm5773, %v5698
    %5785 = vst.msk [vmem:[#allocation2 + $0x2c] sm:$0xf] %vm5773, %v5700
    %5786 = vst.msk [vmem:[#allocation2 + $0x30] sm:$0xf] %vm5773, %v5702
    %5787 = vst.msk [vmem:[#allocation2 + $0x34] sm:$0xf] %vm5773, %v5704
    %5788 = vst.msk [vmem:[#allocation2 + $0x38] sm:$0xf] %vm5773, %v5706
    %5789 = vst.msk [vmem:[#allocation2 + $0x3c] sm:$0xf] %vm5773, %v5708
    %5790 = vst.msk [vmem:[#allocation2 + $0x40] sm:$0xf] %vm5773, %v5710
    %5791 = vst.msk [vmem:[#allocation2 + $0x44] sm:$0xf] %vm5773, %v5712
    %5792 = vst.msk [vmem:[#allocation2 + $0x48] sm:$0xf] %vm5773, %v5714
    %5793 = vst.msk [vmem:[#allocation2 + $0x4c] sm:$0xf] %vm5773, %v5716
    %5794 = vst.msk [vmem:[#allocation2 + $0x50] sm:$0xf] %vm5773, %v5718
    %5795 = vst.msk [vmem:[#allocation2 + $0x54] sm:$0xf] %vm5773, %v5720
    %5796 = vst.msk [vmem:[#allocation2 + $0x58] sm:$0xf] %vm5773, %v5722
    %5797 = vst.msk [vmem:[#allocation2 + $0x5c] sm:$0xf] %vm5773, %v5724
    %5798 = vst.msk [vmem:[#allocation2 + $0x60] sm:$0xf] %vm5773, %v5726
    %5799 = vst.msk [vmem:[#allocation2 + $0x64] sm:$0xf] %vm5773, %v5728
    %5800 = vst.msk [vmem:[#allocation2 + $0x68] sm:$0xf] %vm5773, %v5730
    %5801 = vst.msk [vmem:[#allocation2 + $0x6c] sm:$0xf] %vm5773, %v5732
    %5802 = vst.msk [vmem:[#allocation2 + $0x70] sm:$0xf] %vm5773, %v5734
    %5803 = vst.msk [vmem:[#allocation2 + $0x74] sm:$0xf] %vm5773, %v5736
    %5804 = vst.msk [vmem:[#allocation2 + $0x78] sm:$0xf] %vm5773, %v5738
    %5805 = vst.msk [vmem:[#allocation2 + $0x7c] sm:$0xf] %vm5773, %v5740
    %v5806 = vld [vmem:[#allocation2] sm:$0xf]
    %v5807 = vld [vmem:[#allocation2 + $0x4] sm:$0xf]
    %v5808 = vld [vmem:[#allocation2 + $0x8] sm:$0xf]
    %v5809 = vld [vmem:[#allocation2 + $0xc] sm:$0xf]
    %v5810 = vld [vmem:[#allocation2 + $0x10] sm:$0xf]
    %v5811 = vld [vmem:[#allocation2 + $0x14] sm:$0xf]
    %v5812 = vld [vmem:[#allocation2 + $0x18] sm:$0xf]
    %v5813 = vld [vmem:[#allocation2 + $0x1c] sm:$0xf]
    %v5814 = vld [vmem:[#allocation2 + $0x20] sm:$0xf]
    %v5815 = vld [vmem:[#allocation2 + $0x24] sm:$0xf]
    %v5816 = vld [vmem:[#allocation2 + $0x28] sm:$0xf]
    %v5817 = vld [vmem:[#allocation2 + $0x2c] sm:$0xf]
    %v5818 = vld [vmem:[#allocation2 + $0x30] sm:$0xf]
    %v5819 = vld [vmem:[#allocation2 + $0x34] sm:$0xf]
    %v5820 = vld [vmem:[#allocation2 + $0x38] sm:$0xf]
    %v5821 = vld [vmem:[#allocation2 + $0x3c] sm:$0xf]
    %v5822 = vld [vmem:[#allocation2 + $0x40] sm:$0xf]
    %v5823 = vld [vmem:[#allocation2 + $0x44] sm:$0xf]
    %v5824 = vld [vmem:[#allocation2 + $0x48] sm:$0xf]
    %v5825 = vld [vmem:[#allocation2 + $0x4c] sm:$0xf]
    %v5826 = vld [vmem:[#allocation2 + $0x50] sm:$0xf]
    %v5827 = vld [vmem:[#allocation2 + $0x54] sm:$0xf]
    %v5828 = vld [vmem:[#allocation2 + $0x58] sm:$0xf]
    %v5829 = vld [vmem:[#allocation2 + $0x5c] sm:$0xf]
    %v5830 = vld [vmem:[#allocation2 + $0x60] sm:$0xf]
    %v5831 = vld [vmem:[#allocation2 + $0x64] sm:$0xf]
    %v5832 = vld [vmem:[#allocation2 + $0x68] sm:$0xf]
    %v5833 = vld [vmem:[#allocation2 + $0x6c] sm:$0xf]
    %v5834 = vld [vmem:[#allocation2 + $0x70] sm:$0xf]
    %v5835 = vld [vmem:[#allocation2 + $0x74] sm:$0xf]
    %v5836 = vld [vmem:[#allocation2 + $0x78] sm:$0xf]
    %v5837 = vld [vmem:[#allocation2 + $0x7c] sm:$0xf]
    %v5838 = vld [vmem:[#allocation8] sm:$0xf]
    %v5839 = vld [vmem:[#allocation8 + $0x4] sm:$0xf]
    %v5840 = vld [vmem:[#allocation8 + $0x8] sm:$0xf]
    %v5841 = vld [vmem:[#allocation8 + $0xc] sm:$0xf]
    %v5842 = vld [vmem:[#allocation8 + $0x10] sm:$0xf]
    %v5843 = vld [vmem:[#allocation8 + $0x14] sm:$0xf]
    %v5844 = vld [vmem:[#allocation8 + $0x18] sm:$0xf]
    %v5845 = vld [vmem:[#allocation8 + $0x1c] sm:$0xf]
    %v5846 = vld [vmem:[%s3] sm:$0x1]
    %v5848 = vperm.slane %v5846, 0
    %v5882 = vunpack.c.l.b16 %v5806
    %v5883 = vunpack.c.l.b16 %v5807
    %v5884 = vunpack.c.l.b16 %v5808
    %v5885 = vunpack.c.l.b16 %v5809
    %v5886 = vunpack.c.l.b16 %v5810
    %v5887 = vunpack.c.l.b16 %v5811
    %v5888 = vunpack.c.l.b16 %v5812
    %v5889 = vunpack.c.l.b16 %v5813
    %v5890 = vunpack.c.l.b16 %v5814
    %v5891 = vunpack.c.l.b16 %v5815
    %v5892 = vunpack.c.l.b16 %v5816
    %v5893 = vunpack.c.l.b16 %v5817
    %v5894 = vunpack.c.l.b16 %v5818
    %v5895 = vunpack.c.l.b16 %v5819
    %v5896 = vunpack.c.l.b16 %v5820
    %v5897 = vunpack.c.l.b16 %v5821
    %v5898 = vunpack.c.l.b16 %v5822
    %v5899 = vunpack.c.l.b16 %v5823
    %v5900 = vunpack.c.l.b16 %v5824
    %v5901 = vunpack.c.l.b16 %v5825
    %v5902 = vunpack.c.l.b16 %v5826
    %v5903 = vunpack.c.l.b16 %v5827
    %v5904 = vunpack.c.l.b16 %v5828
    %v5905 = vunpack.c.l.b16 %v5829
    %v5906 = vunpack.c.l.b16 %v5830
    %v5907 = vunpack.c.l.b16 %v5831
    %v5908 = vunpack.c.l.b16 %v5832
    %v5909 = vunpack.c.l.b16 %v5833
    %v5910 = vunpack.c.l.b16 %v5834
    %v5911 = vunpack.c.l.b16 %v5835
    %v5912 = vunpack.c.l.b16 %v5836
    %v5913 = vunpack.c.l.b16 %v5837
    %v5914 = vpack.c.b16 %v5883, %v5882
    %v5915 = vpack.c.b16 %v5885, %v5884
    %v5916 = vpack.c.b16 %v5887, %v5886
    %v5917 = vpack.c.b16 %v5889, %v5888
    %v5918 = vpack.c.b16 %v5891, %v5890
    %v5919 = vpack.c.b16 %v5893, %v5892
    %v5920 = vpack.c.b16 %v5895, %v5894
    %v5921 = vpack.c.b16 %v5897, %v5896
    %v5922 = vpack.c.b16 %v5899, %v5898
    %v5923 = vpack.c.b16 %v5901, %v5900
    %v5924 = vpack.c.b16 %v5903, %v5902
    %v5925 = vpack.c.b16 %v5905, %v5904
    %v5926 = vpack.c.b16 %v5907, %v5906
    %v5927 = vpack.c.b16 %v5909, %v5908
    %v5928 = vpack.c.b16 %v5911, %v5910
    %v5929 = vpack.c.b16 %v5913, %v5912
    %v5938 = vunpack.c.l.b16 %v5838
    %v5939 = vunpack.c.l.b16 %v5839
    %v5940 = vunpack.c.l.b16 %v5840
    %v5941 = vunpack.c.l.b16 %v5841
    %v5942 = vunpack.c.l.b16 %v5842
    %v5943 = vunpack.c.l.b16 %v5843
    %v5944 = vunpack.c.l.b16 %v5844
    %v5945 = vunpack.c.l.b16 %v5845
    %v5946 = vpack.c.b16 %v5939, %v5938
    %v5947 = vpack.c.b16 %v5941, %v5940
    %v5948 = vpack.c.b16 %v5943, %v5942
    %v5949 = vpack.c.b16 %v5945, %v5944
    %v5955 = vsel %vm226, %v5914, 0
    %v5958 = vsel %vm226, %v5915, 0
    %v5961 = vsel %vm226, %v5916, 0
    %v5964 = vsel %vm226, %v5917, 0
    %v5967 = vsel %vm226, %v5918, 0
    %v5970 = vsel %vm226, %v5919, 0
    %v5973 = vsel %vm226, %v5920, 0
    %v5976 = vsel %vm226, %v5921, 0
    %v5979 = vsel %vm226, %v5922, 0
    %v5982 = vsel %vm226, %v5923, 0
    %v5985 = vsel %vm226, %v5924, 0
    %v5988 = vsel %vm226, %v5925, 0
    %v5991 = vsel %vm226, %v5926, 0
    %v5994 = vsel %vm226, %v5927, 0
    %v5997 = vsel %vm226, %v5928, 0
    %v6000 = vsel %vm226, %v5929, 0
    %6002 = vmatpush.bf16.msra.mxu0 0
    %6003 = vmatpush.bf16.msra.mxu0 0
    %6004 = vmatpush.bf16.msra.mxu0 0
    %6005 = vmatpush.bf16.msra.mxu0 0
    %6006 = vmatpush.bf16.msra.mxu0 %v5949
    %6007 = vmatpush.bf16.msra.mxu0 %v5948
    %6008 = vmatpush.bf16.msra.mxu0 %v5947
    %6009 = vmatpush.bf16.msra.mxu0 %v5946
    %6010 = vmatmul.bf16.gmra.mxu0 %v5955
    %v6011 = vpop.f32.mrf.mxu0
    %v6012 = vadd.f32 %v5848, %v6011
    %v6013 = vpop.f32.mrf.mxu0
    %v6014 = vadd.f32 %v5848, %v6013
    %6015 = vmatmul.bf16.gmra.mxu0 %v5958
    %v6016 = vpop.f32.mrf.mxu0
    %v6017 = vadd.f32 %v5848, %v6016
    %v6018 = vpop.f32.mrf.mxu0
    %v6019 = vadd.f32 %v5848, %v6018
    %6020 = vmatmul.bf16.gmra.mxu0 %v5961
    %v6021 = vpop.f32.mrf.mxu0
    %v6022 = vadd.f32 %v5848, %v6021
    %v6023 = vpop.f32.mrf.mxu0
    %v6024 = vadd.f32 %v5848, %v6023
    %6025 = vmatmul.bf16.gmra.mxu0 %v5964
    %v6026 = vpop.f32.mrf.mxu0
    %v6027 = vadd.f32 %v5848, %v6026
    %v6028 = vpop.f32.mrf.mxu0
    %v6029 = vadd.f32 %v5848, %v6028
    %6030 = vmatmul.bf16.gmra.mxu0 %v5967
    %v6031 = vpop.f32.mrf.mxu0
    %v6032 = vadd.f32 %v5848, %v6031
    %v6033 = vpop.f32.mrf.mxu0
    %v6034 = vadd.f32 %v5848, %v6033
    %6035 = vmatmul.bf16.gmra.mxu0 %v5970
    %v6036 = vpop.f32.mrf.mxu0
    %v6037 = vadd.f32 %v5848, %v6036
    %v6038 = vpop.f32.mrf.mxu0
    %v6039 = vadd.f32 %v5848, %v6038
    %6040 = vmatmul.bf16.gmra.mxu0 %v5973
    %v6041 = vpop.f32.mrf.mxu0
    %v6042 = vadd.f32 %v5848, %v6041
    %v6043 = vpop.f32.mrf.mxu0
    %v6044 = vadd.f32 %v5848, %v6043
    %6045 = vmatmul.bf16.gmra.mxu0 %v5976
    %v6046 = vpop.f32.mrf.mxu0
    %v6047 = vadd.f32 %v5848, %v6046
    %v6048 = vpop.f32.mrf.mxu0
    %v6049 = vadd.f32 %v5848, %v6048
    %6050 = vmatmul.bf16.gmra.mxu0 %v5979
    %v6051 = vpop.f32.mrf.mxu0
    %v6052 = vadd.f32 %v5848, %v6051
    %v6053 = vpop.f32.mrf.mxu0
    %v6054 = vadd.f32 %v5848, %v6053
    %6055 = vmatmul.bf16.gmra.mxu0 %v5982
    %v6056 = vpop.f32.mrf.mxu0
    %v6057 = vadd.f32 %v5848, %v6056
    %v6058 = vpop.f32.mrf.mxu0
    %v6059 = vadd.f32 %v5848, %v6058
    %6060 = vmatmul.bf16.gmra.mxu0 %v5985
    %v6061 = vpop.f32.mrf.mxu0
    %v6062 = vadd.f32 %v5848, %v6061
    %v6063 = vpop.f32.mrf.mxu0
    %v6064 = vadd.f32 %v5848, %v6063
    %6065 = vmatmul.bf16.gmra.mxu0 %v5988
    %v6066 = vpop.f32.mrf.mxu0
    %v6067 = vadd.f32 %v5848, %v6066
    %v6068 = vpop.f32.mrf.mxu0
    %v6069 = vadd.f32 %v5848, %v6068
    %6070 = vmatmul.bf16.gmra.mxu0 %v5991
    %v6071 = vpop.f32.mrf.mxu0
    %v6072 = vadd.f32 %v5848, %v6071
    %v6073 = vpop.f32.mrf.mxu0
    %v6074 = vadd.f32 %v5848, %v6073
    %6075 = vmatmul.bf16.gmra.mxu0 %v5994
    %v6076 = vpop.f32.mrf.mxu0
    %v6077 = vadd.f32 %v5848, %v6076
    %v6078 = vpop.f32.mrf.mxu0
    %v6079 = vadd.f32 %v5848, %v6078
    %6080 = vmatmul.bf16.gmra.mxu0 %v5997
    %v6081 = vpop.f32.mrf.mxu0
    %v6082 = vadd.f32 %v5848, %v6081
    %v6083 = vpop.f32.mrf.mxu0
    %v6084 = vadd.f32 %v5848, %v6083
    %6085 = vmatmul.bf16.gmra.mxu0 %v6000
    %v6086 = vpop.f32.mrf.mxu0
    %v6087 = vadd.f32 %v5848, %v6086
    %v6088 = vpop.f32.mrf.mxu0
    %v6089 = vadd.f32 %v5848, %v6088
    %6090 = vdwg.mxu0
    %6091 = vst.msk [vmem:[#allocation9] sm:$0xff] %vm226, %v6012
    %6092 = vst.msk [vmem:[#allocation9 + $0x8] sm:$0xff] %vm226, %v6014
    %6093 = vst.msk [vmem:[#allocation9 + $0x10] sm:$0xff] %vm226, %v6017
    %6094 = vst.msk [vmem:[#allocation9 + $0x18] sm:$0xff] %vm226, %v6019
    %6095 = vst.msk [vmem:[#allocation9 + $0x20] sm:$0xff] %vm226, %v6022
    %6096 = vst.msk [vmem:[#allocation9 + $0x28] sm:$0xff] %vm226, %v6024
    %6097 = vst.msk [vmem:[#allocation9 + $0x30] sm:$0xff] %vm226, %v6027
    %6098 = vst.msk [vmem:[#allocation9 + $0x38] sm:$0xff] %vm226, %v6029
    %6099 = vst.msk [vmem:[#allocation9 + $0x40] sm:$0xff] %vm226, %v6032
    %6100 = vst.msk [vmem:[#allocation9 + $0x48] sm:$0xff] %vm226, %v6034
    %6101 = vst.msk [vmem:[#allocation9 + $0x50] sm:$0xff] %vm226, %v6037
    %6102 = vst.msk [vmem:[#allocation9 + $0x58] sm:$0xff] %vm226, %v6039
    %6103 = vst.msk [vmem:[#allocation9 + $0x60] sm:$0xff] %vm226, %v6042
    %6104 = vst.msk [vmem:[#allocation9 + $0x68] sm:$0xff] %vm226, %v6044
    %6105 = vst.msk [vmem:[#allocation9 + $0x70] sm:$0xff] %vm226, %v6047
    %6106 = vst.msk [vmem:[#allocation9 + $0x78] sm:$0xff] %vm226, %v6049
    %6107 = vst.msk [vmem:[#allocation9 + $0x80] sm:$0xff] %vm226, %v6052
    %6108 = vst.msk [vmem:[#allocation9 + $0x88] sm:$0xff] %vm226, %v6054
    %6109 = vst.msk [vmem:[#allocation9 + $0x90] sm:$0xff] %vm226, %v6057
    %6110 = vst.msk [vmem:[#allocation9 + $0x98] sm:$0xff] %vm226, %v6059
    %6111 = vst.msk [vmem:[#allocation9 + $0xa0] sm:$0xff] %vm226, %v6062
    %6112 = vst.msk [vmem:[#allocation9 + $0xa8] sm:$0xff] %vm226, %v6064
    %6113 = vst.msk [vmem:[#allocation9 + $0xb0] sm:$0xff] %vm226, %v6067
    %6114 = vst.msk [vmem:[#allocation9 + $0xb8] sm:$0xff] %vm226, %v6069
    %6115 = vst.msk [vmem:[#allocation9 + $0xc0] sm:$0xff] %vm226, %v6072
    %6116 = vst.msk [vmem:[#allocation9 + $0xc8] sm:$0xff] %vm226, %v6074
    %6117 = vst.msk [vmem:[#allocation9 + $0xd0] sm:$0xff] %vm226, %v6077
    %6118 = vst.msk [vmem:[#allocation9 + $0xd8] sm:$0xff] %vm226, %v6079
    %6119 = vst.msk [vmem:[#allocation9 + $0xe0] sm:$0xff] %vm226, %v6082
    %6120 = vst.msk [vmem:[#allocation9 + $0xe8] sm:$0xff] %vm226, %v6084
    %6121 = vst.msk [vmem:[#allocation9 + $0xf0] sm:$0xff] %vm226, %v6087
    %6122 = vst.msk [vmem:[#allocation9 + $0xf8] sm:$0xff] %vm226, %v6089
    // Predicated region
    $region30: #{tpu_custom_call.1} parent=1 // pred_check
      _
    $region31: #{tpu_custom_call.1} parent=1 // pred_check_branch
      %6124 = sbr.rel (0) target = $region33
    $region32: #{tpu_custom_call.1} parent=1 // pred_region
      %6126 = vsyncadd [#allocation5], 0
      %s6127 = sshll.u32 [#allocation9], 4
      %s6128 = int_to_ptr.vmem [resolvable:$true] %s6127
      %s6129 = sshll.u32 %s4, 4
      %s6130 = int_to_ptr.hbm [resolvable:$true] %s6129
      %6135 = dma.vmem_to_hbm [thread:$0]  %s6128, 4096, %s6130, [#allocation5], 128, 128, 8
    $region33: #{tpu_custom_call.1} parent=1 // pred_fallthru
      _
    // Predicated region
    $region34: #{tpu_custom_call.1} parent=1 // pred_check
      _
    $region35: #{tpu_custom_call.1} parent=1 // pred_check_branch
      %6137 = sbr.rel (0) target = $region37
    $region36: #{tpu_custom_call.1} parent=1 // pred_region
      %6139 = dma.done [#allocation5], 4096
    $region37: #{tpu_custom_call.1} parent=1 // pred_fallthru
      _
    %6140 = vsyncpa [#allocation4], 1
    %6141 = vsyncpa [#allocation7], 1
    %6142 = vsyncpa [#allocation5], 1

</llo_original>
